<compile_context>
chip_gen: v5e
topology: v5e:2x2
jax: 0.10.0
libtpu: 0.0.40
codegen_flags: <defaults>
</compile_context>

<pallas_src>
import numpy as np
import jax
import jax.numpy as jnp
from jax.experimental import pallas as pl
from jax.experimental.pallas import tpu as pltpu


# ---------------------------------------------------------------- config ----
def build_vocab(sentences):
    vocab = {'<PAD>': 0, '<SOS>': 1, '<EOS>': 2, '<UNK>': 3}
    for sentence in sentences:
        for word in sentence.split():
            if word not in vocab:
                vocab[word] = len(vocab)
    return vocab


french_sentences = ['bonjour', 'comment ça va', 'bon matin', 'merci', 'bonne nuit']
french_vocab = build_vocab(french_sentences)

OUTPUT_DIM = len(french_vocab)      # 13
EMBED_DIM = 64
HIDDEN_DIM = 128
NUM_LAYERS = 2
OUT_PAD = 128                       # fc output lane-padded 13 -> 128 (dense vst)


# ---------------------------------------------------------------- kernel ----
def decoder_kernel(x_ref,                        # (T, B, E)      bf16 embedded inputs
                   wih0_ref, whh0_ref, b0_ref,   # (E,4H),(H,4H) bf16 / (1,4H) f32
                   wih1_ref, whh1_ref, b1_ref,   # (H,4H),(H,4H) bf16 / (1,4H) f32
                   wfc_ref, bfc_ref,             # (H,OUT_PAD)   bf16 / (1,OUT_PAD) f32
                   h_init_ref, c_init_ref,       # (L, B, H) f32
                   pred_ref,                     # (T, B, OUT_PAD) f32
                   h_out_ref, c_out_ref):        # (L, B, H) f32
    T, B, _ = x_ref.shape
    H = h_init_ref.shape[-1]

    # ---- loop-invariant weight loads / bias broadcasts (hoisted) ------------
    wih0 = wih0_ref[...]
    whh0 = whh0_ref[...]
    wih1 = wih1_ref[...]
    whh1 = whh1_ref[...]
    wfc = wfc_ref[...]
    b0 = jnp.broadcast_to(b0_ref[...], (B, 4 * H))
    b1 = jnp.broadcast_to(b1_ref[...], (B, 4 * H))
    bfc = jnp.broadcast_to(bfc_ref[...], (B, bfc_ref.shape[-1]))

    # Recurrent state carried in SSA values (f32) across the unrolled loop.
    h0 = h_init_ref[0]
    c0 = c_init_ref[0]
    h1 = h_init_ref[1]
    c1 = c_init_ref[1]

    def cell(x_bf, h_prev, c_prev, wih, whh, b):
        # Gate columns were permuted offline to [i | f | o | g].
        gates = (jnp.dot(x_bf, wih, preferred_element_type=jnp.float32)
                 + jnp.dot(h_prev.astype(whh.dtype), whh,
                           preferred_element_type=jnp.float32)
                 + b)                                      # (B, 4H) f32
        sig = jax.nn.sigmoid(gates[:, :3 * H])             # i, f, o in one launch
        g_g = jnp.tanh(gates[:, 3 * H:])                   # g
        i_g = sig[:, :H]
        f_g = sig[:, H:2 * H]
        o_g = sig[:, 2 * H:]
        c_new = f_g * c_prev + i_g * g_g
        h_new = o_g * jnp.tanh(c_new)
        return h_new, c_new

    # Single invocation: static fully-unrolled loop over decode steps (T small).
    for t in range(T):
        x = x_ref[t]                                       # (B, E) bf16
        h0, c0 = cell(x, h0, c0, wih0, whh0, b0)
        h1, c1 = cell(h0.astype(wih1.dtype), h1, c1, wih1, whh1, b1)
        pred_ref[t] = (jnp.dot(h1.astype(wfc.dtype), wfc,
                               preferred_element_type=jnp.float32) + bfc)

    h_out_ref[0] = h0
    h_out_ref[1] = h1
    c_out_ref[0] = c0
    c_out_ref[1] = c1


# --------------------------------------------------------------- wrappers ---
def decoder_forward_seq(tokens, hidden, cell, params):
    """Run the decoder over a (T, B) sequence of token ids (teacher forcing).

    Each unrolled step t is exactly one PyTorch Decoder.forward(x_t, hidden, cell).
    """
    T, B = tokens.shape
    H = HIDDEN_DIM

    # Embedding gather hoisted out of the kernel: one jnp.take for all T*B
    # tokens. NOTE: jnp.take clamps out-of-range ids; caller must keep ids < vocab.
    x_embed = jnp.take(params["embedding"], tokens, axis=0).astype(jnp.bfloat16)

    def vmem():
        return pl.BlockSpec(memory_space=pltpu.MemorySpace.VMEM)

    preds_pad, h_out, c_out = pl.pallas_call(
        decoder_kernel,
        out_shape=(
            jax.ShapeDtypeStruct((T, B, OUT_PAD), jnp.float32),
            jax.ShapeDtypeStruct((NUM_LAYERS, B, H), jnp.float32),
            jax.ShapeDtypeStruct((NUM_LAYERS, B, H), jnp.float32),
        ),
        in_specs=[vmem() for _ in range(11)],
        out_specs=(vmem(), vmem(), vmem()),
    )(x_embed,
      params["wih0_k"], params["whh0_k"], params["b0_k"],
      params["wih1_k"], params["whh1_k"], params["b1_k"],
      params["wfc_pad"], params["bfc_pad"],
      hidden, cell)

    return preds_pad[:, :, :OUTPUT_DIM], h_out, c_out


def decoder_step(x_tokens, hidden, cell, params):
    """Single-step API matching PyTorch Decoder.forward(x, hidden, cell)."""
    preds, h, c = decoder_forward_seq(x_tokens[None, :], hidden, cell, params)
    return preds[0], h, c


# ------------------------------------------------------------- parameters ---
def _permute_ifgo_to_ifog(w):
    """Permute gate columns from PyTorch [i|f|g|o] to kernel [i|f|o|g]."""
    i, f, g, o = jnp.split(w, 4, axis=-1)
    return jnp.concatenate([i, f, o, g], axis=-1)


def init_params(key):
    ks = jax.random.split(key, 10)
    bound = 1.0 / np.sqrt(HIDDEN_DIM)

    def u(k, shape):
        return jax.random.uniform(k, shape, jnp.float32, -bound, bound)

    embedding = jax.random.normal(ks[0], (OUTPUT_DIM, EMBED_DIM), jnp.float32)

    # Raw (reference) LSTM params, pre-transposed to (in, 4H), PyTorch [i|f|g|o].
    wih0 = u(ks[1], (EMBED_DIM, 4 * HIDDEN_DIM))
    whh0 = u(ks[2], (HIDDEN_DIM, 4 * HIDDEN_DIM))
    b0 = u(ks[3], (1, 4 * HIDDEN_DIM)) + u(ks[4], (1, 4 * HIDDEN_DIM))

    wih1 = u(ks[5], (HIDDEN_DIM, 4 * HIDDEN_DIM))
    whh1 = u(ks[6], (HIDDEN_DIM, 4 * HIDDEN_DIM))
    b1 = u(ks[7], (1, 4 * HIDDEN_DIM)) + u(ks[8], (1, 4 * HIDDEN_DIM))

    wfc = u(ks[9], (HIDDEN_DIM, OUTPUT_DIM))
    bfc = jnp.zeros((1, OUTPUT_DIM), jnp.float32)

    # ---- kernel params: gate-permuted, bf16 matrices, f32 biases ------------
    wfc_pad = jnp.zeros((HIDDEN_DIM, OUT_PAD), jnp.float32)
    wfc_pad = wfc_pad.at[:, :OUTPUT_DIM].set(wfc)
    bfc_pad = jnp.zeros((1, OUT_PAD), jnp.float32)
    bfc_pad = bfc_pad.at[:, :OUTPUT_DIM].set(bfc)

    return dict(
        # raw f32 params (reference)
        embedding=embedding, wih0=wih0, whh0=whh0, b0=b0,
        wih1=wih1, whh1=whh1, b1=b1, wfc=wfc, bfc=bfc,
        # kernel params
        wih0_k=_permute_ifgo_to_ifog(wih0).astype(jnp.bfloat16),
        whh0_k=_permute_ifgo_to_ifog(whh0).astype(jnp.bfloat16),
        b0_k=_permute_ifgo_to_ifog(b0),
        wih1_k=_permute_ifgo_to_ifog(wih1).astype(jnp.bfloat16),
        whh1_k=_permute_ifgo_to_ifog(whh1).astype(jnp.bfloat16),
        b1_k=_permute_ifgo_to_ifog(b1),
        wfc_pad=wfc_pad.astype(jnp.bfloat16),
        bfc_pad=bfc_pad,
    )


# -------------------------------------------------------- pure-JAX reference
def reference_forward_seq(tokens, hidden, cell, params):
    H = HIDDEN_DIM

    def cell_step(x, h, c, wih, whh, b):
        g = x @ wih + h @ whh + b
        i = jax.nn.sigmoid(g[:, :H])
        f = jax.nn.sigmoid(g[:, H:2 * H])
        gg = jnp.tanh(g[:, 2 * H:3 * H])
        o = jax.nn.sigmoid(g[:, 3 * H:])
        cn = f * c + i * gg
        return o * jnp.tanh(cn), cn

    h0, h1 = hidden[0], hidden[1]
    c0, c1 = cell[0], cell[1]
    preds = []
    for t in range(tokens.shape[0]):
        x = jnp.take(params["embedding"], tokens[t], axis=0)
        h0, c0 = cell_step(x, h0, c0, params["wih0"], params["whh0"], params["b0"])
        h1, c1 = cell_step(h0, h1, c1, params["wih1"], params["whh1"], params["b1"])
        preds.append(h1 @ params["wfc"] + params["bfc"])
    return (jnp.stack(preds, axis=0),
            jnp.stack([h0, h1], axis=0),
            jnp.stack([c0, c1], axis=0))


# -------------------------------------------------------------------- main --
if __name__ == "__main__":
    key = jax.random.PRNGKey(0)
    kp, kx, kh, kc = jax.random.split(key, 4)

    params = init_params(kp)

    # TODO(synk): B=2 fills only 2/8 f32 sublanes; batch to B>=8 (and shard
    # batch across v7x's 2 TensorCores) if the application allows.
    T, B = 8, 2
    tokens = jax.random.randint(kx, (T, B), 0, OUTPUT_DIM, dtype=jnp.int32)
    hidden = jax.random.normal(kh, (NUM_LAYERS, B, HIDDEN_DIM), jnp.float32)
    cell = jax.random.normal(kc, (NUM_LAYERS, B, HIDDEN_DIM), jnp.float32)

    # fused multi-step decode (single kernel invocation for all T steps)
    preds, new_h, new_c = decoder_forward_seq(tokens, hidden, cell, params)
    jax.block_until_ready((preds, new_h, new_c))

    # single-step API (== PyTorch Decoder.forward)
    step_pred, step_h, step_c = decoder_step(tokens[0], hidden, cell, params)
    jax.block_until_ready((step_pred, step_h, step_c))

    ref_preds, ref_h, ref_c = reference_forward_seq(tokens, hidden, cell, params)

    # bf16 weights in the kernel vs f32 reference -> loosened tolerances
    np.testing.assert_allclose(np.asarray(preds), np.asarray(ref_preds),
                               rtol=2e-2, atol=2e-2)
    np.testing.assert_allclose(np.asarray(new_h), np.asarray(ref_h),
                               rtol=2e-2, atol=2e-2)
    np.testing.assert_allclose(np.asarray(new_c), np.asarray(ref_c),
                               rtol=2e-2, atol=2e-2)
    np.testing.assert_allclose(np.asarray(step_pred), np.asarray(ref_preds[0]),
                               rtol=2e-2, atol=2e-2)

    assert preds.shape == (T, B, OUTPUT_DIM)
    assert new_h.shape == (NUM_LAYERS, B, HIDDEN_DIM)
    assert new_c.shape == (NUM_LAYERS, B, HIDDEN_DIM)
    print("KERNEL_OK")
</pallas_src>

<mosaic_0001>
module attributes {stable_mosaic.version = 11 : i64} {
  func.func @decoder_kernel(%arg0: memref<8x2x64xbf16, #tpu.memory_space<vmem>>, %arg1: memref<64x512xbf16, #tpu.memory_space<vmem>>, %arg2: memref<128x512xbf16, #tpu.memory_space<vmem>>, %arg3: memref<1x512xf32, #tpu.memory_space<vmem>>, %arg4: memref<128x512xbf16, #tpu.memory_space<vmem>>, %arg5: memref<128x512xbf16, #tpu.memory_space<vmem>>, %arg6: memref<1x512xf32, #tpu.memory_space<vmem>>, %arg7: memref<128x128xbf16, #tpu.memory_space<vmem>>, %arg8: memref<1x128xf32, #tpu.memory_space<vmem>>, %arg9: memref<2x2x128xf32, #tpu.memory_space<vmem>>, %arg10: memref<2x2x128xf32, #tpu.memory_space<vmem>>, %arg11: memref<8x2x128xf32, #tpu.memory_space<vmem>>, %arg12: memref<2x2x128xf32, #tpu.memory_space<vmem>>, %arg13: memref<2x2x128xf32, #tpu.memory_space<vmem>>) attributes {dimension_semantics = [], scalar_prefetch = 0 : i64, scratch_operands = 0 : i64, tpu.core_type = #tpu.core_type<tc>} {
    %c0 = arith.constant 0 : index
    %c0_0 = arith.constant 0 : index
    %0 = vector.load %arg1[%c0, %c0_0] : memref<64x512xbf16, #tpu.memory_space<vmem>>, vector<64x512xbf16>
    %c0_1 = arith.constant 0 : index
    %c0_2 = arith.constant 0 : index
    %1 = vector.load %arg2[%c0_1, %c0_2] : memref<128x512xbf16, #tpu.memory_space<vmem>>, vector<128x512xbf16>
    %c0_3 = arith.constant 0 : index
    %c0_4 = arith.constant 0 : index
    %2 = vector.load %arg4[%c0_3, %c0_4] : memref<128x512xbf16, #tpu.memory_space<vmem>>, vector<128x512xbf16>
    %c0_5 = arith.constant 0 : index
    %c0_6 = arith.constant 0 : index
    %3 = vector.load %arg5[%c0_5, %c0_6] : memref<128x512xbf16, #tpu.memory_space<vmem>>, vector<128x512xbf16>
    %c0_7 = arith.constant 0 : index
    %c0_8 = arith.constant 0 : index
    %4 = vector.load %arg7[%c0_7, %c0_8] : memref<128x128xbf16, #tpu.memory_space<vmem>>, vector<128x128xbf16>
    %c0_9 = arith.constant 0 : index
    %c0_10 = arith.constant 0 : index
    %5 = vector.load %arg3[%c0_9, %c0_10] : memref<1x512xf32, #tpu.memory_space<vmem>>, vector<1x512xf32>
    %6 = vector.shape_cast %5 : vector<1x512xf32> to vector<1x512xf32>
    %7 = vector.broadcast %6 : vector<1x512xf32> to vector<2x512xf32>
    %c0_11 = arith.constant 0 : index
    %c0_12 = arith.constant 0 : index
    %8 = vector.load %arg6[%c0_11, %c0_12] : memref<1x512xf32, #tpu.memory_space<vmem>>, vector<1x512xf32>
    %9 = vector.shape_cast %8 : vector<1x512xf32> to vector<1x512xf32>
    %10 = vector.broadcast %9 : vector<1x512xf32> to vector<2x512xf32>
    %c0_13 = arith.constant 0 : index
    %c0_14 = arith.constant 0 : index
    %11 = vector.load %arg8[%c0_13, %c0_14] : memref<1x128xf32, #tpu.memory_space<vmem>>, vector<1x128xf32>
    %12 = vector.shape_cast %11 : vector<1x128xf32> to vector<1x128xf32>
    %13 = vector.broadcast %12 : vector<1x128xf32> to vector<2x128xf32>
    %c0_15 = arith.constant 0 : index
    %c0_16 = arith.constant 0 : index
    %c0_17 = arith.constant 0 : index
    %14 = vector.load %arg9[%c0_15, %c0_16, %c0_17] : memref<2x2x128xf32, #tpu.memory_space<vmem>>, vector<1x2x128xf32>
    %15 = vector.shape_cast %14 : vector<1x2x128xf32> to vector<2x128xf32>
    %c0_18 = arith.constant 0 : index
    %c0_19 = arith.constant 0 : index
    %c0_20 = arith.constant 0 : index
    %16 = vector.load %arg10[%c0_18, %c0_19, %c0_20] : memref<2x2x128xf32, #tpu.memory_space<vmem>>, vector<1x2x128xf32>
    %17 = vector.shape_cast %16 : vector<1x2x128xf32> to vector<2x128xf32>
    %c1 = arith.constant 1 : index
    %c0_21 = arith.constant 0 : index
    %c0_22 = arith.constant 0 : index
    %18 = vector.load %arg9[%c1, %c0_21, %c0_22] : memref<2x2x128xf32, #tpu.memory_space<vmem>>, vector<1x2x128xf32>
    %19 = vector.shape_cast %18 : vector<1x2x128xf32> to vector<2x128xf32>
    %c1_23 = arith.constant 1 : index
    %c0_24 = arith.constant 0 : index
    %c0_25 = arith.constant 0 : index
    %20 = vector.load %arg10[%c1_23, %c0_24, %c0_25] : memref<2x2x128xf32, #tpu.memory_space<vmem>>, vector<1x2x128xf32>
    %21 = vector.shape_cast %20 : vector<1x2x128xf32> to vector<2x128xf32>
    %c0_26 = arith.constant 0 : index
    %c0_27 = arith.constant 0 : index
    %c0_28 = arith.constant 0 : index
    %22 = vector.load %arg0[%c0_26, %c0_27, %c0_28] : memref<8x2x64xbf16, #tpu.memory_space<vmem>>, vector<1x2x64xbf16>
    %23 = vector.shape_cast %22 : vector<1x2x64xbf16> to vector<2x64xbf16>
    %cst = arith.constant dense<0.000000e+00> : vector<2x512xf32>
    %24 = tpu.matmul %23, %0, %cst {dimension_numbers = #tpu.dot_dimension_numbers<[1], [0], [0], [1], [0, 0, 1, 1], [], []>} : vector<2x64xbf16>, vector<64x512xbf16>, vector<2x512xf32> -> vector<2x512xf32>
    %25 = arith.truncf %15 : vector<2x128xf32> to vector<2x128xbf16>
    %cst_29 = arith.constant dense<0.000000e+00> : vector<2x512xf32>
    %26 = tpu.matmul %25, %1, %cst_29 {dimension_numbers = #tpu.dot_dimension_numbers<[1], [0], [0], [1], [0, 0, 1, 1], [], []>} : vector<2x128xbf16>, vector<128x512xbf16>, vector<2x512xf32> -> vector<2x512xf32>
    %27 = arith.addf %24, %26 : vector<2x512xf32>
    %28 = arith.addf %27, %7 : vector<2x512xf32>
    %29 = vector.extract_strided_slice %28 {offsets = [0, 0], sizes = [2, 384], strides = [1, 1]} : vector<2x512xf32> to vector<2x384xf32>
    %30 = arith.negf %29 : vector<2x384xf32>
    %31 = math.exp %30 : vector<2x384xf32>
    %cst_30 = arith.constant 1.000000e+00 : f32
    %32 = vector.broadcast %cst_30 : f32 to vector<2x384xf32>
    %33 = arith.addf %32, %31 : vector<2x384xf32>
    %34 = arith.divf %32, %33 : vector<2x384xf32>
    %35 = vector.extract_strided_slice %28 {offsets = [0, 384], sizes = [2, 128], strides = [1, 1]} : vector<2x512xf32> to vector<2x128xf32>
    %36 = math.tanh %35 : vector<2x128xf32>
    %37 = vector.extract_strided_slice %34 {offsets = [0, 0], sizes = [2, 128], strides = [1, 1]} : vector<2x384xf32> to vector<2x128xf32>
    %38 = vector.extract_strided_slice %34 {offsets = [0, 128], sizes = [2, 128], strides = [1, 1]} : vector<2x384xf32> to vector<2x128xf32>
    %39 = vector.extract_strided_slice %34 {offsets = [0, 256], sizes = [2, 128], strides = [1, 1]} : vector<2x384xf32> to vector<2x128xf32>
    %40 = arith.mulf %38, %17 : vector<2x128xf32>
    %41 = arith.mulf %37, %36 : vector<2x128xf32>
    %42 = arith.addf %40, %41 : vector<2x128xf32>
    %43 = math.tanh %42 : vector<2x128xf32>
    %44 = arith.mulf %39, %43 : vector<2x128xf32>
    %45 = arith.truncf %44 : vector<2x128xf32> to vector<2x128xbf16>
    %cst_31 = arith.constant dense<0.000000e+00> : vector<2x512xf32>
    %46 = tpu.matmul %45, %2, %cst_31 {dimension_numbers = #tpu.dot_dimension_numbers<[1], [0], [0], [1], [0, 0, 1, 1], [], []>} : vector<2x128xbf16>, vector<128x512xbf16>, vector<2x512xf32> -> vector<2x512xf32>
    %47 = arith.truncf %19 : vector<2x128xf32> to vector<2x128xbf16>
    %cst_32 = arith.constant dense<0.000000e+00> : vector<2x512xf32>
    %48 = tpu.matmul %47, %3, %cst_32 {dimension_numbers = #tpu.dot_dimension_numbers<[1], [0], [0], [1], [0, 0, 1, 1], [], []>} : vector<2x128xbf16>, vector<128x512xbf16>, vector<2x512xf32> -> vector<2x512xf32>
    %49 = arith.addf %46, %48 : vector<2x512xf32>
    %50 = arith.addf %49, %10 : vector<2x512xf32>
    %51 = vector.extract_strided_slice %50 {offsets = [0, 0], sizes = [2, 384], strides = [1, 1]} : vector<2x512xf32> to vector<2x384xf32>
    %52 = arith.negf %51 : vector<2x384xf32>
    %53 = math.exp %52 : vector<2x384xf32>
    %cst_33 = arith.constant 1.000000e+00 : f32
    %54 = vector.broadcast %cst_33 : f32 to vector<2x384xf32>
    %55 = arith.addf %54, %53 : vector<2x384xf32>
    %56 = arith.divf %54, %55 : vector<2x384xf32>
    %57 = vector.extract_strided_slice %50 {offsets = [0, 384], sizes = [2, 128], strides = [1, 1]} : vector<2x512xf32> to vector<2x128xf32>
    %58 = math.tanh %57 : vector<2x128xf32>
    %59 = vector.extract_strided_slice %56 {offsets = [0, 0], sizes = [2, 128], strides = [1, 1]} : vector<2x384xf32> to vector<2x128xf32>
    %60 = vector.extract_strided_slice %56 {offsets = [0, 128], sizes = [2, 128], strides = [1, 1]} : vector<2x384xf32> to vector<2x128xf32>
    %61 = vector.extract_strided_slice %56 {offsets = [0, 256], sizes = [2, 128], strides = [1, 1]} : vector<2x384xf32> to vector<2x128xf32>
    %62 = arith.mulf %60, %21 : vector<2x128xf32>
    %63 = arith.mulf %59, %58 : vector<2x128xf32>
    %64 = arith.addf %62, %63 : vector<2x128xf32>
    %65 = math.tanh %64 : vector<2x128xf32>
    %66 = arith.mulf %61, %65 : vector<2x128xf32>
    %67 = arith.truncf %66 : vector<2x128xf32> to vector<2x128xbf16>
    %cst_34 = arith.constant dense<0.000000e+00> : vector<2x128xf32>
    %68 = tpu.matmul %67, %4, %cst_34 {dimension_numbers = #tpu.dot_dimension_numbers<[1], [0], [0], [1], [0, 0, 1, 1], [], []>} : vector<2x128xbf16>, vector<128x128xbf16>, vector<2x128xf32> -> vector<2x128xf32>
    %69 = arith.addf %68, %13 : vector<2x128xf32>
    %c0_35 = arith.constant 0 : index
    %c0_36 = arith.constant 0 : index
    %c0_37 = arith.constant 0 : index
    %70 = vector.load %arg11[%c0_35, %c0_36, %c0_37] : memref<8x2x128xf32, #tpu.memory_space<vmem>>, vector<1x2x128xf32>
    %71 = vector.shape_cast %70 : vector<1x2x128xf32> to vector<2x128xf32>
    %72 = vector.shape_cast %69 : vector<2x128xf32> to vector<1x2x128xf32>
    tpu.vector_store %arg11[%c0_35, %c0_36, %c0_37], %72 {strides = array<i32>} : memref<8x2x128xf32, #tpu.memory_space<vmem>>, vector<1x2x128xf32>,
    %c1_38 = arith.constant 1 : index
    %c0_39 = arith.constant 0 : index
    %c0_40 = arith.constant 0 : index
    %73 = vector.load %arg0[%c1_38, %c0_39, %c0_40] : memref<8x2x64xbf16, #tpu.memory_space<vmem>>, vector<1x2x64xbf16>
    %74 = vector.shape_cast %73 : vector<1x2x64xbf16> to vector<2x64xbf16>
    %cst_41 = arith.constant dense<0.000000e+00> : vector<2x512xf32>
    %75 = tpu.matmul %74, %0, %cst_41 {dimension_numbers = #tpu.dot_dimension_numbers<[1], [0], [0], [1], [0, 0, 1, 1], [], []>} : vector<2x64xbf16>, vector<64x512xbf16>, vector<2x512xf32> -> vector<2x512xf32>
    %76 = arith.truncf %44 : vector<2x128xf32> to vector<2x128xbf16>
    %cst_42 = arith.constant dense<0.000000e+00> : vector<2x512xf32>
    %77 = tpu.matmul %76, %1, %cst_42 {dimension_numbers = #tpu.dot_dimension_numbers<[1], [0], [0], [1], [0, 0, 1, 1], [], []>} : vector<2x128xbf16>, vector<128x512xbf16>, vector<2x512xf32> -> vector<2x512xf32>
    %78 = arith.addf %75, %77 : vector<2x512xf32>
    %79 = arith.addf %78, %7 : vector<2x512xf32>
    %80 = vector.extract_strided_slice %79 {offsets = [0, 0], sizes = [2, 384], strides = [1, 1]} : vector<2x512xf32> to vector<2x384xf32>
    %81 = arith.negf %80 : vector<2x384xf32>
    %82 = math.exp %81 : vector<2x384xf32>
    %cst_43 = arith.constant 1.000000e+00 : f32
    %83 = vector.broadcast %cst_43 : f32 to vector<2x384xf32>
    %84 = arith.addf %83, %82 : vector<2x384xf32>
    %85 = arith.divf %83, %84 : vector<2x384xf32>
    %86 = vector.extract_strided_slice %79 {offsets = [0, 384], sizes = [2, 128], strides = [1, 1]} : vector<2x512xf32> to vector<2x128xf32>
    %87 = math.tanh %86 : vector<2x128xf32>
    %88 = vector.extract_strided_slice %85 {offsets = [0, 0], sizes = [2, 128], strides = [1, 1]} : vector<2x384xf32> to vector<2x128xf32>
    %89 = vector.extract_strided_slice %85 {offsets = [0, 128], sizes = [2, 128], strides = [1, 1]} : vector<2x384xf32> to vector<2x128xf32>
    %90 = vector.extract_strided_slice %85 {offsets = [0, 256], sizes = [2, 128], strides = [1, 1]} : vector<2x384xf32> to vector<2x128xf32>
    %91 = arith.mulf %89, %42 : vector<2x128xf32>
    %92 = arith.mulf %88, %87 : vector<2x128xf32>
    %93 = arith.addf %91, %92 : vector<2x128xf32>
    %94 = math.tanh %93 : vector<2x128xf32>
    %95 = arith.mulf %90, %94 : vector<2x128xf32>
    %96 = arith.truncf %95 : vector<2x128xf32> to vector<2x128xbf16>
    %cst_44 = arith.constant dense<0.000000e+00> : vector<2x512xf32>
    %97 = tpu.matmul %96, %2, %cst_44 {dimension_numbers = #tpu.dot_dimension_numbers<[1], [0], [0], [1], [0, 0, 1, 1], [], []>} : vector<2x128xbf16>, vector<128x512xbf16>, vector<2x512xf32> -> vector<2x512xf32>
    %98 = arith.truncf %66 : vector<2x128xf32> to vector<2x128xbf16>
    %cst_45 = arith.constant dense<0.000000e+00> : vector<2x512xf32>
    %99 = tpu.matmul %98, %3, %cst_45 {dimension_numbers = #tpu.dot_dimension_numbers<[1], [0], [0], [1], [0, 0, 1, 1], [], []>} : vector<2x128xbf16>, vector<128x512xbf16>, vector<2x512xf32> -> vector<2x512xf32>
    %100 = arith.addf %97, %99 : vector<2x512xf32>
    %101 = arith.addf %100, %10 : vector<2x512xf32>
    %102 = vector.extract_strided_slice %101 {offsets = [0, 0], sizes = [2, 384], strides = [1, 1]} : vector<2x512xf32> to vector<2x384xf32>
    %103 = arith.negf %102 : vector<2x384xf32>
    %104 = math.exp %103 : vector<2x384xf32>
    %cst_46 = arith.constant 1.000000e+00 : f32
    %105 = vector.broadcast %cst_46 : f32 to vector<2x384xf32>
    %106 = arith.addf %105, %104 : vector<2x384xf32>
    %107 = arith.divf %105, %106 : vector<2x384xf32>
    %108 = vector.extract_strided_slice %101 {offsets = [0, 384], sizes = [2, 128], strides = [1, 1]} : vector<2x512xf32> to vector<2x128xf32>
    %109 = math.tanh %108 : vector<2x128xf32>
    %110 = vector.extract_strided_slice %107 {offsets = [0, 0], sizes = [2, 128], strides = [1, 1]} : vector<2x384xf32> to vector<2x128xf32>
    %111 = vector.extract_strided_slice %107 {offsets = [0, 128], sizes = [2, 128], strides = [1, 1]} : vector<2x384xf32> to vector<2x128xf32>
    %112 = vector.extract_strided_slice %107 {offsets = [0, 256], sizes = [2, 128], strides = [1, 1]} : vector<2x384xf32> to vector<2x128xf32>
    %113 = arith.mulf %111, %64 : vector<2x128xf32>
    %114 = arith.mulf %110, %109 : vector<2x128xf32>
    %115 = arith.addf %113, %114 : vector<2x128xf32>
    %116 = math.tanh %115 : vector<2x128xf32>
    %117 = arith.mulf %112, %116 : vector<2x128xf32>
    %118 = arith.truncf %117 : vector<2x128xf32> to vector<2x128xbf16>
    %cst_47 = arith.constant dense<0.000000e+00> : vector<2x128xf32>
    %119 = tpu.matmul %118, %4, %cst_47 {dimension_numbers = #tpu.dot_dimension_numbers<[1], [0], [0], [1], [0, 0, 1, 1], [], []>} : vector<2x128xbf16>, vector<128x128xbf16>, vector<2x128xf32> -> vector<2x128xf32>
    %120 = arith.addf %119, %13 : vector<2x128xf32>
    %c1_48 = arith.constant 1 : index
    %c0_49 = arith.constant 0 : index
    %c0_50 = arith.constant 0 : index
    %121 = vector.load %arg11[%c1_48, %c0_49, %c0_50] : memref<8x2x128xf32, #tpu.memory_space<vmem>>, vector<1x2x128xf32>
    %122 = vector.shape_cast %121 : vector<1x2x128xf32> to vector<2x128xf32>
    %123 = vector.shape_cast %120 : vector<2x128xf32> to vector<1x2x128xf32>
    tpu.vector_store %arg11[%c1_48, %c0_49, %c0_50], %123 {strides = array<i32>} : memref<8x2x128xf32, #tpu.memory_space<vmem>>, vector<1x2x128xf32>,
    %c2 = arith.constant 2 : index
    %c0_51 = arith.constant 0 : index
    %c0_52 = arith.constant 0 : index
    %124 = vector.load %arg0[%c2, %c0_51, %c0_52] : memref<8x2x64xbf16, #tpu.memory_space<vmem>>, vector<1x2x64xbf16>
    %125 = vector.shape_cast %124 : vector<1x2x64xbf16> to vector<2x64xbf16>
    %cst_53 = arith.constant dense<0.000000e+00> : vector<2x512xf32>
    %126 = tpu.matmul %125, %0, %cst_53 {dimension_numbers = #tpu.dot_dimension_numbers<[1], [0], [0], [1], [0, 0, 1, 1], [], []>} : vector<2x64xbf16>, vector<64x512xbf16>, vector<2x512xf32> -> vector<2x512xf32>
    %127 = arith.truncf %95 : vector<2x128xf32> to vector<2x128xbf16>
    %cst_54 = arith.constant dense<0.000000e+00> : vector<2x512xf32>
    %128 = tpu.matmul %127, %1, %cst_54 {dimension_numbers = #tpu.dot_dimension_numbers<[1], [0], [0], [1], [0, 0, 1, 1], [], []>} : vector<2x128xbf16>, vector<128x512xbf16>, vector<2x512xf32> -> vector<2x512xf32>
    %129 = arith.addf %126, %128 : vector<2x512xf32>
    %130 = arith.addf %129, %7 : vector<2x512xf32>
    %131 = vector.extract_strided_slice %130 {offsets = [0, 0], sizes = [2, 384], strides = [1, 1]} : vector<2x512xf32> to vector<2x384xf32>
    %132 = arith.negf %131 : vector<2x384xf32>
    %133 = math.exp %132 : vector<2x384xf32>
    %cst_55 = arith.constant 1.000000e+00 : f32
    %134 = vector.broadcast %cst_55 : f32 to vector<2x384xf32>
    %135 = arith.addf %134, %133 : vector<2x384xf32>
    %136 = arith.divf %134, %135 : vector<2x384xf32>
    %137 = vector.extract_strided_slice %130 {offsets = [0, 384], sizes = [2, 128], strides = [1, 1]} : vector<2x512xf32> to vector<2x128xf32>
    %138 = math.tanh %137 : vector<2x128xf32>
    %139 = vector.extract_strided_slice %136 {offsets = [0, 0], sizes = [2, 128], strides = [1, 1]} : vector<2x384xf32> to vector<2x128xf32>
    %140 = vector.extract_strided_slice %136 {offsets = [0, 128], sizes = [2, 128], strides = [1, 1]} : vector<2x384xf32> to vector<2x128xf32>
    %141 = vector.extract_strided_slice %136 {offsets = [0, 256], sizes = [2, 128], strides = [1, 1]} : vector<2x384xf32> to vector<2x128xf32>
    %142 = arith.mulf %140, %93 : vector<2x128xf32>
    %143 = arith.mulf %139, %138 : vector<2x128xf32>
    %144 = arith.addf %142, %143 : vector<2x128xf32>
    %145 = math.tanh %144 : vector<2x128xf32>
    %146 = arith.mulf %141, %145 : vector<2x128xf32>
    %147 = arith.truncf %146 : vector<2x128xf32> to vector<2x128xbf16>
    %cst_56 = arith.constant dense<0.000000e+00> : vector<2x512xf32>
    %148 = tpu.matmul %147, %2, %cst_56 {dimension_numbers = #tpu.dot_dimension_numbers<[1], [0], [0], [1], [0, 0, 1, 1], [], []>} : vector<2x128xbf16>, vector<128x512xbf16>, vector<2x512xf32> -> vector<2x512xf32>
    %149 = arith.truncf %117 : vector<2x128xf32> to vector<2x128xbf16>
    %cst_57 = arith.constant dense<0.000000e+00> : vector<2x512xf32>
    %150 = tpu.matmul %149, %3, %cst_57 {dimension_numbers = #tpu.dot_dimension_numbers<[1], [0], [0], [1], [0, 0, 1, 1], [], []>} : vector<2x128xbf16>, vector<128x512xbf16>, vector<2x512xf32> -> vector<2x512xf32>
    %151 = arith.addf %148, %150 : vector<2x512xf32>
    %152 = arith.addf %151, %10 : vector<2x512xf32>
    %153 = vector.extract_strided_slice %152 {offsets = [0, 0], sizes = [2, 384], strides = [1, 1]} : vector<2x512xf32> to vector<2x384xf32>
    %154 = arith.negf %153 : vector<2x384xf32>
    %155 = math.exp %154 : vector<2x384xf32>
    %cst_58 = arith.constant 1.000000e+00 : f32
    %156 = vector.broadcast %cst_58 : f32 to vector<2x384xf32>
    %157 = arith.addf %156, %155 : vector<2x384xf32>
    %158 = arith.divf %156, %157 : vector<2x384xf32>
    %159 = vector.extract_strided_slice %152 {offsets = [0, 384], sizes = [2, 128], strides = [1, 1]} : vector<2x512xf32> to vector<2x128xf32>
    %160 = math.tanh %159 : vector<2x128xf32>
    %161 = vector.extract_strided_slice %158 {offsets = [0, 0], sizes = [2, 128], strides = [1, 1]} : vector<2x384xf32> to vector<2x128xf32>
    %162 = vector.extract_strided_slice %158 {offsets = [0, 128], sizes = [2, 128], strides = [1, 1]} : vector<2x384xf32> to vector<2x128xf32>
    %163 = vector.extract_strided_slice %158 {offsets = [0, 256], sizes = [2, 128], strides = [1, 1]} : vector<2x384xf32> to vector<2x128xf32>
    %164 = arith.mulf %162, %115 : vector<2x128xf32>
    %165 = arith.mulf %161, %160 : vector<2x128xf32>
    %166 = arith.addf %164, %165 : vector<2x128xf32>
    %167 = math.tanh %166 : vector<2x128xf32>
    %168 = arith.mulf %163, %167 : vector<2x128xf32>
    %169 = arith.truncf %168 : vector<2x128xf32> to vector<2x128xbf16>
    %cst_59 = arith.constant dense<0.000000e+00> : vector<2x128xf32>
    %170 = tpu.matmul %169, %4, %cst_59 {dimension_numbers = #tpu.dot_dimension_numbers<[1], [0], [0], [1], [0, 0, 1, 1], [], []>} : vector<2x128xbf16>, vector<128x128xbf16>, vector<2x128xf32> -> vector<2x128xf32>
    %171 = arith.addf %170, %13 : vector<2x128xf32>
    %c2_60 = arith.constant 2 : index
    %c0_61 = arith.constant 0 : index
    %c0_62 = arith.constant 0 : index
    %172 = vector.load %arg11[%c2_60, %c0_61, %c0_62] : memref<8x2x128xf32, #tpu.memory_space<vmem>>, vector<1x2x128xf32>
    %173 = vector.shape_cast %172 : vector<1x2x128xf32> to vector<2x128xf32>
    %174 = vector.shape_cast %171 : vector<2x128xf32> to vector<1x2x128xf32>
    tpu.vector_store %arg11[%c2_60, %c0_61, %c0_62], %174 {strides = array<i32>} : memref<8x2x128xf32, #tpu.memory_space<vmem>>, vector<1x2x128xf32>,
    %c3 = arith.constant 3 : index
    %c0_63 = arith.constant 0 : index
    %c0_64 = arith.constant 0 : index
    %175 = vector.load %arg0[%c3, %c0_63, %c0_64] : memref<8x2x64xbf16, #tpu.memory_space<vmem>>, vector<1x2x64xbf16>
    %176 = vector.shape_cast %175 : vector<1x2x64xbf16> to vector<2x64xbf16>
    %cst_65 = arith.constant dense<0.000000e+00> : vector<2x512xf32>
    %177 = tpu.matmul %176, %0, %cst_65 {dimension_numbers = #tpu.dot_dimension_numbers<[1], [0], [0], [1], [0, 0, 1, 1], [], []>} : vector<2x64xbf16>, vector<64x512xbf16>, vector<2x512xf32> -> vector<2x512xf32>
    %178 = arith.truncf %146 : vector<2x128xf32> to vector<2x128xbf16>
    %cst_66 = arith.constant dense<0.000000e+00> : vector<2x512xf32>
    %179 = tpu.matmul %178, %1, %cst_66 {dimension_numbers = #tpu.dot_dimension_numbers<[1], [0], [0], [1], [0, 0, 1, 1], [], []>} : vector<2x128xbf16>, vector<128x512xbf16>, vector<2x512xf32> -> vector<2x512xf32>
    %180 = arith.addf %177, %179 : vector<2x512xf32>
    %181 = arith.addf %180, %7 : vector<2x512xf32>
    %182 = vector.extract_strided_slice %181 {offsets = [0, 0], sizes = [2, 384], strides = [1, 1]} : vector<2x512xf32> to vector<2x384xf32>
    %183 = arith.negf %182 : vector<2x384xf32>
    %184 = math.exp %183 : vector<2x384xf32>
    %cst_67 = arith.constant 1.000000e+00 : f32
    %185 = vector.broadcast %cst_67 : f32 to vector<2x384xf32>
    %186 = arith.addf %185, %184 : vector<2x384xf32>
    %187 = arith.divf %185, %186 : vector<2x384xf32>
    %188 = vector.extract_strided_slice %181 {offsets = [0, 384], sizes = [2, 128], strides = [1, 1]} : vector<2x512xf32> to vector<2x128xf32>
    %189 = math.tanh %188 : vector<2x128xf32>
    %190 = vector.extract_strided_slice %187 {offsets = [0, 0], sizes = [2, 128], strides = [1, 1]} : vector<2x384xf32> to vector<2x128xf32>
    %191 = vector.extract_strided_slice %187 {offsets = [0, 128], sizes = [2, 128], strides = [1, 1]} : vector<2x384xf32> to vector<2x128xf32>
    %192 = vector.extract_strided_slice %187 {offsets = [0, 256], sizes = [2, 128], strides = [1, 1]} : vector<2x384xf32> to vector<2x128xf32>
    %193 = arith.mulf %191, %144 : vector<2x128xf32>
    %194 = arith.mulf %190, %189 : vector<2x128xf32>
    %195 = arith.addf %193, %194 : vector<2x128xf32>
    %196 = math.tanh %195 : vector<2x128xf32>
    %197 = arith.mulf %192, %196 : vector<2x128xf32>
    %198 = arith.truncf %197 : vector<2x128xf32> to vector<2x128xbf16>
    %cst_68 = arith.constant dense<0.000000e+00> : vector<2x512xf32>
    %199 = tpu.matmul %198, %2, %cst_68 {dimension_numbers = #tpu.dot_dimension_numbers<[1], [0], [0], [1], [0, 0, 1, 1], [], []>} : vector<2x128xbf16>, vector<128x512xbf16>, vector<2x512xf32> -> vector<2x512xf32>
    %200 = arith.truncf %168 : vector<2x128xf32> to vector<2x128xbf16>
    %cst_69 = arith.constant dense<0.000000e+00> : vector<2x512xf32>
    %201 = tpu.matmul %200, %3, %cst_69 {dimension_numbers = #tpu.dot_dimension_numbers<[1], [0], [0], [1], [0, 0, 1, 1], [], []>} : vector<2x128xbf16>, vector<128x512xbf16>, vector<2x512xf32> -> vector<2x512xf32>
    %202 = arith.addf %199, %201 : vector<2x512xf32>
    %203 = arith.addf %202, %10 : vector<2x512xf32>
    %204 = vector.extract_strided_slice %203 {offsets = [0, 0], sizes = [2, 384], strides = [1, 1]} : vector<2x512xf32> to vector<2x384xf32>
    %205 = arith.negf %204 : vector<2x384xf32>
    %206 = math.exp %205 : vector<2x384xf32>
    %cst_70 = arith.constant 1.000000e+00 : f32
    %207 = vector.broadcast %cst_70 : f32 to vector<2x384xf32>
    %208 = arith.addf %207, %206 : vector<2x384xf32>
    %209 = arith.divf %207, %208 : vector<2x384xf32>
    %210 = vector.extract_strided_slice %203 {offsets = [0, 384], sizes = [2, 128], strides = [1, 1]} : vector<2x512xf32> to vector<2x128xf32>
    %211 = math.tanh %210 : vector<2x128xf32>
    %212 = vector.extract_strided_slice %209 {offsets = [0, 0], sizes = [2, 128], strides = [1, 1]} : vector<2x384xf32> to vector<2x128xf32>
    %213 = vector.extract_strided_slice %209 {offsets = [0, 128], sizes = [2, 128], strides = [1, 1]} : vector<2x384xf32> to vector<2x128xf32>
    %214 = vector.extract_strided_slice %209 {offsets = [0, 256], sizes = [2, 128], strides = [1, 1]} : vector<2x384xf32> to vector<2x128xf32>
    %215 = arith.mulf %213, %166 : vector<2x128xf32>
    %216 = arith.mulf %212, %211 : vector<2x128xf32>
    %217 = arith.addf %215, %216 : vector<2x128xf32>
    %218 = math.tanh %217 : vector<2x128xf32>
    %219 = arith.mulf %214, %218 : vector<2x128xf32>
    %220 = arith.truncf %219 : vector<2x128xf32> to vector<2x128xbf16>
    %cst_71 = arith.constant dense<0.000000e+00> : vector<2x128xf32>
    %221 = tpu.matmul %220, %4, %cst_71 {dimension_numbers = #tpu.dot_dimension_numbers<[1], [0], [0], [1], [0, 0, 1, 1], [], []>} : vector<2x128xbf16>, vector<128x128xbf16>, vector<2x128xf32> -> vector<2x128xf32>
    %222 = arith.addf %221, %13 : vector<2x128xf32>
    %c3_72 = arith.constant 3 : index
    %c0_73 = arith.constant 0 : index
    %c0_74 = arith.constant 0 : index
    %223 = vector.load %arg11[%c3_72, %c0_73, %c0_74] : memref<8x2x128xf32, #tpu.memory_space<vmem>>, vector<1x2x128xf32>
    %224 = vector.shape_cast %223 : vector<1x2x128xf32> to vector<2x128xf32>
    %225 = vector.shape_cast %222 : vector<2x128xf32> to vector<1x2x128xf32>
    tpu.vector_store %arg11[%c3_72, %c0_73, %c0_74], %225 {strides = array<i32>} : memref<8x2x128xf32, #tpu.memory_space<vmem>>, vector<1x2x128xf32>,
    %c4 = arith.constant 4 : index
    %c0_75 = arith.constant 0 : index
    %c0_76 = arith.constant 0 : index
    %226 = vector.load %arg0[%c4, %c0_75, %c0_76] : memref<8x2x64xbf16, #tpu.memory_space<vmem>>, vector<1x2x64xbf16>
    %227 = vector.shape_cast %226 : vector<1x2x64xbf16> to vector<2x64xbf16>
    %cst_77 = arith.constant dense<0.000000e+00> : vector<2x512xf32>
    %228 = tpu.matmul %227, %0, %cst_77 {dimension_numbers = #tpu.dot_dimension_numbers<[1], [0], [0], [1], [0, 0, 1, 1], [], []>} : vector<2x64xbf16>, vector<64x512xbf16>, vector<2x512xf32> -> vector<2x512xf32>
    %229 = arith.truncf %197 : vector<2x128xf32> to vector<2x128xbf16>
    %cst_78 = arith.constant dense<0.000000e+00> : vector<2x512xf32>
    %230 = tpu.matmul %229, %1, %cst_78 {dimension_numbers = #tpu.dot_dimension_numbers<[1], [0], [0], [1], [0, 0, 1, 1], [], []>} : vector<2x128xbf16>, vector<128x512xbf16>, vector<2x512xf32> -> vector<2x512xf32>
    %231 = arith.addf %228, %230 : vector<2x512xf32>
    %232 = arith.addf %231, %7 : vector<2x512xf32>
    %233 = vector.extract_strided_slice %232 {offsets = [0, 0], sizes = [2, 384], strides = [1, 1]} : vector<2x512xf32> to vector<2x384xf32>
    %234 = arith.negf %233 : vector<2x384xf32>
    %235 = math.exp %234 : vector<2x384xf32>
    %cst_79 = arith.constant 1.000000e+00 : f32
    %236 = vector.broadcast %cst_79 : f32 to vector<2x384xf32>
    %237 = arith.addf %236, %235 : vector<2x384xf32>
    %238 = arith.divf %236, %237 : vector<2x384xf32>
    %239 = vector.extract_strided_slice %232 {offsets = [0, 384], sizes = [2, 128], strides = [1, 1]} : vector<2x512xf32> to vector<2x128xf32>
    %240 = math.tanh %239 : vector<2x128xf32>
    %241 = vector.extract_strided_slice %238 {offsets = [0, 0], sizes = [2, 128], strides = [1, 1]} : vector<2x384xf32> to vector<2x128xf32>
    %242 = vector.extract_strided_slice %238 {offsets = [0, 128], sizes = [2, 128], strides = [1, 1]} : vector<2x384xf32> to vector<2x128xf32>
    %243 = vector.extract_strided_slice %238 {offsets = [0, 256], sizes = [2, 128], strides = [1, 1]} : vector<2x384xf32> to vector<2x128xf32>
    %244 = arith.mulf %242, %195 : vector<2x128xf32>
    %245 = arith.mulf %241, %240 : vector<2x128xf32>
    %246 = arith.addf %244, %245 : vector<2x128xf32>
    %247 = math.tanh %246 : vector<2x128xf32>
    %248 = arith.mulf %243, %247 : vector<2x128xf32>
    %249 = arith.truncf %248 : vector<2x128xf32> to vector<2x128xbf16>
    %cst_80 = arith.constant dense<0.000000e+00> : vector<2x512xf32>
    %250 = tpu.matmul %249, %2, %cst_80 {dimension_numbers = #tpu.dot_dimension_numbers<[1], [0], [0], [1], [0, 0, 1, 1], [], []>} : vector<2x128xbf16>, vector<128x512xbf16>, vector<2x512xf32> -> vector<2x512xf32>
    %251 = arith.truncf %219 : vector<2x128xf32> to vector<2x128xbf16>
    %cst_81 = arith.constant dense<0.000000e+00> : vector<2x512xf32>
    %252 = tpu.matmul %251, %3, %cst_81 {dimension_numbers = #tpu.dot_dimension_numbers<[1], [0], [0], [1], [0, 0, 1, 1], [], []>} : vector<2x128xbf16>, vector<128x512xbf16>, vector<2x512xf32> -> vector<2x512xf32>
    %253 = arith.addf %250, %252 : vector<2x512xf32>
    %254 = arith.addf %253, %10 : vector<2x512xf32>
    %255 = vector.extract_strided_slice %254 {offsets = [0, 0], sizes = [2, 384], strides = [1, 1]} : vector<2x512xf32> to vector<2x384xf32>
    %256 = arith.negf %255 : vector<2x384xf32>
    %257 = math.exp %256 : vector<2x384xf32>
    %cst_82 = arith.constant 1.000000e+00 : f32
    %258 = vector.broadcast %cst_82 : f32 to vector<2x384xf32>
    %259 = arith.addf %258, %257 : vector<2x384xf32>
    %260 = arith.divf %258, %259 : vector<2x384xf32>
    %261 = vector.extract_strided_slice %254 {offsets = [0, 384], sizes = [2, 128], strides = [1, 1]} : vector<2x512xf32> to vector<2x128xf32>
    %262 = math.tanh %261 : vector<2x128xf32>
    %263 = vector.extract_strided_slice %260 {offsets = [0, 0], sizes = [2, 128], strides = [1, 1]} : vector<2x384xf32> to vector<2x128xf32>
    %264 = vector.extract_strided_slice %260 {offsets = [0, 128], sizes = [2, 128], strides = [1, 1]} : vector<2x384xf32> to vector<2x128xf32>
    %265 = vector.extract_strided_slice %260 {offsets = [0, 256], sizes = [2, 128], strides = [1, 1]} : vector<2x384xf32> to vector<2x128xf32>
    %266 = arith.mulf %264, %217 : vector<2x128xf32>
    %267 = arith.mulf %263, %262 : vector<2x128xf32>
    %268 = arith.addf %266, %267 : vector<2x128xf32>
    %269 = math.tanh %268 : vector<2x128xf32>
    %270 = arith.mulf %265, %269 : vector<2x128xf32>
    %271 = arith.truncf %270 : vector<2x128xf32> to vector<2x128xbf16>
    %cst_83 = arith.constant dense<0.000000e+00> : vector<2x128xf32>
    %272 = tpu.matmul %271, %4, %cst_83 {dimension_numbers = #tpu.dot_dimension_numbers<[1], [0], [0], [1], [0, 0, 1, 1], [], []>} : vector<2x128xbf16>, vector<128x128xbf16>, vector<2x128xf32> -> vector<2x128xf32>
    %273 = arith.addf %272, %13 : vector<2x128xf32>
    %c4_84 = arith.constant 4 : index
    %c0_85 = arith.constant 0 : index
    %c0_86 = arith.constant 0 : index
    %274 = vector.load %arg11[%c4_84, %c0_85, %c0_86] : memref<8x2x128xf32, #tpu.memory_space<vmem>>, vector<1x2x128xf32>
    %275 = vector.shape_cast %274 : vector<1x2x128xf32> to vector<2x128xf32>
    %276 = vector.shape_cast %273 : vector<2x128xf32> to vector<1x2x128xf32>
    tpu.vector_store %arg11[%c4_84, %c0_85, %c0_86], %276 {strides = array<i32>} : memref<8x2x128xf32, #tpu.memory_space<vmem>>, vector<1x2x128xf32>,
    %c5 = arith.constant 5 : index
    %c0_87 = arith.constant 0 : index
    %c0_88 = arith.constant 0 : index
    %277 = vector.load %arg0[%c5, %c0_87, %c0_88] : memref<8x2x64xbf16, #tpu.memory_space<vmem>>, vector<1x2x64xbf16>
    %278 = vector.shape_cast %277 : vector<1x2x64xbf16> to vector<2x64xbf16>
    %cst_89 = arith.constant dense<0.000000e+00> : vector<2x512xf32>
    %279 = tpu.matmul %278, %0, %cst_89 {dimension_numbers = #tpu.dot_dimension_numbers<[1], [0], [0], [1], [0, 0, 1, 1], [], []>} : vector<2x64xbf16>, vector<64x512xbf16>, vector<2x512xf32> -> vector<2x512xf32>
    %280 = arith.truncf %248 : vector<2x128xf32> to vector<2x128xbf16>
    %cst_90 = arith.constant dense<0.000000e+00> : vector<2x512xf32>
    %281 = tpu.matmul %280, %1, %cst_90 {dimension_numbers = #tpu.dot_dimension_numbers<[1], [0], [0], [1], [0, 0, 1, 1], [], []>} : vector<2x128xbf16>, vector<128x512xbf16>, vector<2x512xf32> -> vector<2x512xf32>
    %282 = arith.addf %279, %281 : vector<2x512xf32>
    %283 = arith.addf %282, %7 : vector<2x512xf32>
    %284 = vector.extract_strided_slice %283 {offsets = [0, 0], sizes = [2, 384], strides = [1, 1]} : vector<2x512xf32> to vector<2x384xf32>
    %285 = arith.negf %284 : vector<2x384xf32>
    %286 = math.exp %285 : vector<2x384xf32>
    %cst_91 = arith.constant 1.000000e+00 : f32
    %287 = vector.broadcast %cst_91 : f32 to vector<2x384xf32>
    %288 = arith.addf %287, %286 : vector<2x384xf32>
    %289 = arith.divf %287, %288 : vector<2x384xf32>
    %290 = vector.extract_strided_slice %283 {offsets = [0, 384], sizes = [2, 128], strides = [1, 1]} : vector<2x512xf32> to vector<2x128xf32>
    %291 = math.tanh %290 : vector<2x128xf32>
    %292 = vector.extract_strided_slice %289 {offsets = [0, 0], sizes = [2, 128], strides = [1, 1]} : vector<2x384xf32> to vector<2x128xf32>
    %293 = vector.extract_strided_slice %289 {offsets = [0, 128], sizes = [2, 128], strides = [1, 1]} : vector<2x384xf32> to vector<2x128xf32>
    %294 = vector.extract_strided_slice %289 {offsets = [0, 256], sizes = [2, 128], strides = [1, 1]} : vector<2x384xf32> to vector<2x128xf32>
    %295 = arith.mulf %293, %246 : vector<2x128xf32>
    %296 = arith.mulf %292, %291 : vector<2x128xf32>
    %297 = arith.addf %295, %296 : vector<2x128xf32>
    %298 = math.tanh %297 : vector<2x128xf32>
    %299 = arith.mulf %294, %298 : vector<2x128xf32>
    %300 = arith.truncf %299 : vector<2x128xf32> to vector<2x128xbf16>
    %cst_92 = arith.constant dense<0.000000e+00> : vector<2x512xf32>
    %301 = tpu.matmul %300, %2, %cst_92 {dimension_numbers = #tpu.dot_dimension_numbers<[1], [0], [0], [1], [0, 0, 1, 1], [], []>} : vector<2x128xbf16>, vector<128x512xbf16>, vector<2x512xf32> -> vector<2x512xf32>
    %302 = arith.truncf %270 : vector<2x128xf32> to vector<2x128xbf16>
    %cst_93 = arith.constant dense<0.000000e+00> : vector<2x512xf32>
    %303 = tpu.matmul %302, %3, %cst_93 {dimension_numbers = #tpu.dot_dimension_numbers<[1], [0], [0], [1], [0, 0, 1, 1], [], []>} : vector<2x128xbf16>, vector<128x512xbf16>, vector<2x512xf32> -> vector<2x512xf32>
    %304 = arith.addf %301, %303 : vector<2x512xf32>
    %305 = arith.addf %304, %10 : vector<2x512xf32>
    %306 = vector.extract_strided_slice %305 {offsets = [0, 0], sizes = [2, 384], strides = [1, 1]} : vector<2x512xf32> to vector<2x384xf32>
    %307 = arith.negf %306 : vector<2x384xf32>
    %308 = math.exp %307 : vector<2x384xf32>
    %cst_94 = arith.constant 1.000000e+00 : f32
    %309 = vector.broadcast %cst_94 : f32 to vector<2x384xf32>
    %310 = arith.addf %309, %308 : vector<2x384xf32>
    %311 = arith.divf %309, %310 : vector<2x384xf32>
    %312 = vector.extract_strided_slice %305 {offsets = [0, 384], sizes = [2, 128], strides = [1, 1]} : vector<2x512xf32> to vector<2x128xf32>
    %313 = math.tanh %312 : vector<2x128xf32>
    %314 = vector.extract_strided_slice %311 {offsets = [0, 0], sizes = [2, 128], strides = [1, 1]} : vector<2x384xf32> to vector<2x128xf32>
    %315 = vector.extract_strided_slice %311 {offsets = [0, 128], sizes = [2, 128], strides = [1, 1]} : vector<2x384xf32> to vector<2x128xf32>
    %316 = vector.extract_strided_slice %311 {offsets = [0, 256], sizes = [2, 128], strides = [1, 1]} : vector<2x384xf32> to vector<2x128xf32>
    %317 = arith.mulf %315, %268 : vector<2x128xf32>
    %318 = arith.mulf %314, %313 : vector<2x128xf32>
    %319 = arith.addf %317, %318 : vector<2x128xf32>
    %320 = math.tanh %319 : vector<2x128xf32>
    %321 = arith.mulf %316, %320 : vector<2x128xf32>
    %322 = arith.truncf %321 : vector<2x128xf32> to vector<2x128xbf16>
    %cst_95 = arith.constant dense<0.000000e+00> : vector<2x128xf32>
    %323 = tpu.matmul %322, %4, %cst_95 {dimension_numbers = #tpu.dot_dimension_numbers<[1], [0], [0], [1], [0, 0, 1, 1], [], []>} : vector<2x128xbf16>, vector<128x128xbf16>, vector<2x128xf32> -> vector<2x128xf32>
    %324 = arith.addf %323, %13 : vector<2x128xf32>
    %c5_96 = arith.constant 5 : index
    %c0_97 = arith.constant 0 : index
    %c0_98 = arith.constant 0 : index
    %325 = vector.load %arg11[%c5_96, %c0_97, %c0_98] : memref<8x2x128xf32, #tpu.memory_space<vmem>>, vector<1x2x128xf32>
    %326 = vector.shape_cast %325 : vector<1x2x128xf32> to vector<2x128xf32>
    %327 = vector.shape_cast %324 : vector<2x128xf32> to vector<1x2x128xf32>
    tpu.vector_store %arg11[%c5_96, %c0_97, %c0_98], %327 {strides = array<i32>} : memref<8x2x128xf32, #tpu.memory_space<vmem>>, vector<1x2x128xf32>,
    %c6 = arith.constant 6 : index
    %c0_99 = arith.constant 0 : index
    %c0_100 = arith.constant 0 : index
    %328 = vector.load %arg0[%c6, %c0_99, %c0_100] : memref<8x2x64xbf16, #tpu.memory_space<vmem>>, vector<1x2x64xbf16>
    %329 = vector.shape_cast %328 : vector<1x2x64xbf16> to vector<2x64xbf16>
    %cst_101 = arith.constant dense<0.000000e+00> : vector<2x512xf32>
    %330 = tpu.matmul %329, %0, %cst_101 {dimension_numbers = #tpu.dot_dimension_numbers<[1], [0], [0], [1], [0, 0, 1, 1], [], []>} : vector<2x64xbf16>, vector<64x512xbf16>, vector<2x512xf32> -> vector<2x512xf32>
    %331 = arith.truncf %299 : vector<2x128xf32> to vector<2x128xbf16>
    %cst_102 = arith.constant dense<0.000000e+00> : vector<2x512xf32>
    %332 = tpu.matmul %331, %1, %cst_102 {dimension_numbers = #tpu.dot_dimension_numbers<[1], [0], [0], [1], [0, 0, 1, 1], [], []>} : vector<2x128xbf16>, vector<128x512xbf16>, vector<2x512xf32> -> vector<2x512xf32>
    %333 = arith.addf %330, %332 : vector<2x512xf32>
    %334 = arith.addf %333, %7 : vector<2x512xf32>
    %335 = vector.extract_strided_slice %334 {offsets = [0, 0], sizes = [2, 384], strides = [1, 1]} : vector<2x512xf32> to vector<2x384xf32>
    %336 = arith.negf %335 : vector<2x384xf32>
    %337 = math.exp %336 : vector<2x384xf32>
    %cst_103 = arith.constant 1.000000e+00 : f32
    %338 = vector.broadcast %cst_103 : f32 to vector<2x384xf32>
    %339 = arith.addf %338, %337 : vector<2x384xf32>
    %340 = arith.divf %338, %339 : vector<2x384xf32>
    %341 = vector.extract_strided_slice %334 {offsets = [0, 384], sizes = [2, 128], strides = [1, 1]} : vector<2x512xf32> to vector<2x128xf32>
    %342 = math.tanh %341 : vector<2x128xf32>
    %343 = vector.extract_strided_slice %340 {offsets = [0, 0], sizes = [2, 128], strides = [1, 1]} : vector<2x384xf32> to vector<2x128xf32>
    %344 = vector.extract_strided_slice %340 {offsets = [0, 128], sizes = [2, 128], strides = [1, 1]} : vector<2x384xf32> to vector<2x128xf32>
    %345 = vector.extract_strided_slice %340 {offsets = [0, 256], sizes = [2, 128], strides = [1, 1]} : vector<2x384xf32> to vector<2x128xf32>
    %346 = arith.mulf %344, %297 : vector<2x128xf32>
    %347 = arith.mulf %343, %342 : vector<2x128xf32>
    %348 = arith.addf %346, %347 : vector<2x128xf32>
    %349 = math.tanh %348 : vector<2x128xf32>
    %350 = arith.mulf %345, %349 : vector<2x128xf32>
    %351 = arith.truncf %350 : vector<2x128xf32> to vector<2x128xbf16>
    %cst_104 = arith.constant dense<0.000000e+00> : vector<2x512xf32>
    %352 = tpu.matmul %351, %2, %cst_104 {dimension_numbers = #tpu.dot_dimension_numbers<[1], [0], [0], [1], [0, 0, 1, 1], [], []>} : vector<2x128xbf16>, vector<128x512xbf16>, vector<2x512xf32> -> vector<2x512xf32>
    %353 = arith.truncf %321 : vector<2x128xf32> to vector<2x128xbf16>
    %cst_105 = arith.constant dense<0.000000e+00> : vector<2x512xf32>
    %354 = tpu.matmul %353, %3, %cst_105 {dimension_numbers = #tpu.dot_dimension_numbers<[1], [0], [0], [1], [0, 0, 1, 1], [], []>} : vector<2x128xbf16>, vector<128x512xbf16>, vector<2x512xf32> -> vector<2x512xf32>
    %355 = arith.addf %352, %354 : vector<2x512xf32>
    %356 = arith.addf %355, %10 : vector<2x512xf32>
    %357 = vector.extract_strided_slice %356 {offsets = [0, 0], sizes = [2, 384], strides = [1, 1]} : vector<2x512xf32> to vector<2x384xf32>
    %358 = arith.negf %357 : vector<2x384xf32>
    %359 = math.exp %358 : vector<2x384xf32>
    %cst_106 = arith.constant 1.000000e+00 : f32
    %360 = vector.broadcast %cst_106 : f32 to vector<2x384xf32>
    %361 = arith.addf %360, %359 : vector<2x384xf32>
    %362 = arith.divf %360, %361 : vector<2x384xf32>
    %363 = vector.extract_strided_slice %356 {offsets = [0, 384], sizes = [2, 128], strides = [1, 1]} : vector<2x512xf32> to vector<2x128xf32>
    %364 = math.tanh %363 : vector<2x128xf32>
    %365 = vector.extract_strided_slice %362 {offsets = [0, 0], sizes = [2, 128], strides = [1, 1]} : vector<2x384xf32> to vector<2x128xf32>
    %366 = vector.extract_strided_slice %362 {offsets = [0, 128], sizes = [2, 128], strides = [1, 1]} : vector<2x384xf32> to vector<2x128xf32>
    %367 = vector.extract_strided_slice %362 {offsets = [0, 256], sizes = [2, 128], strides = [1, 1]} : vector<2x384xf32> to vector<2x128xf32>
    %368 = arith.mulf %366, %319 : vector<2x128xf32>
    %369 = arith.mulf %365, %364 : vector<2x128xf32>
    %370 = arith.addf %368, %369 : vector<2x128xf32>
    %371 = math.tanh %370 : vector<2x128xf32>
    %372 = arith.mulf %367, %371 : vector<2x128xf32>
    %373 = arith.truncf %372 : vector<2x128xf32> to vector<2x128xbf16>
    %cst_107 = arith.constant dense<0.000000e+00> : vector<2x128xf32>
    %374 = tpu.matmul %373, %4, %cst_107 {dimension_numbers = #tpu.dot_dimension_numbers<[1], [0], [0], [1], [0, 0, 1, 1], [], []>} : vector<2x128xbf16>, vector<128x128xbf16>, vector<2x128xf32> -> vector<2x128xf32>
    %375 = arith.addf %374, %13 : vector<2x128xf32>
    %c6_108 = arith.constant 6 : index
    %c0_109 = arith.constant 0 : index
    %c0_110 = arith.constant 0 : index
    %376 = vector.load %arg11[%c6_108, %c0_109, %c0_110] : memref<8x2x128xf32, #tpu.memory_space<vmem>>, vector<1x2x128xf32>
    %377 = vector.shape_cast %376 : vector<1x2x128xf32> to vector<2x128xf32>
    %378 = vector.shape_cast %375 : vector<2x128xf32> to vector<1x2x128xf32>
    tpu.vector_store %arg11[%c6_108, %c0_109, %c0_110], %378 {strides = array<i32>} : memref<8x2x128xf32, #tpu.memory_space<vmem>>, vector<1x2x128xf32>,
    %c7 = arith.constant 7 : index
    %c0_111 = arith.constant 0 : index
    %c0_112 = arith.constant 0 : index
    %379 = vector.load %arg0[%c7, %c0_111, %c0_112] : memref<8x2x64xbf16, #tpu.memory_space<vmem>>, vector<1x2x64xbf16>
    %380 = vector.shape_cast %379 : vector<1x2x64xbf16> to vector<2x64xbf16>
    %cst_113 = arith.constant dense<0.000000e+00> : vector<2x512xf32>
    %381 = tpu.matmul %380, %0, %cst_113 {dimension_numbers = #tpu.dot_dimension_numbers<[1], [0], [0], [1], [0, 0, 1, 1], [], []>} : vector<2x64xbf16>, vector<64x512xbf16>, vector<2x512xf32> -> vector<2x512xf32>
    %382 = arith.truncf %350 : vector<2x128xf32> to vector<2x128xbf16>
    %cst_114 = arith.constant dense<0.000000e+00> : vector<2x512xf32>
    %383 = tpu.matmul %382, %1, %cst_114 {dimension_numbers = #tpu.dot_dimension_numbers<[1], [0], [0], [1], [0, 0, 1, 1], [], []>} : vector<2x128xbf16>, vector<128x512xbf16>, vector<2x512xf32> -> vector<2x512xf32>
    %384 = arith.addf %381, %383 : vector<2x512xf32>
    %385 = arith.addf %384, %7 : vector<2x512xf32>
    %386 = vector.extract_strided_slice %385 {offsets = [0, 0], sizes = [2, 384], strides = [1, 1]} : vector<2x512xf32> to vector<2x384xf32>
    %387 = arith.negf %386 : vector<2x384xf32>
    %388 = math.exp %387 : vector<2x384xf32>
    %cst_115 = arith.constant 1.000000e+00 : f32
    %389 = vector.broadcast %cst_115 : f32 to vector<2x384xf32>
    %390 = arith.addf %389, %388 : vector<2x384xf32>
    %391 = arith.divf %389, %390 : vector<2x384xf32>
    %392 = vector.extract_strided_slice %385 {offsets = [0, 384], sizes = [2, 128], strides = [1, 1]} : vector<2x512xf32> to vector<2x128xf32>
    %393 = math.tanh %392 : vector<2x128xf32>
    %394 = vector.extract_strided_slice %391 {offsets = [0, 0], sizes = [2, 128], strides = [1, 1]} : vector<2x384xf32> to vector<2x128xf32>
    %395 = vector.extract_strided_slice %391 {offsets = [0, 128], sizes = [2, 128], strides = [1, 1]} : vector<2x384xf32> to vector<2x128xf32>
    %396 = vector.extract_strided_slice %391 {offsets = [0, 256], sizes = [2, 128], strides = [1, 1]} : vector<2x384xf32> to vector<2x128xf32>
    %397 = arith.mulf %395, %348 : vector<2x128xf32>
    %398 = arith.mulf %394, %393 : vector<2x128xf32>
    %399 = arith.addf %397, %398 : vector<2x128xf32>
    %400 = math.tanh %399 : vector<2x128xf32>
    %401 = arith.mulf %396, %400 : vector<2x128xf32>
    %402 = arith.truncf %401 : vector<2x128xf32> to vector<2x128xbf16>
    %cst_116 = arith.constant dense<0.000000e+00> : vector<2x512xf32>
    %403 = tpu.matmul %402, %2, %cst_116 {dimension_numbers = #tpu.dot_dimension_numbers<[1], [0], [0], [1], [0, 0, 1, 1], [], []>} : vector<2x128xbf16>, vector<128x512xbf16>, vector<2x512xf32> -> vector<2x512xf32>
    %404 = arith.truncf %372 : vector<2x128xf32> to vector<2x128xbf16>
    %cst_117 = arith.constant dense<0.000000e+00> : vector<2x512xf32>
    %405 = tpu.matmul %404, %3, %cst_117 {dimension_numbers = #tpu.dot_dimension_numbers<[1], [0], [0], [1], [0, 0, 1, 1], [], []>} : vector<2x128xbf16>, vector<128x512xbf16>, vector<2x512xf32> -> vector<2x512xf32>
    %406 = arith.addf %403, %405 : vector<2x512xf32>
    %407 = arith.addf %406, %10 : vector<2x512xf32>
    %408 = vector.extract_strided_slice %407 {offsets = [0, 0], sizes = [2, 384], strides = [1, 1]} : vector<2x512xf32> to vector<2x384xf32>
    %409 = arith.negf %408 : vector<2x384xf32>
    %410 = math.exp %409 : vector<2x384xf32>
    %cst_118 = arith.constant 1.000000e+00 : f32
    %411 = vector.broadcast %cst_118 : f32 to vector<2x384xf32>
    %412 = arith.addf %411, %410 : vector<2x384xf32>
    %413 = arith.divf %411, %412 : vector<2x384xf32>
    %414 = vector.extract_strided_slice %407 {offsets = [0, 384], sizes = [2, 128], strides = [1, 1]} : vector<2x512xf32> to vector<2x128xf32>
    %415 = math.tanh %414 : vector<2x128xf32>
    %416 = vector.extract_strided_slice %413 {offsets = [0, 0], sizes = [2, 128], strides = [1, 1]} : vector<2x384xf32> to vector<2x128xf32>
    %417 = vector.extract_strided_slice %413 {offsets = [0, 128], sizes = [2, 128], strides = [1, 1]} : vector<2x384xf32> to vector<2x128xf32>
    %418 = vector.extract_strided_slice %413 {offsets = [0, 256], sizes = [2, 128], strides = [1, 1]} : vector<2x384xf32> to vector<2x128xf32>
    %419 = arith.mulf %417, %370 : vector<2x128xf32>
    %420 = arith.mulf %416, %415 : vector<2x128xf32>
    %421 = arith.addf %419, %420 : vector<2x128xf32>
    %422 = math.tanh %421 : vector<2x128xf32>
    %423 = arith.mulf %418, %422 : vector<2x128xf32>
    %424 = arith.truncf %423 : vector<2x128xf32> to vector<2x128xbf16>
    %cst_119 = arith.constant dense<0.000000e+00> : vector<2x128xf32>
    %425 = tpu.matmul %424, %4, %cst_119 {dimension_numbers = #tpu.dot_dimension_numbers<[1], [0], [0], [1], [0, 0, 1, 1], [], []>} : vector<2x128xbf16>, vector<128x128xbf16>, vector<2x128xf32> -> vector<2x128xf32>
    %426 = arith.addf %425, %13 : vector<2x128xf32>
    %c7_120 = arith.constant 7 : index
    %c0_121 = arith.constant 0 : index
    %c0_122 = arith.constant 0 : index
    %427 = vector.load %arg11[%c7_120, %c0_121, %c0_122] : memref<8x2x128xf32, #tpu.memory_space<vmem>>, vector<1x2x128xf32>
    %428 = vector.shape_cast %427 : vector<1x2x128xf32> to vector<2x128xf32>
    %429 = vector.shape_cast %426 : vector<2x128xf32> to vector<1x2x128xf32>
    tpu.vector_store %arg11[%c7_120, %c0_121, %c0_122], %429 {strides = array<i32>} : memref<8x2x128xf32, #tpu.memory_space<vmem>>, vector<1x2x128xf32>,
    %c0_123 = arith.constant 0 : index
    %c0_124 = arith.constant 0 : index
    %c0_125 = arith.constant 0 : index
    %430 = vector.load %arg12[%c0_123, %c0_124, %c0_125] : memref<2x2x128xf32, #tpu.memory_space<vmem>>, vector<1x2x128xf32>
    %431 = vector.shape_cast %430 : vector<1x2x128xf32> to vector<2x128xf32>
    %432 = vector.shape_cast %401 : vector<2x128xf32> to vector<1x2x128xf32>
    tpu.vector_store %arg12[%c0_123, %c0_124, %c0_125], %432 {strides = array<i32>} : memref<2x2x128xf32, #tpu.memory_space<vmem>>, vector<1x2x128xf32>,
    %c1_126 = arith.constant 1 : index
    %c0_127 = arith.constant 0 : index
    %c0_128 = arith.constant 0 : index
    %433 = vector.load %arg12[%c1_126, %c0_127, %c0_128] : memref<2x2x128xf32, #tpu.memory_space<vmem>>, vector<1x2x128xf32>
    %434 = vector.shape_cast %433 : vector<1x2x128xf32> to vector<2x128xf32>
    %435 = vector.shape_cast %423 : vector<2x128xf32> to vector<1x2x128xf32>
    tpu.vector_store %arg12[%c1_126, %c0_127, %c0_128], %435 {strides = array<i32>} : memref<2x2x128xf32, #tpu.memory_space<vmem>>, vector<1x2x128xf32>,
    %c0_129 = arith.constant 0 : index
    %c0_130 = arith.constant 0 : index
    %c0_131 = arith.constant 0 : index
    %436 = vector.load %arg13[%c0_129, %c0_130, %c0_131] : memref<2x2x128xf32, #tpu.memory_space<vmem>>, vector<1x2x128xf32>
    %437 = vector.shape_cast %436 : vector<1x2x128xf32> to vector<2x128xf32>
    %438 = vector.shape_cast %399 : vector<2x128xf32> to vector<1x2x128xf32>
    tpu.vector_store %arg13[%c0_129, %c0_130, %c0_131], %438 {strides = array<i32>} : memref<2x2x128xf32, #tpu.memory_space<vmem>>, vector<1x2x128xf32>,
    %c1_132 = arith.constant 1 : index
    %c0_133 = arith.constant 0 : index
    %c0_134 = arith.constant 0 : index
    %439 = vector.load %arg13[%c1_132, %c0_133, %c0_134] : memref<2x2x128xf32, #tpu.memory_space<vmem>>, vector<1x2x128xf32>
    %440 = vector.shape_cast %439 : vector<1x2x128xf32> to vector<2x128xf32>
    %441 = vector.shape_cast %421 : vector<2x128xf32> to vector<1x2x128xf32>
    tpu.vector_store %arg13[%c1_132, %c0_133, %c0_134], %441 {strides = array<i32>} : memref<2x2x128xf32, #tpu.memory_space<vmem>>, vector<1x2x128xf32>,
    return
  }
}

</mosaic_0001>

<llo_original>
// kernel: tpu_custom_call.1
$region0: #{tpu_custom_call.1}
  #allocation0 [shape = 'u32[]', space=smem, size = 0x4, offset = 0x4, fixed_abs, tag = 'smem constant byte address 0x4 - core index']
  #allocation1 [shape = 'u32[72,128]{1,0:T(1,128)}', space=vmem, size = 0x9000, scoped, tag = 'internal scratch']
  %s0 = inlined_call_operand.hbm [shape: bf16[8,2,64], index: 0, kind: input, shape index: {}]
  %s1 = inlined_call_operand.hbm [shape: bf16[64,512], index: 1, kind: input, shape index: {}]
  %s2 = inlined_call_operand.hbm [shape: bf16[128,512], index: 2, kind: input, shape index: {}]
  %s3 = inlined_call_operand.hbm [shape: f32[1,512], index: 3, kind: input, shape index: {}]
  %s4 = inlined_call_operand.hbm [shape: bf16[128,512], index: 4, kind: input, shape index: {}]
  %s5 = inlined_call_operand.hbm [shape: bf16[128,512], index: 5, kind: input, shape index: {}]
  %s6 = inlined_call_operand.vmem [shape: f32[1,512], index: 6, kind: input, shape index: {}]
  %s7 = inlined_call_operand.hbm [shape: bf16[128,128], index: 7, kind: input, shape index: {}]
  %s8 = inlined_call_operand.hbm [shape: f32[1,128], index: 8, kind: input, shape index: {}]
  %s9 = inlined_call_operand.vmem [shape: f32[2,2,128], index: 9, kind: input, shape index: {}]
  %s10 = inlined_call_operand.hbm [shape: f32[2,2,128], index: 10, kind: input, shape index: {}]
  %s11 = inlined_call_operand.hbm [shape: f32[8,2,128], index: 11, kind: output, shape index: {0}]
  %s12 = inlined_call_operand.hbm [shape: f32[2,2,128], index: 12, kind: output, shape index: {1}]
  %s13 = inlined_call_operand.hbm [shape: f32[2,2,128], index: 13, kind: output, shape index: {2}]
  %14 = xla_tuple %s11, %s12, %s13
  %s15 = sld [smem:[#allocation0]]
  $region106: #{tpu_custom_call.1} parent=0
    _
  %s17 = ssub.s32 1, %s15
  %s18 = scalar_select 0, %s17, %s15
  $region1: #{tpu_custom_call.1} parent=0
    #allocation2 [shape = 'u8[4096]{0}', space=vmem, size = 0x1000, scoped, tag = 'input window, operand 0, single buffered']
    #allocation3 [shape = 's32[1]{0}', space=sflag, size = 0x4, scoped, tag = 'scoped memory for tpu_custom_call.1']
    #allocation4 [shape = 's32[1]{0}', space=sflag, size = 0x4, scoped, tag = 'scoped memory for tpu_custom_call.1']
    #allocation5 [shape = 'u8[65536]{0}', space=vmem, size = 0x10000, scoped, tag = 'input window, operand 1, single buffered']
    #allocation6 [shape = 's32[1]{0}', space=sflag, size = 0x4, scoped, tag = 'scoped memory for tpu_custom_call.1']
    #allocation7 [shape = 'u8[131072]{0}', space=vmem, size = 0x20000, scoped, tag = 'input window, operand 2, single buffered']
    #allocation8 [shape = 'u8[2048]{0}', space=vmem, size = 0x800, scoped, tag = 'input window, operand 3, single buffered']
    #allocation9 [shape = 's32[1]{0}', space=sflag, size = 0x4, scoped, tag = 'scoped memory for tpu_custom_call.1']
    #allocation10 [shape = 'u8[131072]{0}', space=vmem, size = 0x20000, scoped, tag = 'input window, operand 4, single buffered']
    #allocation11 [shape = 'u8[131072]{0}', space=vmem, size = 0x20000, scoped, tag = 'input window, operand 5, single buffered']
    #allocation12 [shape = 's32[1]{0}', space=sflag, size = 0x4, scoped, tag = 'scoped memory for tpu_custom_call.1']
    #allocation13 [shape = 'u8[32768]{0}', space=vmem, size = 0x8000, scoped, tag = 'input window, operand 7, single buffered']
    #allocation14 [shape = 'u8[512]{0}', space=vmem, size = 0x400, scoped, tag = 'input window, operand 8, single buffered']
    #allocation15 [shape = 's32[1]{0}', space=sflag, size = 0x4, scoped, tag = 'scoped memory for tpu_custom_call.1']
    #allocation16 [shape = 'u8[2048]{0}', space=vmem, size = 0x800, scoped, tag = 'input window, operand 10, single buffered']
    #allocation17 [shape = 'u8[8192]{0}', space=vmem, size = 0x2000, scoped, tag = 'output window, operand 0, single buffered']
    #allocation18 [shape = 'u8[2048]{0}', space=vmem, size = 0x800, scoped, tag = 'output window, operand 1, single buffered']
    #allocation19 [shape = 's32[1]{0}', space=sflag, size = 0x4, scoped, tag = 'scoped memory for tpu_custom_call.1']
    #allocation20 [shape = 'u8[2048]{0}', space=vmem, size = 0x800, scoped, tag = 'output window, operand 2, single buffered']
    %19 = vsyncpa [#allocation3], 0
    %20 = vsyncpa [#allocation6], 0
    %21 = vsyncpa [#allocation9], 0
    %22 = vsyncpa [#allocation12], 0
    %23 = vsyncpa [#allocation15], 0
    %24 = vsyncpa [#allocation4], 0
    %25 = vsyncpa [#allocation19], 0
    // Predicated region
    $region2: #{tpu_custom_call.1} parent=1 // pred_check
      _
    $region3: #{tpu_custom_call.1} parent=1 // pred_check_branch
      %27 = sbr.rel (0) target = $region5
    $region4: #{tpu_custom_call.1} parent=1 // pred_region
      %29 = vsyncadd [#allocation3], 0
      %s30 = sshll.u32 %s0, 4
      %s31 = int_to_ptr.hbm [resolvable:$true] %s30
      %s32 = sshll.u32 [#allocation2], 4
      %s33 = int_to_ptr.vmem [resolvable:$true] %s32
      %38 = dma.hbm_to_vmem [thread:$0]  %s31, 128, %s33, [#allocation3], 16, 16, 1
    $region5: #{tpu_custom_call.1} parent=1 // pred_fallthru
      _
    // Predicated region
    $region6: #{tpu_custom_call.1} parent=1 // pred_check
      _
    $region7: #{tpu_custom_call.1} parent=1 // pred_check_branch
      %40 = sbr.rel (0) target = $region9
    $region8: #{tpu_custom_call.1} parent=1 // pred_region
      %42 = vsyncadd [#allocation6], 0
      %s43 = sshll.u32 %s1, 4
      %s44 = int_to_ptr.hbm [resolvable:$true] %s43
      %s45 = sshll.u32 [#allocation5], 4
      %s46 = int_to_ptr.vmem [resolvable:$true] %s45
      %51 = dma.hbm_to_vmem [thread:$0]  %s44, 2048, %s46, [#allocation6], 256, 256, 16
    $region9: #{tpu_custom_call.1} parent=1 // pred_fallthru
      _
    // Predicated region
    $region10: #{tpu_custom_call.1} parent=1 // pred_check
      _
    $region11: #{tpu_custom_call.1} parent=1 // pred_check_branch
      %53 = sbr.rel (0) target = $region13
    $region12: #{tpu_custom_call.1} parent=1 // pred_region
      %55 = vsyncadd [#allocation6], 0
      %s56 = sshll.u32 %s2, 4
      %s57 = int_to_ptr.hbm [resolvable:$true] %s56
      %s58 = sshll.u32 [#allocation7], 4
      %s59 = int_to_ptr.vmem [resolvable:$true] %s58
      %64 = dma.hbm_to_vmem [thread:$0]  %s57, 4096, %s59, [#allocation6], 256, 256, 16
    $region13: #{tpu_custom_call.1} parent=1 // pred_fallthru
      _
    // Predicated region
    $region14: #{tpu_custom_call.1} parent=1 // pred_check
      _
    $region15: #{tpu_custom_call.1} parent=1 // pred_check_branch
      %66 = sbr.rel (0) target = $region17
    $region16: #{tpu_custom_call.1} parent=1 // pred_region
      %68 = vsyncadd [#allocation9], 0
      %s70 = sshll.u32 %s3, 4
      %s71 = int_to_ptr.hbm [resolvable:$true] %s70
      %s72 = sshll.u32 [#allocation8], 4
      %s73 = int_to_ptr.vmem [resolvable:$true] %s72
      %75 = dma.hbm_to_vmem [thread:$0]  %s71, 64, %s73, [#allocation9]
    $region17: #{tpu_custom_call.1} parent=1 // pred_fallthru
      _
    // Predicated region
    $region18: #{tpu_custom_call.1} parent=1 // pred_check
      _
    $region19: #{tpu_custom_call.1} parent=1 // pred_check_branch
      %77 = sbr.rel (0) target = $region21
    $region20: #{tpu_custom_call.1} parent=1 // pred_region
      %79 = vsyncadd [#allocation9], 0
      %s80 = sshll.u32 %s4, 4
      %s81 = int_to_ptr.hbm [resolvable:$true] %s80
      %s82 = sshll.u32 [#allocation10], 4
      %s83 = int_to_ptr.vmem [resolvable:$true] %s82
      %88 = dma.hbm_to_vmem [thread:$0]  %s81, 4096, %s83, [#allocation9], 256, 256, 16
    $region21: #{tpu_custom_call.1} parent=1 // pred_fallthru
      _
    // Predicated region
    $region22: #{tpu_custom_call.1} parent=1 // pred_check
      _
    $region23: #{tpu_custom_call.1} parent=1 // pred_check_branch
      %90 = sbr.rel (0) target = $region25
    $region24: #{tpu_custom_call.1} parent=1 // pred_region
      %92 = vsyncadd [#allocation12], 0
      %s93 = sshll.u32 %s5, 4
      %s94 = int_to_ptr.hbm [resolvable:$true] %s93
      %s95 = sshll.u32 [#allocation11], 4
      %s96 = int_to_ptr.vmem [resolvable:$true] %s95
      %101 = dma.hbm_to_vmem [thread:$0]  %s94, 4096, %s96, [#allocation12], 256, 256, 16
    $region25: #{tpu_custom_call.1} parent=1 // pred_fallthru
      _
    // Predicated region
    $region26: #{tpu_custom_call.1} parent=1 // pred_check
      _
    $region27: #{tpu_custom_call.1} parent=1 // pred_check_branch
      %103 = sbr.rel (0) target = $region29
    $region28: #{tpu_custom_call.1} parent=1 // pred_region
      _
    $region29: #{tpu_custom_call.1} parent=1 // pred_fallthru
      _
    // Predicated region
    $region30: #{tpu_custom_call.1} parent=1 // pred_check
      _
    $region31: #{tpu_custom_call.1} parent=1 // pred_check_branch
      %105 = sbr.rel (0) target = $region33
    $region32: #{tpu_custom_call.1} parent=1 // pred_region
      %107 = vsyncadd [#allocation12], 0
      %s108 = sshll.u32 %s7, 4
      %s109 = int_to_ptr.hbm [resolvable:$true] %s108
      %s110 = sshll.u32 [#allocation13], 4
      %s111 = int_to_ptr.vmem [resolvable:$true] %s110
      %116 = dma.hbm_to_vmem [thread:$0]  %s109, 1024, %s111, [#allocation12], 64, 64, 4
    $region33: #{tpu_custom_call.1} parent=1 // pred_fallthru
      _
    // Predicated region
    $region34: #{tpu_custom_call.1} parent=1 // pred_check
      _
    $region35: #{tpu_custom_call.1} parent=1 // pred_check_branch
      %118 = sbr.rel (0) target = $region37
    $region36: #{tpu_custom_call.1} parent=1 // pred_region
      %120 = vsyncadd [#allocation15], 0
      %s122 = sshll.u32 %s8, 4
      %s123 = int_to_ptr.hbm [resolvable:$true] %s122
      %s124 = sshll.u32 [#allocation14], 4
      %s125 = int_to_ptr.vmem [resolvable:$true] %s124
      %127 = dma.hbm_to_vmem [thread:$0]  %s123, 16, %s125, [#allocation15]
    $region37: #{tpu_custom_call.1} parent=1 // pred_fallthru
      _
    // Predicated region
    $region38: #{tpu_custom_call.1} parent=1 // pred_check
      _
    $region39: #{tpu_custom_call.1} parent=1 // pred_check_branch
      %129 = sbr.rel (0) target = $region41
    $region40: #{tpu_custom_call.1} parent=1 // pred_region
      _
    $region41: #{tpu_custom_call.1} parent=1 // pred_fallthru
      _
    // Predicated region
    $region42: #{tpu_custom_call.1} parent=1 // pred_check
      _
    $region43: #{tpu_custom_call.1} parent=1 // pred_check_branch
      %131 = sbr.rel (0) target = $region45
    $region44: #{tpu_custom_call.1} parent=1 // pred_region
      %133 = vsyncadd [#allocation15], 0
      %s134 = sshll.u32 %s10, 4
      %s135 = int_to_ptr.hbm [resolvable:$true] %s134
      %s136 = sshll.u32 [#allocation16], 4
      %s137 = int_to_ptr.vmem [resolvable:$true] %s136
      %142 = dma.hbm_to_vmem [thread:$0]  %s135, 64, %s137, [#allocation15], 32, 32, 2
    $region45: #{tpu_custom_call.1} parent=1 // pred_fallthru
      _
    // Predicated region
    $region46: #{tpu_custom_call.1} parent=1 // pred_check
      _
    $region47: #{tpu_custom_call.1} parent=1 // pred_check_branch
      %144 = sbr.rel (0) target = $region49
    $region48: #{tpu_custom_call.1} parent=1 // pred_region
      %146 = dma.done [#allocation3], 128
    $region49: #{tpu_custom_call.1} parent=1 // pred_fallthru
      _
    // Predicated region
    $region50: #{tpu_custom_call.1} parent=1 // pred_check
      _
    $region51: #{tpu_custom_call.1} parent=1 // pred_check_branch
      %148 = sbr.rel (0) target = $region53
    $region52: #{tpu_custom_call.1} parent=1 // pred_region
      %150 = dma.done [#allocation6], 2048
    $region53: #{tpu_custom_call.1} parent=1 // pred_fallthru
      _
    // Predicated region
    $region54: #{tpu_custom_call.1} parent=1 // pred_check
      _
    $region55: #{tpu_custom_call.1} parent=1 // pred_check_branch
      %152 = sbr.rel (0) target = $region57
    $region56: #{tpu_custom_call.1} parent=1 // pred_region
      %154 = dma.done [#allocation6], 4096
    $region57: #{tpu_custom_call.1} parent=1 // pred_fallthru
      _
    // Predicated region
    $region58: #{tpu_custom_call.1} parent=1 // pred_check
      _
    $region59: #{tpu_custom_call.1} parent=1 // pred_check_branch
      %156 = sbr.rel (0) target = $region61
    $region60: #{tpu_custom_call.1} parent=1 // pred_region
      %158 = dma.done [#allocation9], 64
    $region61: #{tpu_custom_call.1} parent=1 // pred_fallthru
      _
    // Predicated region
    $region62: #{tpu_custom_call.1} parent=1 // pred_check
      _
    $region63: #{tpu_custom_call.1} parent=1 // pred_check_branch
      %160 = sbr.rel (0) target = $region65
    $region64: #{tpu_custom_call.1} parent=1 // pred_region
      %162 = dma.done [#allocation9], 4096
    $region65: #{tpu_custom_call.1} parent=1 // pred_fallthru
      _
    // Predicated region
    $region66: #{tpu_custom_call.1} parent=1 // pred_check
      _
    $region67: #{tpu_custom_call.1} parent=1 // pred_check_branch
      %164 = sbr.rel (0) target = $region69
    $region68: #{tpu_custom_call.1} parent=1 // pred_region
      %166 = dma.done [#allocation12], 4096
    $region69: #{tpu_custom_call.1} parent=1 // pred_fallthru
      _
    // Predicated region
    $region70: #{tpu_custom_call.1} parent=1 // pred_check
      _
    $region71: #{tpu_custom_call.1} parent=1 // pred_check_branch
      %168 = sbr.rel (0) target = $region73
    $region72: #{tpu_custom_call.1} parent=1 // pred_region
      %170 = dma.done [#allocation12], 1024
    $region73: #{tpu_custom_call.1} parent=1 // pred_fallthru
      _
    // Predicated region
    $region74: #{tpu_custom_call.1} parent=1 // pred_check
      _
    $region75: #{tpu_custom_call.1} parent=1 // pred_check_branch
      %172 = sbr.rel (0) target = $region77
    $region76: #{tpu_custom_call.1} parent=1 // pred_region
      %174 = dma.done [#allocation15], 16
    $region77: #{tpu_custom_call.1} parent=1 // pred_fallthru
      _
    // Predicated region
    $region78: #{tpu_custom_call.1} parent=1 // pred_check
      _
    $region79: #{tpu_custom_call.1} parent=1 // pred_check_branch
      %176 = sbr.rel (0) target = $region81
    $region80: #{tpu_custom_call.1} parent=1 // pred_region
      %178 = dma.done [#allocation15], 64
    $region81: #{tpu_custom_call.1} parent=1 // pred_fallthru
      _
    %v180 = vld [vmem:[#allocation5] sm:$0xff]
    %v181 = vld [vmem:[#allocation5 + $0x8] sm:$0xff]
    %v182 = vld [vmem:[#allocation5 + $0x10] sm:$0xff]
    %v183 = vld [vmem:[#allocation5 + $0x18] sm:$0xff]
    %v184 = vld [vmem:[#allocation5 + $0x20] sm:$0xff]
    %v185 = vld [vmem:[#allocation5 + $0x28] sm:$0xff]
    %v186 = vld [vmem:[#allocation5 + $0x30] sm:$0xff]
    %v187 = vld [vmem:[#allocation5 + $0x38] sm:$0xff]
    %v188 = vld [vmem:[#allocation5 + $0x40] sm:$0xff]
    %v189 = vld [vmem:[#allocation5 + $0x48] sm:$0xff]
    %v190 = vld [vmem:[#allocation5 + $0x50] sm:$0xff]
    %v191 = vld [vmem:[#allocation5 + $0x58] sm:$0xff]
    %v192 = vld [vmem:[#allocation5 + $0x60] sm:$0xff]
    %v193 = vld [vmem:[#allocation5 + $0x68] sm:$0xff]
    %v194 = vld [vmem:[#allocation5 + $0x70] sm:$0xff]
    %v195 = vld [vmem:[#allocation5 + $0x78] sm:$0xff]
    %v196 = vld [vmem:[#allocation7] sm:$0xff]
    %v197 = vld [vmem:[#allocation7 + $0x8] sm:$0xff]
    %v198 = vld [vmem:[#allocation7 + $0x10] sm:$0xff]
    %v199 = vld [vmem:[#allocation7 + $0x18] sm:$0xff]
    %v200 = vld [vmem:[#allocation7 + $0x20] sm:$0xff]
    %v201 = vld [vmem:[#allocation7 + $0x28] sm:$0xff]
    %v202 = vld [vmem:[#allocation7 + $0x30] sm:$0xff]
    %v203 = vld [vmem:[#allocation7 + $0x38] sm:$0xff]
    %v204 = vld [vmem:[#allocation7 + $0x40] sm:$0xff]
    %v205 = vld [vmem:[#allocation7 + $0x48] sm:$0xff]
    %v206 = vld [vmem:[#allocation7 + $0x50] sm:$0xff]
    %v207 = vld [vmem:[#allocation7 + $0x58] sm:$0xff]
    %v208 = vld [vmem:[#allocation7 + $0x60] sm:$0xff]
    %v209 = vld [vmem:[#allocation7 + $0x68] sm:$0xff]
    %v210 = vld [vmem:[#allocation7 + $0x70] sm:$0xff]
    %v211 = vld [vmem:[#allocation7 + $0x78] sm:$0xff]
    %v212 = vld [vmem:[#allocation7 + $0x80] sm:$0xff]
    %v213 = vld [vmem:[#allocation7 + $0x88] sm:$0xff]
    %v214 = vld [vmem:[#allocation7 + $0x90] sm:$0xff]
    %v215 = vld [vmem:[#allocation7 + $0x98] sm:$0xff]
    %v216 = vld [vmem:[#allocation7 + $0xa0] sm:$0xff]
    %v217 = vld [vmem:[#allocation7 + $0xa8] sm:$0xff]
    %v218 = vld [vmem:[#allocation7 + $0xb0] sm:$0xff]
    %v219 = vld [vmem:[#allocation7 + $0xb8] sm:$0xff]
    %v220 = vld [vmem:[#allocation7 + $0xc0] sm:$0xff]
    %v221 = vld [vmem:[#allocation7 + $0xc8] sm:$0xff]
    %v222 = vld [vmem:[#allocation7 + $0xd0] sm:$0xff]
    %v223 = vld [vmem:[#allocation7 + $0xd8] sm:$0xff]
    %v224 = vld [vmem:[#allocation7 + $0xe0] sm:$0xff]
    %v225 = vld [vmem:[#allocation7 + $0xe8] sm:$0xff]
    %v226 = vld [vmem:[#allocation7 + $0xf0] sm:$0xff]
    %v227 = vld [vmem:[#allocation7 + $0xf8] sm:$0xff]
    %v228 = vld [vmem:[#allocation10] sm:$0xff]
    %v229 = vld [vmem:[#allocation10 + $0x8] sm:$0xff]
    %v230 = vld [vmem:[#allocation10 + $0x10] sm:$0xff]
    %v231 = vld [vmem:[#allocation10 + $0x18] sm:$0xff]
    %v232 = vld [vmem:[#allocation10 + $0x20] sm:$0xff]
    %v233 = vld [vmem:[#allocation10 + $0x28] sm:$0xff]
    %v234 = vld [vmem:[#allocation10 + $0x30] sm:$0xff]
    %v235 = vld [vmem:[#allocation10 + $0x38] sm:$0xff]
    %v236 = vld [vmem:[#allocation10 + $0x40] sm:$0xff]
    %v237 = vld [vmem:[#allocation10 + $0x48] sm:$0xff]
    %v238 = vld [vmem:[#allocation10 + $0x50] sm:$0xff]
    %v239 = vld [vmem:[#allocation10 + $0x58] sm:$0xff]
    %v240 = vld [vmem:[#allocation10 + $0x60] sm:$0xff]
    %v241 = vld [vmem:[#allocation10 + $0x68] sm:$0xff]
    %v242 = vld [vmem:[#allocation10 + $0x70] sm:$0xff]
    %v243 = vld [vmem:[#allocation10 + $0x78] sm:$0xff]
    %v244 = vld [vmem:[#allocation10 + $0x80] sm:$0xff]
    %v245 = vld [vmem:[#allocation10 + $0x88] sm:$0xff]
    %v246 = vld [vmem:[#allocation10 + $0x90] sm:$0xff]
    %v247 = vld [vmem:[#allocation10 + $0x98] sm:$0xff]
    %v248 = vld [vmem:[#allocation10 + $0xa0] sm:$0xff]
    %v249 = vld [vmem:[#allocation10 + $0xa8] sm:$0xff]
    %v250 = vld [vmem:[#allocation10 + $0xb0] sm:$0xff]
    %v251 = vld [vmem:[#allocation10 + $0xb8] sm:$0xff]
    %v252 = vld [vmem:[#allocation10 + $0xc0] sm:$0xff]
    %v253 = vld [vmem:[#allocation10 + $0xc8] sm:$0xff]
    %v254 = vld [vmem:[#allocation10 + $0xd0] sm:$0xff]
    %v255 = vld [vmem:[#allocation10 + $0xd8] sm:$0xff]
    %v256 = vld [vmem:[#allocation10 + $0xe0] sm:$0xff]
    %v257 = vld [vmem:[#allocation10 + $0xe8] sm:$0xff]
    %v258 = vld [vmem:[#allocation10 + $0xf0] sm:$0xff]
    %v259 = vld [vmem:[#allocation10 + $0xf8] sm:$0xff]
    %v260 = vld [vmem:[#allocation11] sm:$0xff]
    %v261 = vld [vmem:[#allocation11 + $0x8] sm:$0xff]
    %v262 = vld [vmem:[#allocation11 + $0x10] sm:$0xff]
    %v263 = vld [vmem:[#allocation11 + $0x18] sm:$0xff]
    %v264 = vld [vmem:[#allocation11 + $0x20] sm:$0xff]
    %v265 = vld [vmem:[#allocation11 + $0x28] sm:$0xff]
    %v266 = vld [vmem:[#allocation11 + $0x30] sm:$0xff]
    %v267 = vld [vmem:[#allocation11 + $0x38] sm:$0xff]
    %v268 = vld [vmem:[#allocation11 + $0x40] sm:$0xff]
    %v269 = vld [vmem:[#allocation11 + $0x48] sm:$0xff]
    %v270 = vld [vmem:[#allocation11 + $0x50] sm:$0xff]
    %v271 = vld [vmem:[#allocation11 + $0x58] sm:$0xff]
    %v272 = vld [vmem:[#allocation11 + $0x60] sm:$0xff]
    %v273 = vld [vmem:[#allocation11 + $0x68] sm:$0xff]
    %v274 = vld [vmem:[#allocation11 + $0x70] sm:$0xff]
    %v275 = vld [vmem:[#allocation11 + $0x78] sm:$0xff]
    %v276 = vld [vmem:[#allocation11 + $0x80] sm:$0xff]
    %v277 = vld [vmem:[#allocation11 + $0x88] sm:$0xff]
    %v278 = vld [vmem:[#allocation11 + $0x90] sm:$0xff]
    %v279 = vld [vmem:[#allocation11 + $0x98] sm:$0xff]
    %v280 = vld [vmem:[#allocation11 + $0xa0] sm:$0xff]
    %v281 = vld [vmem:[#allocation11 + $0xa8] sm:$0xff]
    %v282 = vld [vmem:[#allocation11 + $0xb0] sm:$0xff]
    %v283 = vld [vmem:[#allocation11 + $0xb8] sm:$0xff]
    %v284 = vld [vmem:[#allocation11 + $0xc0] sm:$0xff]
    %v285 = vld [vmem:[#allocation11 + $0xc8] sm:$0xff]
    %v286 = vld [vmem:[#allocation11 + $0xd0] sm:$0xff]
    %v287 = vld [vmem:[#allocation11 + $0xd8] sm:$0xff]
    %v288 = vld [vmem:[#allocation11 + $0xe0] sm:$0xff]
    %v289 = vld [vmem:[#allocation11 + $0xe8] sm:$0xff]
    %v290 = vld [vmem:[#allocation11 + $0xf0] sm:$0xff]
    %v291 = vld [vmem:[#allocation11 + $0xf8] sm:$0xff]
    %v292 = vld [vmem:[#allocation13] sm:$0xf]
    %v293 = vld [vmem:[#allocation13 + $0x4] sm:$0xf]
    %v294 = vld [vmem:[#allocation13 + $0x8] sm:$0xf]
    %v295 = vld [vmem:[#allocation13 + $0xc] sm:$0xf]
    %v296 = vld [vmem:[#allocation13 + $0x10] sm:$0xf]
    %v297 = vld [vmem:[#allocation13 + $0x14] sm:$0xf]
    %v298 = vld [vmem:[#allocation13 + $0x18] sm:$0xf]
    %v299 = vld [vmem:[#allocation13 + $0x1c] sm:$0xf]
    %v300 = vld [vmem:[#allocation13 + $0x20] sm:$0xf]
    %v301 = vld [vmem:[#allocation13 + $0x24] sm:$0xf]
    %v302 = vld [vmem:[#allocation13 + $0x28] sm:$0xf]
    %v303 = vld [vmem:[#allocation13 + $0x2c] sm:$0xf]
    %v304 = vld [vmem:[#allocation13 + $0x30] sm:$0xf]
    %v305 = vld [vmem:[#allocation13 + $0x34] sm:$0xf]
    %v306 = vld [vmem:[#allocation13 + $0x38] sm:$0xf]
    %v307 = vld [vmem:[#allocation13 + $0x3c] sm:$0xf]
    %v308 = vld [vmem:[#allocation8] sm:$0xf]
    %v310 = vperm.slane %v308, 0
    %v311 = vperm.slane %v308, 1
    %v312 = vperm.slane %v308, 2
    %v313 = vperm.slane %v308, 3
    %v318 = vld [vmem:[%s6] sm:$0xf]
    %v320 = vperm.slane %v318, 0
    %v321 = vperm.slane %v318, 1
    %v322 = vperm.slane %v318, 2
    %v323 = vperm.slane %v318, 3
    %v328 = vld [vmem:[#allocation14] sm:$0x1]
    %v330 = vperm.slane %v328, 0
    %v332 = vld [vmem:[%s9] sm:$0x3]
    %v333 = vld [vmem:[#allocation16] sm:$0x3]
    %s334 = scalar_lea.vmem %s9, 2
    %v335 = vld [vmem:[%s334] sm:$0x3]
    %s336 = scalar_lea.vmem [#allocation16], 2
    %v337 = vld [vmem:[%s336] sm:$0x3]
    %v338 = vld [vmem:[#allocation2] sm:$0x1]
    %v339 = vpack.c.bf16 %v332, %v332
    %v372 = vunpack.c.l.b16 %v196
    %v373 = vunpack.c.h.b16 %v196
    %v374 = vunpack.c.l.b16 %v197
    %v375 = vunpack.c.h.b16 %v197
    %v376 = vunpack.c.l.b16 %v198
    %v377 = vunpack.c.h.b16 %v198
    %v378 = vunpack.c.l.b16 %v199
    %v379 = vunpack.c.h.b16 %v199
    %v380 = vunpack.c.l.b16 %v200
    %v381 = vunpack.c.h.b16 %v200
    %v382 = vunpack.c.l.b16 %v201
    %v383 = vunpack.c.h.b16 %v201
    %v384 = vunpack.c.l.b16 %v202
    %v385 = vunpack.c.h.b16 %v202
    %v386 = vunpack.c.l.b16 %v203
    %v387 = vunpack.c.h.b16 %v203
    %v388 = vunpack.c.l.b16 %v204
    %v389 = vunpack.c.h.b16 %v204
    %v390 = vunpack.c.l.b16 %v205
    %v391 = vunpack.c.h.b16 %v205
    %v392 = vunpack.c.l.b16 %v206
    %v393 = vunpack.c.h.b16 %v206
    %v394 = vunpack.c.l.b16 %v207
    %v395 = vunpack.c.h.b16 %v207
    %v396 = vunpack.c.l.b16 %v208
    %v397 = vunpack.c.h.b16 %v208
    %v398 = vunpack.c.l.b16 %v209
    %v399 = vunpack.c.h.b16 %v209
    %v400 = vunpack.c.l.b16 %v210
    %v401 = vunpack.c.h.b16 %v210
    %v402 = vunpack.c.l.b16 %v211
    %v403 = vunpack.c.h.b16 %v211
    %v404 = vunpack.c.l.b16 %v212
    %v405 = vunpack.c.h.b16 %v212
    %v406 = vunpack.c.l.b16 %v213
    %v407 = vunpack.c.h.b16 %v213
    %v408 = vunpack.c.l.b16 %v214
    %v409 = vunpack.c.h.b16 %v214
    %v410 = vunpack.c.l.b16 %v215
    %v411 = vunpack.c.h.b16 %v215
    %v412 = vunpack.c.l.b16 %v216
    %v413 = vunpack.c.h.b16 %v216
    %v414 = vunpack.c.l.b16 %v217
    %v415 = vunpack.c.h.b16 %v217
    %v416 = vunpack.c.l.b16 %v218
    %v417 = vunpack.c.h.b16 %v218
    %v418 = vunpack.c.l.b16 %v219
    %v419 = vunpack.c.h.b16 %v219
    %v420 = vunpack.c.l.b16 %v220
    %v421 = vunpack.c.h.b16 %v220
    %v422 = vunpack.c.l.b16 %v221
    %v423 = vunpack.c.h.b16 %v221
    %v424 = vunpack.c.l.b16 %v222
    %v425 = vunpack.c.h.b16 %v222
    %v426 = vunpack.c.l.b16 %v223
    %v427 = vunpack.c.h.b16 %v223
    %v428 = vunpack.c.l.b16 %v224
    %v429 = vunpack.c.h.b16 %v224
    %v430 = vunpack.c.l.b16 %v225
    %v431 = vunpack.c.h.b16 %v225
    %v432 = vunpack.c.l.b16 %v226
    %v433 = vunpack.c.h.b16 %v226
    %v434 = vunpack.c.l.b16 %v227
    %v435 = vunpack.c.h.b16 %v227
    %v436 = vpack.c.b16 %v376, %v372
    %v437 = vpack.c.b16 %v377, %v373
    %v438 = vpack.c.b16 %v378, %v374
    %v439 = vpack.c.b16 %v379, %v375
    %v440 = vpack.c.b16 %v384, %v380
    %v441 = vpack.c.b16 %v385, %v381
    %v442 = vpack.c.b16 %v386, %v382
    %v443 = vpack.c.b16 %v387, %v383
    %v444 = vpack.c.b16 %v392, %v388
    %v445 = vpack.c.b16 %v393, %v389
    %v446 = vpack.c.b16 %v394, %v390
    %v447 = vpack.c.b16 %v395, %v391
    %v448 = vpack.c.b16 %v400, %v396
    %v449 = vpack.c.b16 %v401, %v397
    %v450 = vpack.c.b16 %v402, %v398
    %v451 = vpack.c.b16 %v403, %v399
    %v452 = vpack.c.b16 %v408, %v404
    %v453 = vpack.c.b16 %v409, %v405
    %v454 = vpack.c.b16 %v410, %v406
    %v455 = vpack.c.b16 %v411, %v407
    %v456 = vpack.c.b16 %v416, %v412
    %v457 = vpack.c.b16 %v417, %v413
    %v458 = vpack.c.b16 %v418, %v414
    %v459 = vpack.c.b16 %v419, %v415
    %v460 = vpack.c.b16 %v424, %v420
    %v461 = vpack.c.b16 %v425, %v421
    %v462 = vpack.c.b16 %v426, %v422
    %v463 = vpack.c.b16 %v427, %v423
    %v464 = vpack.c.b16 %v432, %v428
    %v465 = vpack.c.b16 %v433, %v429
    %v466 = vpack.c.b16 %v434, %v430
    %v467 = vpack.c.b16 %v435, %v431
    %500 = vmatpush.bf16.msra.mxu0 %v464
    %501 = vmatpush.bf16.msra.mxu0 %v460
    %502 = vmatpush.bf16.msra.mxu0 %v456
    %503 = vmatpush.bf16.msra.mxu0 %v452
    %504 = vmatpush.bf16.msra.mxu0 %v448
    %505 = vmatpush.bf16.msra.mxu0 %v444
    %506 = vmatpush.bf16.msra.mxu0 %v440
    %507 = vmatpush.bf16.msra.mxu0 %v436
    %508 = vmatmul.bf16.gmra.mxu0 %v339
    %v509 = vpop.f32.mrf.mxu0
    %v510 = vadd.f32 0.0, %v509
    %v511 = vpop.f32.mrf.mxu0
    %512 = vdwg.mxu0
    %513 = vmatpush.bf16.msra.mxu0 %v465
    %514 = vmatpush.bf16.msra.mxu0 %v461
    %515 = vmatpush.bf16.msra.mxu0 %v457
    %516 = vmatpush.bf16.msra.mxu0 %v453
    %517 = vmatpush.bf16.msra.mxu0 %v449
    %518 = vmatpush.bf16.msra.mxu0 %v445
    %519 = vmatpush.bf16.msra.mxu0 %v441
    %520 = vmatpush.bf16.msra.mxu0 %v437
    %521 = vmatmul.bf16.gmra.mxu0 %v339
    %v522 = vpop.f32.mrf.mxu0
    %v523 = vadd.f32 0.0, %v522
    %v524 = vpop.f32.mrf.mxu0
    %525 = vdwg.mxu0
    %526 = vmatpush.bf16.msra.mxu0 %v466
    %527 = vmatpush.bf16.msra.mxu0 %v462
    %528 = vmatpush.bf16.msra.mxu0 %v458
    %529 = vmatpush.bf16.msra.mxu0 %v454
    %530 = vmatpush.bf16.msra.mxu0 %v450
    %531 = vmatpush.bf16.msra.mxu0 %v446
    %532 = vmatpush.bf16.msra.mxu0 %v442
    %533 = vmatpush.bf16.msra.mxu0 %v438
    %534 = vmatmul.bf16.gmra.mxu0 %v339
    %v535 = vpop.f32.mrf.mxu0
    %v536 = vadd.f32 0.0, %v535
    %v537 = vpop.f32.mrf.mxu0
    %538 = vdwg.mxu0
    %539 = vmatpush.bf16.msra.mxu0 %v467
    %540 = vmatpush.bf16.msra.mxu0 %v463
    %541 = vmatpush.bf16.msra.mxu0 %v459
    %542 = vmatpush.bf16.msra.mxu0 %v455
    %543 = vmatpush.bf16.msra.mxu0 %v451
    %544 = vmatpush.bf16.msra.mxu0 %v447
    %545 = vmatpush.bf16.msra.mxu0 %v443
    %546 = vmatpush.bf16.msra.mxu0 %v439
    %547 = vmatmul.bf16.gmra.mxu0 %v339
    %v548 = vpop.f32.mrf.mxu0
    %v549 = vadd.f32 0.0, %v548
    %v550 = vpop.f32.mrf.mxu0
    %551 = vdwg.mxu0
    %v568 = vunpack.c.l.b16 %v180
    %v569 = vunpack.c.h.b16 %v180
    %v570 = vunpack.c.l.b16 %v181
    %v571 = vunpack.c.h.b16 %v181
    %v572 = vunpack.c.l.b16 %v182
    %v573 = vunpack.c.h.b16 %v182
    %v574 = vunpack.c.l.b16 %v183
    %v575 = vunpack.c.h.b16 %v183
    %v576 = vunpack.c.l.b16 %v184
    %v577 = vunpack.c.h.b16 %v184
    %v578 = vunpack.c.l.b16 %v185
    %v579 = vunpack.c.h.b16 %v185
    %v580 = vunpack.c.l.b16 %v186
    %v581 = vunpack.c.h.b16 %v186
    %v582 = vunpack.c.l.b16 %v187
    %v583 = vunpack.c.h.b16 %v187
    %v584 = vunpack.c.l.b16 %v188
    %v585 = vunpack.c.h.b16 %v188
    %v586 = vunpack.c.l.b16 %v189
    %v587 = vunpack.c.h.b16 %v189
    %v588 = vunpack.c.l.b16 %v190
    %v589 = vunpack.c.h.b16 %v190
    %v590 = vunpack.c.l.b16 %v191
    %v591 = vunpack.c.h.b16 %v191
    %v592 = vunpack.c.l.b16 %v192
    %v593 = vunpack.c.h.b16 %v192
    %v594 = vunpack.c.l.b16 %v193
    %v595 = vunpack.c.h.b16 %v193
    %v596 = vunpack.c.l.b16 %v194
    %v597 = vunpack.c.h.b16 %v194
    %v598 = vunpack.c.l.b16 %v195
    %v599 = vunpack.c.h.b16 %v195
    %v600 = vpack.c.b16 %v572, %v568
    %v601 = vpack.c.b16 %v573, %v569
    %v602 = vpack.c.b16 %v574, %v570
    %v603 = vpack.c.b16 %v575, %v571
    %v604 = vpack.c.b16 %v580, %v576
    %v605 = vpack.c.b16 %v581, %v577
    %v606 = vpack.c.b16 %v582, %v578
    %v607 = vpack.c.b16 %v583, %v579
    %v608 = vpack.c.b16 %v588, %v584
    %v609 = vpack.c.b16 %v589, %v585
    %v610 = vpack.c.b16 %v590, %v586
    %v611 = vpack.c.b16 %v591, %v587
    %v612 = vpack.c.b16 %v596, %v592
    %v613 = vpack.c.b16 %v597, %v593
    %v614 = vpack.c.b16 %v598, %v594
    %v615 = vpack.c.b16 %v599, %v595
    %vm632 = vcmask 523264
    %v634 = vsel %vm632, %v338, 0
    %636 = vmatpush.bf16.msra.mxu0 0
    %637 = vmatpush.bf16.msra.mxu0 0
    %638 = vmatpush.bf16.msra.mxu0 0
    %639 = vmatpush.bf16.msra.mxu0 0
    %640 = vmatpush.bf16.msra.mxu0 %v612
    %641 = vmatpush.bf16.msra.mxu0 %v608
    %642 = vmatpush.bf16.msra.mxu0 %v604
    %643 = vmatpush.bf16.msra.mxu0 %v600
    %644 = vmatmul.bf16.gmra.mxu0 %v634
    %v645 = vpop.f32.mrf.mxu0
    %v646 = vadd.f32 %v510, %v645
    %v647 = vpop.f32.mrf.mxu0
    %648 = vdwg.mxu0
    %649 = vmatpush.bf16.msra.mxu0 0
    %650 = vmatpush.bf16.msra.mxu0 0
    %651 = vmatpush.bf16.msra.mxu0 0
    %652 = vmatpush.bf16.msra.mxu0 0
    %653 = vmatpush.bf16.msra.mxu0 %v613
    %654 = vmatpush.bf16.msra.mxu0 %v609
    %655 = vmatpush.bf16.msra.mxu0 %v605
    %656 = vmatpush.bf16.msra.mxu0 %v601
    %657 = vmatmul.bf16.gmra.mxu0 %v634
    %v658 = vpop.f32.mrf.mxu0
    %v659 = vadd.f32 %v523, %v658
    %v660 = vpop.f32.mrf.mxu0
    %661 = vdwg.mxu0
    %662 = vmatpush.bf16.msra.mxu0 0
    %663 = vmatpush.bf16.msra.mxu0 0
    %664 = vmatpush.bf16.msra.mxu0 0
    %665 = vmatpush.bf16.msra.mxu0 0
    %666 = vmatpush.bf16.msra.mxu0 %v614
    %667 = vmatpush.bf16.msra.mxu0 %v610
    %668 = vmatpush.bf16.msra.mxu0 %v606
    %669 = vmatpush.bf16.msra.mxu0 %v602
    %670 = vmatmul.bf16.gmra.mxu0 %v634
    %v671 = vpop.f32.mrf.mxu0
    %v672 = vadd.f32 %v536, %v671
    %v673 = vpop.f32.mrf.mxu0
    %674 = vdwg.mxu0
    %675 = vmatpush.bf16.msra.mxu0 0
    %676 = vmatpush.bf16.msra.mxu0 0
    %677 = vmatpush.bf16.msra.mxu0 0
    %678 = vmatpush.bf16.msra.mxu0 0
    %679 = vmatpush.bf16.msra.mxu0 %v615
    %680 = vmatpush.bf16.msra.mxu0 %v611
    %681 = vmatpush.bf16.msra.mxu0 %v607
    %682 = vmatpush.bf16.msra.mxu0 %v603
    %683 = vmatmul.bf16.gmra.mxu0 %v634
    %v684 = vpop.f32.mrf.mxu0
    %v685 = vadd.f32 %v549, %v684
    %v686 = vpop.f32.mrf.mxu0
    %687 = vdwg.mxu0
    %v688 = vadd.f32 %v646, %v310
    %v689 = vadd.f32 %v659, %v311
    %v690 = vadd.f32 %v672, %v312
    %v691 = vadd.f32 %v685, %v313
    %v692 = vxor.u32 %v688, 2147483648
    %v693 = vxor.u32 %v689, 2147483648
    %v694 = vxor.u32 %v690, 2147483648
    %v695 = vmul.f32 %v692, 1.442695
    %v696 = vpow.pop %v695
    %v697 = vmul.f32 %v693, 1.442695
    %v698 = vpow.pop %v697
    %v699 = vmul.f32 %v694, 1.442695
    %v700 = vpow.pop %v699
    %v701 = vadd.f32 %v696, 1.0
    %v702 = vadd.f32 %v698, 1.0
    %v703 = vadd.f32 %v700, 1.0
    %v704 = vrcp.pop %v701
    %v705 = vmul.f32 %v701, %v704
    %v706 = vsub.f32 1.0, %v705
    %v707 = vmul.f32 %v704, %v706
    %v708 = vadd.f32 %v704, %v707
    %vm709 = vweird.f32 %v701
    %vm710 = vweird.f32 %v704
    %vm711 = vmor %vm709, %vm710
    %v712 = vsel %vm711, %v704, %v708
    %v713 = vand.u32 2147483647, %v701
    %vm714 = vcmp.eq.f32.partialorder %v713, 8.507059e+37
    %v715 = vand.u32 %v701, 2147483648
    %v716 = vor.u32 1.1754944e-38, %v715
    %v717 = vsel %vm714, %v716, %v712
    %v718 = vmul.f32 1.0, %v717
    %v719 = vrcp.pop %v702
    %v720 = vmul.f32 %v702, %v719
    %v721 = vsub.f32 1.0, %v720
    %v722 = vmul.f32 %v719, %v721
    %v723 = vadd.f32 %v719, %v722
    %vm724 = vweird.f32 %v702
    %vm725 = vweird.f32 %v719
    %vm726 = vmor %vm724, %vm725
    %v727 = vsel %vm726, %v719, %v723
    %v728 = vand.u32 2147483647, %v702
    %vm729 = vcmp.eq.f32.partialorder %v728, 8.507059e+37
    %v730 = vand.u32 %v702, 2147483648
    %v731 = vor.u32 1.1754944e-38, %v730
    %v732 = vsel %vm729, %v731, %v727
    %v733 = vmul.f32 1.0, %v732
    %v734 = vrcp.pop %v703
    %v735 = vmul.f32 %v703, %v734
    %v736 = vsub.f32 1.0, %v735
    %v737 = vmul.f32 %v734, %v736
    %v738 = vadd.f32 %v734, %v737
    %vm739 = vweird.f32 %v703
    %vm740 = vweird.f32 %v734
    %vm741 = vmor %vm739, %vm740
    %v742 = vsel %vm741, %v734, %v738
    %v743 = vand.u32 2147483647, %v703
    %vm744 = vcmp.eq.f32.partialorder %v743, 8.507059e+37
    %v745 = vand.u32 %v703, 2147483648
    %v746 = vor.u32 1.1754944e-38, %v745
    %v747 = vsel %vm744, %v746, %v742
    %v748 = vmul.f32 1.0, %v747
    %v749 = vtanh.pop %v691
    %v750 = vmul.f32 %v733, %v333
    %v751 = vmul.f32 %v718, %v749
    %v752 = vadd.f32 %v750, %v751
    %v753 = vtanh.pop %v752
    %v754 = vmul.f32 %v748, %v753
    %v755 = vpack.c.bf16 %v754, %v754
    %v756 = vpack.c.bf16 %v335, %v335
    %v789 = vunpack.c.l.b16 %v260
    %v790 = vunpack.c.h.b16 %v260
    %v791 = vunpack.c.l.b16 %v261
    %v792 = vunpack.c.h.b16 %v261
    %v793 = vunpack.c.l.b16 %v262
    %v794 = vunpack.c.h.b16 %v262
    %v795 = vunpack.c.l.b16 %v263
    %v796 = vunpack.c.h.b16 %v263
    %v797 = vunpack.c.l.b16 %v264
    %v798 = vunpack.c.h.b16 %v264
    %v799 = vunpack.c.l.b16 %v265
    %v800 = vunpack.c.h.b16 %v265
    %v801 = vunpack.c.l.b16 %v266
    %v802 = vunpack.c.h.b16 %v266
    %v803 = vunpack.c.l.b16 %v267
    %v804 = vunpack.c.h.b16 %v267
    %v805 = vunpack.c.l.b16 %v268
    %v806 = vunpack.c.h.b16 %v268
    %v807 = vunpack.c.l.b16 %v269
    %v808 = vunpack.c.h.b16 %v269
    %v809 = vunpack.c.l.b16 %v270
    %v810 = vunpack.c.h.b16 %v270
    %v811 = vunpack.c.l.b16 %v271
    %v812 = vunpack.c.h.b16 %v271
    %v813 = vunpack.c.l.b16 %v272
    %v814 = vunpack.c.h.b16 %v272
    %v815 = vunpack.c.l.b16 %v273
    %v816 = vunpack.c.h.b16 %v273
    %v817 = vunpack.c.l.b16 %v274
    %v818 = vunpack.c.h.b16 %v274
    %v819 = vunpack.c.l.b16 %v275
    %v820 = vunpack.c.h.b16 %v275
    %v821 = vunpack.c.l.b16 %v276
    %v822 = vunpack.c.h.b16 %v276
    %v823 = vunpack.c.l.b16 %v277
    %v824 = vunpack.c.h.b16 %v277
    %v825 = vunpack.c.l.b16 %v278
    %v826 = vunpack.c.h.b16 %v278
    %v827 = vunpack.c.l.b16 %v279
    %v828 = vunpack.c.h.b16 %v279
    %v829 = vunpack.c.l.b16 %v280
    %v830 = vunpack.c.h.b16 %v280
    %v831 = vunpack.c.l.b16 %v281
    %v832 = vunpack.c.h.b16 %v281
    %v833 = vunpack.c.l.b16 %v282
    %v834 = vunpack.c.h.b16 %v282
    %v835 = vunpack.c.l.b16 %v283
    %v836 = vunpack.c.h.b16 %v283
    %v837 = vunpack.c.l.b16 %v284
    %v838 = vunpack.c.h.b16 %v284
    %v839 = vunpack.c.l.b16 %v285
    %v840 = vunpack.c.h.b16 %v285
    %v841 = vunpack.c.l.b16 %v286
    %v842 = vunpack.c.h.b16 %v286
    %v843 = vunpack.c.l.b16 %v287
    %v844 = vunpack.c.h.b16 %v287
    %v845 = vunpack.c.l.b16 %v288
    %v846 = vunpack.c.h.b16 %v288
    %v847 = vunpack.c.l.b16 %v289
    %v848 = vunpack.c.h.b16 %v289
    %v849 = vunpack.c.l.b16 %v290
    %v850 = vunpack.c.h.b16 %v290
    %v851 = vunpack.c.l.b16 %v291
    %v852 = vunpack.c.h.b16 %v291
    %v853 = vpack.c.b16 %v793, %v789
    %v854 = vpack.c.b16 %v794, %v790
    %v855 = vpack.c.b16 %v795, %v791
    %v856 = vpack.c.b16 %v796, %v792
    %v857 = vpack.c.b16 %v801, %v797
    %v858 = vpack.c.b16 %v802, %v798
    %v859 = vpack.c.b16 %v803, %v799
    %v860 = vpack.c.b16 %v804, %v800
    %v861 = vpack.c.b16 %v809, %v805
    %v862 = vpack.c.b16 %v810, %v806
    %v863 = vpack.c.b16 %v811, %v807
    %v864 = vpack.c.b16 %v812, %v808
    %v865 = vpack.c.b16 %v817, %v813
    %v866 = vpack.c.b16 %v818, %v814
    %v867 = vpack.c.b16 %v819, %v815
    %v868 = vpack.c.b16 %v820, %v816
    %v869 = vpack.c.b16 %v825, %v821
    %v870 = vpack.c.b16 %v826, %v822
    %v871 = vpack.c.b16 %v827, %v823
    %v872 = vpack.c.b16 %v828, %v824
    %v873 = vpack.c.b16 %v833, %v829
    %v874 = vpack.c.b16 %v834, %v830
    %v875 = vpack.c.b16 %v835, %v831
    %v876 = vpack.c.b16 %v836, %v832
    %v877 = vpack.c.b16 %v841, %v837
    %v878 = vpack.c.b16 %v842, %v838
    %v879 = vpack.c.b16 %v843, %v839
    %v880 = vpack.c.b16 %v844, %v840
    %v881 = vpack.c.b16 %v849, %v845
    %v882 = vpack.c.b16 %v850, %v846
    %v883 = vpack.c.b16 %v851, %v847
    %v884 = vpack.c.b16 %v852, %v848
    %917 = vmatpush.bf16.msra.mxu0 %v881
    %918 = vmatpush.bf16.msra.mxu0 %v877
    %919 = vmatpush.bf16.msra.mxu0 %v873
    %920 = vmatpush.bf16.msra.mxu0 %v869
    %921 = vmatpush.bf16.msra.mxu0 %v865
    %922 = vmatpush.bf16.msra.mxu0 %v861
    %923 = vmatpush.bf16.msra.mxu0 %v857
    %924 = vmatpush.bf16.msra.mxu0 %v853
    %925 = vmatmul.bf16.gmra.mxu0 %v756
    %v926 = vpop.f32.mrf.mxu0
    %v927 = vadd.f32 0.0, %v926
    %v928 = vpop.f32.mrf.mxu0
    %929 = vdwg.mxu0
    %930 = vmatpush.bf16.msra.mxu0 %v882
    %931 = vmatpush.bf16.msra.mxu0 %v878
    %932 = vmatpush.bf16.msra.mxu0 %v874
    %933 = vmatpush.bf16.msra.mxu0 %v870
    %934 = vmatpush.bf16.msra.mxu0 %v866
    %935 = vmatpush.bf16.msra.mxu0 %v862
    %936 = vmatpush.bf16.msra.mxu0 %v858
    %937 = vmatpush.bf16.msra.mxu0 %v854
    %938 = vmatmul.bf16.gmra.mxu0 %v756
    %v939 = vpop.f32.mrf.mxu0
    %v940 = vadd.f32 0.0, %v939
    %v941 = vpop.f32.mrf.mxu0
    %942 = vdwg.mxu0
    %943 = vmatpush.bf16.msra.mxu0 %v883
    %944 = vmatpush.bf16.msra.mxu0 %v879
    %945 = vmatpush.bf16.msra.mxu0 %v875
    %946 = vmatpush.bf16.msra.mxu0 %v871
    %947 = vmatpush.bf16.msra.mxu0 %v867
    %948 = vmatpush.bf16.msra.mxu0 %v863
    %949 = vmatpush.bf16.msra.mxu0 %v859
    %950 = vmatpush.bf16.msra.mxu0 %v855
    %951 = vmatmul.bf16.gmra.mxu0 %v756
    %v952 = vpop.f32.mrf.mxu0
    %v953 = vadd.f32 0.0, %v952
    %v954 = vpop.f32.mrf.mxu0
    %955 = vdwg.mxu0
    %956 = vmatpush.bf16.msra.mxu0 %v884
    %957 = vmatpush.bf16.msra.mxu0 %v880
    %958 = vmatpush.bf16.msra.mxu0 %v876
    %959 = vmatpush.bf16.msra.mxu0 %v872
    %960 = vmatpush.bf16.msra.mxu0 %v868
    %961 = vmatpush.bf16.msra.mxu0 %v864
    %962 = vmatpush.bf16.msra.mxu0 %v860
    %963 = vmatpush.bf16.msra.mxu0 %v856
    %964 = vmatmul.bf16.gmra.mxu0 %v756
    %v965 = vpop.f32.mrf.mxu0
    %v966 = vadd.f32 0.0, %v965
    %v967 = vpop.f32.mrf.mxu0
    %968 = vdwg.mxu0
    %v1001 = vunpack.c.l.b16 %v228
    %v1002 = vunpack.c.h.b16 %v228
    %v1003 = vunpack.c.l.b16 %v229
    %v1004 = vunpack.c.h.b16 %v229
    %v1005 = vunpack.c.l.b16 %v230
    %v1006 = vunpack.c.h.b16 %v230
    %v1007 = vunpack.c.l.b16 %v231
    %v1008 = vunpack.c.h.b16 %v231
    %v1009 = vunpack.c.l.b16 %v232
    %v1010 = vunpack.c.h.b16 %v232
    %v1011 = vunpack.c.l.b16 %v233
    %v1012 = vunpack.c.h.b16 %v233
    %v1013 = vunpack.c.l.b16 %v234
    %v1014 = vunpack.c.h.b16 %v234
    %v1015 = vunpack.c.l.b16 %v235
    %v1016 = vunpack.c.h.b16 %v235
    %v1017 = vunpack.c.l.b16 %v236
    %v1018 = vunpack.c.h.b16 %v236
    %v1019 = vunpack.c.l.b16 %v237
    %v1020 = vunpack.c.h.b16 %v237
    %v1021 = vunpack.c.l.b16 %v238
    %v1022 = vunpack.c.h.b16 %v238
    %v1023 = vunpack.c.l.b16 %v239
    %v1024 = vunpack.c.h.b16 %v239
    %v1025 = vunpack.c.l.b16 %v240
    %v1026 = vunpack.c.h.b16 %v240
    %v1027 = vunpack.c.l.b16 %v241
    %v1028 = vunpack.c.h.b16 %v241
    %v1029 = vunpack.c.l.b16 %v242
    %v1030 = vunpack.c.h.b16 %v242
    %v1031 = vunpack.c.l.b16 %v243
    %v1032 = vunpack.c.h.b16 %v243
    %v1033 = vunpack.c.l.b16 %v244
    %v1034 = vunpack.c.h.b16 %v244
    %v1035 = vunpack.c.l.b16 %v245
    %v1036 = vunpack.c.h.b16 %v245
    %v1037 = vunpack.c.l.b16 %v246
    %v1038 = vunpack.c.h.b16 %v246
    %v1039 = vunpack.c.l.b16 %v247
    %v1040 = vunpack.c.h.b16 %v247
    %v1041 = vunpack.c.l.b16 %v248
    %v1042 = vunpack.c.h.b16 %v248
    %v1043 = vunpack.c.l.b16 %v249
    %v1044 = vunpack.c.h.b16 %v249
    %v1045 = vunpack.c.l.b16 %v250
    %v1046 = vunpack.c.h.b16 %v250
    %v1047 = vunpack.c.l.b16 %v251
    %v1048 = vunpack.c.h.b16 %v251
    %v1049 = vunpack.c.l.b16 %v252
    %v1050 = vunpack.c.h.b16 %v252
    %v1051 = vunpack.c.l.b16 %v253
    %v1052 = vunpack.c.h.b16 %v253
    %v1053 = vunpack.c.l.b16 %v254
    %v1054 = vunpack.c.h.b16 %v254
    %v1055 = vunpack.c.l.b16 %v255
    %v1056 = vunpack.c.h.b16 %v255
    %v1057 = vunpack.c.l.b16 %v256
    %v1058 = vunpack.c.h.b16 %v256
    %v1059 = vunpack.c.l.b16 %v257
    %v1060 = vunpack.c.h.b16 %v257
    %v1061 = vunpack.c.l.b16 %v258
    %v1062 = vunpack.c.h.b16 %v258
    %v1063 = vunpack.c.l.b16 %v259
    %v1064 = vunpack.c.h.b16 %v259
    %v1065 = vpack.c.b16 %v1005, %v1001
    %v1066 = vpack.c.b16 %v1006, %v1002
    %v1067 = vpack.c.b16 %v1007, %v1003
    %v1068 = vpack.c.b16 %v1008, %v1004
    %v1069 = vpack.c.b16 %v1013, %v1009
    %v1070 = vpack.c.b16 %v1014, %v1010
    %v1071 = vpack.c.b16 %v1015, %v1011
    %v1072 = vpack.c.b16 %v1016, %v1012
    %v1073 = vpack.c.b16 %v1021, %v1017
    %v1074 = vpack.c.b16 %v1022, %v1018
    %v1075 = vpack.c.b16 %v1023, %v1019
    %v1076 = vpack.c.b16 %v1024, %v1020
    %v1077 = vpack.c.b16 %v1029, %v1025
    %v1078 = vpack.c.b16 %v1030, %v1026
    %v1079 = vpack.c.b16 %v1031, %v1027
    %v1080 = vpack.c.b16 %v1032, %v1028
    %v1081 = vpack.c.b16 %v1037, %v1033
    %v1082 = vpack.c.b16 %v1038, %v1034
    %v1083 = vpack.c.b16 %v1039, %v1035
    %v1084 = vpack.c.b16 %v1040, %v1036
    %v1085 = vpack.c.b16 %v1045, %v1041
    %v1086 = vpack.c.b16 %v1046, %v1042
    %v1087 = vpack.c.b16 %v1047, %v1043
    %v1088 = vpack.c.b16 %v1048, %v1044
    %v1089 = vpack.c.b16 %v1053, %v1049
    %v1090 = vpack.c.b16 %v1054, %v1050
    %v1091 = vpack.c.b16 %v1055, %v1051
    %v1092 = vpack.c.b16 %v1056, %v1052
    %v1093 = vpack.c.b16 %v1061, %v1057
    %v1094 = vpack.c.b16 %v1062, %v1058
    %v1095 = vpack.c.b16 %v1063, %v1059
    %v1096 = vpack.c.b16 %v1064, %v1060
    %1129 = vmatpush.bf16.msra.mxu0 %v1093
    %1130 = vmatpush.bf16.msra.mxu0 %v1089
    %1131 = vmatpush.bf16.msra.mxu0 %v1085
    %1132 = vmatpush.bf16.msra.mxu0 %v1081
    %1133 = vmatpush.bf16.msra.mxu0 %v1077
    %1134 = vmatpush.bf16.msra.mxu0 %v1073
    %1135 = vmatpush.bf16.msra.mxu0 %v1069
    %1136 = vmatpush.bf16.msra.mxu0 %v1065
    %1137 = vmatmul.bf16.gmra.mxu0 %v755
    %v1138 = vpop.f32.mrf.mxu0
    %v1139 = vadd.f32 %v927, %v1138
    %v1140 = vpop.f32.mrf.mxu0
    %1141 = vdwg.mxu0
    %1142 = vmatpush.bf16.msra.mxu0 %v1094
    %1143 = vmatpush.bf16.msra.mxu0 %v1090
    %1144 = vmatpush.bf16.msra.mxu0 %v1086
    %1145 = vmatpush.bf16.msra.mxu0 %v1082
    %1146 = vmatpush.bf16.msra.mxu0 %v1078
    %1147 = vmatpush.bf16.msra.mxu0 %v1074
    %1148 = vmatpush.bf16.msra.mxu0 %v1070
    %1149 = vmatpush.bf16.msra.mxu0 %v1066
    %1150 = vmatmul.bf16.gmra.mxu0 %v755
    %v1151 = vpop.f32.mrf.mxu0
    %v1152 = vadd.f32 %v940, %v1151
    %v1153 = vpop.f32.mrf.mxu0
    %1154 = vdwg.mxu0
    %1155 = vmatpush.bf16.msra.mxu0 %v1095
    %1156 = vmatpush.bf16.msra.mxu0 %v1091
    %1157 = vmatpush.bf16.msra.mxu0 %v1087
    %1158 = vmatpush.bf16.msra.mxu0 %v1083
    %1159 = vmatpush.bf16.msra.mxu0 %v1079
    %1160 = vmatpush.bf16.msra.mxu0 %v1075
    %1161 = vmatpush.bf16.msra.mxu0 %v1071
    %1162 = vmatpush.bf16.msra.mxu0 %v1067
    %1163 = vmatmul.bf16.gmra.mxu0 %v755
    %v1164 = vpop.f32.mrf.mxu0
    %v1165 = vadd.f32 %v953, %v1164
    %v1166 = vpop.f32.mrf.mxu0
    %1167 = vdwg.mxu0
    %1168 = vmatpush.bf16.msra.mxu0 %v1096
    %1169 = vmatpush.bf16.msra.mxu0 %v1092
    %1170 = vmatpush.bf16.msra.mxu0 %v1088
    %1171 = vmatpush.bf16.msra.mxu0 %v1084
    %1172 = vmatpush.bf16.msra.mxu0 %v1080
    %1173 = vmatpush.bf16.msra.mxu0 %v1076
    %1174 = vmatpush.bf16.msra.mxu0 %v1072
    %1175 = vmatpush.bf16.msra.mxu0 %v1068
    %1176 = vmatmul.bf16.gmra.mxu0 %v755
    %v1177 = vpop.f32.mrf.mxu0
    %v1178 = vadd.f32 %v966, %v1177
    %v1179 = vpop.f32.mrf.mxu0
    %1180 = vdwg.mxu0
    %v1181 = vadd.f32 %v1139, %v320
    %v1182 = vadd.f32 %v1152, %v321
    %v1183 = vadd.f32 %v1165, %v322
    %v1184 = vadd.f32 %v1178, %v323
    %v1185 = vxor.u32 %v1181, 2147483648
    %v1186 = vxor.u32 %v1182, 2147483648
    %v1187 = vxor.u32 %v1183, 2147483648
    %v1188 = vmul.f32 %v1185, 1.442695
    %v1189 = vpow.pop %v1188
    %v1190 = vmul.f32 %v1186, 1.442695
    %v1191 = vpow.pop %v1190
    %v1192 = vmul.f32 %v1187, 1.442695
    %v1193 = vpow.pop %v1192
    %v1194 = vadd.f32 %v1189, 1.0
    %v1195 = vadd.f32 %v1191, 1.0
    %v1196 = vadd.f32 %v1193, 1.0
    %v1197 = vrcp.pop %v1194
    %v1198 = vmul.f32 %v1194, %v1197
    %v1199 = vsub.f32 1.0, %v1198
    %v1200 = vmul.f32 %v1197, %v1199
    %v1201 = vadd.f32 %v1197, %v1200
    %vm1202 = vweird.f32 %v1194
    %vm1203 = vweird.f32 %v1197
    %vm1204 = vmor %vm1202, %vm1203
    %v1205 = vsel %vm1204, %v1197, %v1201
    %v1206 = vand.u32 2147483647, %v1194
    %vm1207 = vcmp.eq.f32.partialorder %v1206, 8.507059e+37
    %v1208 = vand.u32 %v1194, 2147483648
    %v1209 = vor.u32 1.1754944e-38, %v1208
    %v1210 = vsel %vm1207, %v1209, %v1205
    %v1211 = vmul.f32 1.0, %v1210
    %v1212 = vrcp.pop %v1195
    %v1213 = vmul.f32 %v1195, %v1212
    %v1214 = vsub.f32 1.0, %v1213
    %v1215 = vmul.f32 %v1212, %v1214
    %v1216 = vadd.f32 %v1212, %v1215
    %vm1217 = vweird.f32 %v1195
    %vm1218 = vweird.f32 %v1212
    %vm1219 = vmor %vm1217, %vm1218
    %v1220 = vsel %vm1219, %v1212, %v1216
    %v1221 = vand.u32 2147483647, %v1195
    %vm1222 = vcmp.eq.f32.partialorder %v1221, 8.507059e+37
    %v1223 = vand.u32 %v1195, 2147483648
    %v1224 = vor.u32 1.1754944e-38, %v1223
    %v1225 = vsel %vm1222, %v1224, %v1220
    %v1226 = vmul.f32 1.0, %v1225
    %v1227 = vrcp.pop %v1196
    %v1228 = vmul.f32 %v1196, %v1227
    %v1229 = vsub.f32 1.0, %v1228
    %v1230 = vmul.f32 %v1227, %v1229
    %v1231 = vadd.f32 %v1227, %v1230
    %vm1232 = vweird.f32 %v1196
    %vm1233 = vweird.f32 %v1227
    %vm1234 = vmor %vm1232, %vm1233
    %v1235 = vsel %vm1234, %v1227, %v1231
    %v1236 = vand.u32 2147483647, %v1196
    %vm1237 = vcmp.eq.f32.partialorder %v1236, 8.507059e+37
    %v1238 = vand.u32 %v1196, 2147483648
    %v1239 = vor.u32 1.1754944e-38, %v1238
    %v1240 = vsel %vm1237, %v1239, %v1235
    %v1241 = vmul.f32 1.0, %v1240
    %v1242 = vtanh.pop %v1184
    %v1243 = vmul.f32 %v1226, %v337
    %v1244 = vmul.f32 %v1211, %v1242
    %v1245 = vadd.f32 %v1243, %v1244
    %v1246 = vtanh.pop %v1245
    %v1247 = vmul.f32 %v1241, %v1246
    %v1248 = vpack.c.bf16 %v1247, %v1247
    %v1265 = vunpack.c.l.b16 %v292
    %v1266 = vunpack.c.l.b16 %v293
    %v1267 = vunpack.c.l.b16 %v294
    %v1268 = vunpack.c.l.b16 %v295
    %v1269 = vunpack.c.l.b16 %v296
    %v1270 = vunpack.c.l.b16 %v297
    %v1271 = vunpack.c.l.b16 %v298
    %v1272 = vunpack.c.l.b16 %v299
    %v1273 = vunpack.c.l.b16 %v300
    %v1274 = vunpack.c.l.b16 %v301
    %v1275 = vunpack.c.l.b16 %v302
    %v1276 = vunpack.c.l.b16 %v303
    %v1277 = vunpack.c.l.b16 %v304
    %v1278 = vunpack.c.l.b16 %v305
    %v1279 = vunpack.c.l.b16 %v306
    %v1280 = vunpack.c.l.b16 %v307
    %v1281 = vpack.c.b16 %v1266, %v1265
    %v1282 = vpack.c.b16 %v1268, %v1267
    %v1283 = vpack.c.b16 %v1270, %v1269
    %v1284 = vpack.c.b16 %v1272, %v1271
    %v1285 = vpack.c.b16 %v1274, %v1273
    %v1286 = vpack.c.b16 %v1276, %v1275
    %v1287 = vpack.c.b16 %v1278, %v1277
    %v1288 = vpack.c.b16 %v1280, %v1279
    %1297 = vmatpush.bf16.msra.mxu0 %v1288
    %1298 = vmatpush.bf16.msra.mxu0 %v1287
    %1299 = vmatpush.bf16.msra.mxu0 %v1286
    %1300 = vmatpush.bf16.msra.mxu0 %v1285
    %1301 = vmatpush.bf16.msra.mxu0 %v1284
    %1302 = vmatpush.bf16.msra.mxu0 %v1283
    %1303 = vmatpush.bf16.msra.mxu0 %v1282
    %1304 = vmatpush.bf16.msra.mxu0 %v1281
    %1305 = vmatmul.bf16.gmra.mxu0 %v1248
    %v1306 = vpop.f32.mrf.mxu0
    %v1307 = vadd.f32 %v330, %v1306
    %v1308 = vpop.f32.mrf.mxu0
    %1309 = vdwg.mxu0
    %1310 = vst [vmem:[#allocation17] sm:$0x3] %v1307
    %s1311 = scalar_lea.vmem [#allocation2], 1
    %v1312 = vld [vmem:[%s1311] sm:$0x1]
    %1313 = vmatpush.bf16.msra.mxu0 %v464
    %1314 = vmatpush.bf16.msra.mxu0 %v460
    %1315 = vmatpush.bf16.msra.mxu0 %v456
    %1316 = vmatpush.bf16.msra.mxu0 %v452
    %1317 = vmatpush.bf16.msra.mxu0 %v448
    %1318 = vmatpush.bf16.msra.mxu0 %v444
    %1319 = vmatpush.bf16.msra.mxu0 %v440
    %1320 = vmatpush.bf16.msra.mxu0 %v436
    %1321 = vmatmul.bf16.gmra.mxu0 %v755
    %v1322 = vpop.f32.mrf.mxu0
    %v1323 = vadd.f32 0.0, %v1322
    %v1324 = vpop.f32.mrf.mxu0
    %1325 = vdwg.mxu0
    %1326 = vmatpush.bf16.msra.mxu0 %v465
    %1327 = vmatpush.bf16.msra.mxu0 %v461
    %1328 = vmatpush.bf16.msra.mxu0 %v457
    %1329 = vmatpush.bf16.msra.mxu0 %v453
    %1330 = vmatpush.bf16.msra.mxu0 %v449
    %1331 = vmatpush.bf16.msra.mxu0 %v445
    %1332 = vmatpush.bf16.msra.mxu0 %v441
    %1333 = vmatpush.bf16.msra.mxu0 %v437
    %1334 = vmatmul.bf16.gmra.mxu0 %v755
    %v1335 = vpop.f32.mrf.mxu0
    %v1336 = vadd.f32 0.0, %v1335
    %v1337 = vpop.f32.mrf.mxu0
    %1338 = vdwg.mxu0
    %1339 = vmatpush.bf16.msra.mxu0 %v466
    %1340 = vmatpush.bf16.msra.mxu0 %v462
    %1341 = vmatpush.bf16.msra.mxu0 %v458
    %1342 = vmatpush.bf16.msra.mxu0 %v454
    %1343 = vmatpush.bf16.msra.mxu0 %v450
    %1344 = vmatpush.bf16.msra.mxu0 %v446
    %1345 = vmatpush.bf16.msra.mxu0 %v442
    %1346 = vmatpush.bf16.msra.mxu0 %v438
    %1347 = vmatmul.bf16.gmra.mxu0 %v755
    %v1348 = vpop.f32.mrf.mxu0
    %v1349 = vadd.f32 0.0, %v1348
    %v1350 = vpop.f32.mrf.mxu0
    %1351 = vdwg.mxu0
    %1352 = vmatpush.bf16.msra.mxu0 %v467
    %1353 = vmatpush.bf16.msra.mxu0 %v463
    %1354 = vmatpush.bf16.msra.mxu0 %v459
    %1355 = vmatpush.bf16.msra.mxu0 %v455
    %1356 = vmatpush.bf16.msra.mxu0 %v451
    %1357 = vmatpush.bf16.msra.mxu0 %v447
    %1358 = vmatpush.bf16.msra.mxu0 %v443
    %1359 = vmatpush.bf16.msra.mxu0 %v439
    %1360 = vmatmul.bf16.gmra.mxu0 %v755
    %v1361 = vpop.f32.mrf.mxu0
    %v1362 = vadd.f32 0.0, %v1361
    %v1363 = vpop.f32.mrf.mxu0
    %1364 = vdwg.mxu0
    %v1366 = vsel %vm632, %v1312, 0
    %1368 = vmatpush.bf16.msra.mxu0 0
    %1369 = vmatpush.bf16.msra.mxu0 0
    %1370 = vmatpush.bf16.msra.mxu0 0
    %1371 = vmatpush.bf16.msra.mxu0 0
    %1372 = vmatpush.bf16.msra.mxu0 %v612
    %1373 = vmatpush.bf16.msra.mxu0 %v608
    %1374 = vmatpush.bf16.msra.mxu0 %v604
    %1375 = vmatpush.bf16.msra.mxu0 %v600
    %1376 = vmatmul.bf16.gmra.mxu0 %v1366
    %v1377 = vpop.f32.mrf.mxu0
    %v1378 = vadd.f32 %v1323, %v1377
    %v1379 = vpop.f32.mrf.mxu0
    %1380 = vdwg.mxu0
    %1381 = vmatpush.bf16.msra.mxu0 0
    %1382 = vmatpush.bf16.msra.mxu0 0
    %1383 = vmatpush.bf16.msra.mxu0 0
    %1384 = vmatpush.bf16.msra.mxu0 0
    %1385 = vmatpush.bf16.msra.mxu0 %v613
    %1386 = vmatpush.bf16.msra.mxu0 %v609
    %1387 = vmatpush.bf16.msra.mxu0 %v605
    %1388 = vmatpush.bf16.msra.mxu0 %v601
    %1389 = vmatmul.bf16.gmra.mxu0 %v1366
    %v1390 = vpop.f32.mrf.mxu0
    %v1391 = vadd.f32 %v1336, %v1390
    %v1392 = vpop.f32.mrf.mxu0
    %1393 = vdwg.mxu0
    %1394 = vmatpush.bf16.msra.mxu0 0
    %1395 = vmatpush.bf16.msra.mxu0 0
    %1396 = vmatpush.bf16.msra.mxu0 0
    %1397 = vmatpush.bf16.msra.mxu0 0
    %1398 = vmatpush.bf16.msra.mxu0 %v614
    %1399 = vmatpush.bf16.msra.mxu0 %v610
    %1400 = vmatpush.bf16.msra.mxu0 %v606
    %1401 = vmatpush.bf16.msra.mxu0 %v602
    %1402 = vmatmul.bf16.gmra.mxu0 %v1366
    %v1403 = vpop.f32.mrf.mxu0
    %v1404 = vadd.f32 %v1349, %v1403
    %v1405 = vpop.f32.mrf.mxu0
    %1406 = vdwg.mxu0
    %1407 = vmatpush.bf16.msra.mxu0 0
    %1408 = vmatpush.bf16.msra.mxu0 0
    %1409 = vmatpush.bf16.msra.mxu0 0
    %1410 = vmatpush.bf16.msra.mxu0 0
    %1411 = vmatpush.bf16.msra.mxu0 %v615
    %1412 = vmatpush.bf16.msra.mxu0 %v611
    %1413 = vmatpush.bf16.msra.mxu0 %v607
    %1414 = vmatpush.bf16.msra.mxu0 %v603
    %1415 = vmatmul.bf16.gmra.mxu0 %v1366
    %v1416 = vpop.f32.mrf.mxu0
    %v1417 = vadd.f32 %v1362, %v1416
    %v1418 = vpop.f32.mrf.mxu0
    %1419 = vdwg.mxu0
    %v1420 = vadd.f32 %v1378, %v310
    %v1421 = vadd.f32 %v1391, %v311
    %v1422 = vadd.f32 %v1404, %v312
    %v1423 = vadd.f32 %v1417, %v313
    %v1424 = vxor.u32 %v1420, 2147483648
    %v1425 = vxor.u32 %v1421, 2147483648
    %v1426 = vxor.u32 %v1422, 2147483648
    %v1427 = vmul.f32 %v1424, 1.442695
    %v1428 = vpow.pop %v1427
    %v1429 = vmul.f32 %v1425, 1.442695
    %v1430 = vpow.pop %v1429
    %v1431 = vmul.f32 %v1426, 1.442695
    %v1432 = vpow.pop %v1431
    %v1433 = vadd.f32 %v1428, 1.0
    %v1434 = vadd.f32 %v1430, 1.0
    %v1435 = vadd.f32 %v1432, 1.0
    %v1436 = vrcp.pop %v1433
    %v1437 = vmul.f32 %v1433, %v1436
    %v1438 = vsub.f32 1.0, %v1437
    %v1439 = vmul.f32 %v1436, %v1438
    %v1440 = vadd.f32 %v1436, %v1439
    %vm1441 = vweird.f32 %v1433
    %vm1442 = vweird.f32 %v1436
    %vm1443 = vmor %vm1441, %vm1442
    %v1444 = vsel %vm1443, %v1436, %v1440
    %v1445 = vand.u32 2147483647, %v1433
    %vm1446 = vcmp.eq.f32.partialorder %v1445, 8.507059e+37
    %v1447 = vand.u32 %v1433, 2147483648
    %v1448 = vor.u32 1.1754944e-38, %v1447
    %v1449 = vsel %vm1446, %v1448, %v1444
    %v1450 = vmul.f32 1.0, %v1449
    %v1451 = vrcp.pop %v1434
    %v1452 = vmul.f32 %v1434, %v1451
    %v1453 = vsub.f32 1.0, %v1452
    %v1454 = vmul.f32 %v1451, %v1453
    %v1455 = vadd.f32 %v1451, %v1454
    %vm1456 = vweird.f32 %v1434
    %vm1457 = vweird.f32 %v1451
    %vm1458 = vmor %vm1456, %vm1457
    %v1459 = vsel %vm1458, %v1451, %v1455
    %v1460 = vand.u32 2147483647, %v1434
    %vm1461 = vcmp.eq.f32.partialorder %v1460, 8.507059e+37
    %v1462 = vand.u32 %v1434, 2147483648
    %v1463 = vor.u32 1.1754944e-38, %v1462
    %v1464 = vsel %vm1461, %v1463, %v1459
    %v1465 = vmul.f32 1.0, %v1464
    %v1466 = vrcp.pop %v1435
    %v1467 = vmul.f32 %v1435, %v1466
    %v1468 = vsub.f32 1.0, %v1467
    %v1469 = vmul.f32 %v1466, %v1468
    %v1470 = vadd.f32 %v1466, %v1469
    %vm1471 = vweird.f32 %v1435
    %vm1472 = vweird.f32 %v1466
    %vm1473 = vmor %vm1471, %vm1472
    %v1474 = vsel %vm1473, %v1466, %v1470
    %v1475 = vand.u32 2147483647, %v1435
    %vm1476 = vcmp.eq.f32.partialorder %v1475, 8.507059e+37
    %v1477 = vand.u32 %v1435, 2147483648
    %v1478 = vor.u32 1.1754944e-38, %v1477
    %v1479 = vsel %vm1476, %v1478, %v1474
    %v1480 = vmul.f32 1.0, %v1479
    %v1481 = vtanh.pop %v1423
    %v1482 = vmul.f32 %v1465, %v752
    %v1483 = vmul.f32 %v1450, %v1481
    %v1484 = vadd.f32 %v1482, %v1483
    %v1485 = vtanh.pop %v1484
    %v1486 = vmul.f32 %v1480, %v1485
    %v1487 = vpack.c.bf16 %v1486, %v1486
    %1488 = vmatpush.bf16.msra.mxu0 %v881
    %1489 = vmatpush.bf16.msra.mxu0 %v877
    %1490 = vmatpush.bf16.msra.mxu0 %v873
    %1491 = vmatpush.bf16.msra.mxu0 %v869
    %1492 = vmatpush.bf16.msra.mxu0 %v865
    %1493 = vmatpush.bf16.msra.mxu0 %v861
    %1494 = vmatpush.bf16.msra.mxu0 %v857
    %1495 = vmatpush.bf16.msra.mxu0 %v853
    %1496 = vmatmul.bf16.gmra.mxu0 %v1248
    %v1497 = vpop.f32.mrf.mxu0
    %v1498 = vadd.f32 0.0, %v1497
    %v1499 = vpop.f32.mrf.mxu0
    %1500 = vdwg.mxu0
    %1501 = vmatpush.bf16.msra.mxu0 %v882
    %1502 = vmatpush.bf16.msra.mxu0 %v878
    %1503 = vmatpush.bf16.msra.mxu0 %v874
    %1504 = vmatpush.bf16.msra.mxu0 %v870
    %1505 = vmatpush.bf16.msra.mxu0 %v866
    %1506 = vmatpush.bf16.msra.mxu0 %v862
    %1507 = vmatpush.bf16.msra.mxu0 %v858
    %1508 = vmatpush.bf16.msra.mxu0 %v854
    %1509 = vmatmul.bf16.gmra.mxu0 %v1248
    %v1510 = vpop.f32.mrf.mxu0
    %v1511 = vadd.f32 0.0, %v1510
    %v1512 = vpop.f32.mrf.mxu0
    %1513 = vdwg.mxu0
    %1514 = vmatpush.bf16.msra.mxu0 %v883
    %1515 = vmatpush.bf16.msra.mxu0 %v879
    %1516 = vmatpush.bf16.msra.mxu0 %v875
    %1517 = vmatpush.bf16.msra.mxu0 %v871
    %1518 = vmatpush.bf16.msra.mxu0 %v867
    %1519 = vmatpush.bf16.msra.mxu0 %v863
    %1520 = vmatpush.bf16.msra.mxu0 %v859
    %1521 = vmatpush.bf16.msra.mxu0 %v855
    %1522 = vmatmul.bf16.gmra.mxu0 %v1248
    %v1523 = vpop.f32.mrf.mxu0
    %v1524 = vadd.f32 0.0, %v1523
    %v1525 = vpop.f32.mrf.mxu0
    %1526 = vdwg.mxu0
    %1527 = vmatpush.bf16.msra.mxu0 %v884
    %1528 = vmatpush.bf16.msra.mxu0 %v880
    %1529 = vmatpush.bf16.msra.mxu0 %v876
    %1530 = vmatpush.bf16.msra.mxu0 %v872
    %1531 = vmatpush.bf16.msra.mxu0 %v868
    %1532 = vmatpush.bf16.msra.mxu0 %v864
    %1533 = vmatpush.bf16.msra.mxu0 %v860
    %1534 = vmatpush.bf16.msra.mxu0 %v856
    %1535 = vmatmul.bf16.gmra.mxu0 %v1248
    %v1536 = vpop.f32.mrf.mxu0
    %v1537 = vadd.f32 0.0, %v1536
    %v1538 = vpop.f32.mrf.mxu0
    %1539 = vdwg.mxu0
    %1540 = vmatpush.bf16.msra.mxu0 %v1093
    %1541 = vmatpush.bf16.msra.mxu0 %v1089
    %1542 = vmatpush.bf16.msra.mxu0 %v1085
    %1543 = vmatpush.bf16.msra.mxu0 %v1081
    %1544 = vmatpush.bf16.msra.mxu0 %v1077
    %1545 = vmatpush.bf16.msra.mxu0 %v1073
    %1546 = vmatpush.bf16.msra.mxu0 %v1069
    %1547 = vmatpush.bf16.msra.mxu0 %v1065
    %1548 = vmatmul.bf16.gmra.mxu0 %v1487
    %v1549 = vpop.f32.mrf.mxu0
    %v1550 = vadd.f32 %v1498, %v1549
    %v1551 = vpop.f32.mrf.mxu0
    %1552 = vdwg.mxu0
    %1553 = vmatpush.bf16.msra.mxu0 %v1094
    %1554 = vmatpush.bf16.msra.mxu0 %v1090
    %1555 = vmatpush.bf16.msra.mxu0 %v1086
    %1556 = vmatpush.bf16.msra.mxu0 %v1082
    %1557 = vmatpush.bf16.msra.mxu0 %v1078
    %1558 = vmatpush.bf16.msra.mxu0 %v1074
    %1559 = vmatpush.bf16.msra.mxu0 %v1070
    %1560 = vmatpush.bf16.msra.mxu0 %v1066
    %1561 = vmatmul.bf16.gmra.mxu0 %v1487
    %v1562 = vpop.f32.mrf.mxu0
    %v1563 = vadd.f32 %v1511, %v1562
    %v1564 = vpop.f32.mrf.mxu0
    %1565 = vdwg.mxu0
    %1566 = vmatpush.bf16.msra.mxu0 %v1095
    %1567 = vmatpush.bf16.msra.mxu0 %v1091
    %1568 = vmatpush.bf16.msra.mxu0 %v1087
    %1569 = vmatpush.bf16.msra.mxu0 %v1083
    %1570 = vmatpush.bf16.msra.mxu0 %v1079
    %1571 = vmatpush.bf16.msra.mxu0 %v1075
    %1572 = vmatpush.bf16.msra.mxu0 %v1071
    %1573 = vmatpush.bf16.msra.mxu0 %v1067
    %1574 = vmatmul.bf16.gmra.mxu0 %v1487
    %v1575 = vpop.f32.mrf.mxu0
    %v1576 = vadd.f32 %v1524, %v1575
    %v1577 = vpop.f32.mrf.mxu0
    %1578 = vdwg.mxu0
    %1579 = vmatpush.bf16.msra.mxu0 %v1096
    %1580 = vmatpush.bf16.msra.mxu0 %v1092
    %1581 = vmatpush.bf16.msra.mxu0 %v1088
    %1582 = vmatpush.bf16.msra.mxu0 %v1084
    %1583 = vmatpush.bf16.msra.mxu0 %v1080
    %1584 = vmatpush.bf16.msra.mxu0 %v1076
    %1585 = vmatpush.bf16.msra.mxu0 %v1072
    %1586 = vmatpush.bf16.msra.mxu0 %v1068
    %1587 = vmatmul.bf16.gmra.mxu0 %v1487
    %v1588 = vpop.f32.mrf.mxu0
    %v1589 = vadd.f32 %v1537, %v1588
    %v1590 = vpop.f32.mrf.mxu0
    %1591 = vdwg.mxu0
    %v1592 = vadd.f32 %v1550, %v320
    %v1593 = vadd.f32 %v1563, %v321
    %v1594 = vadd.f32 %v1576, %v322
    %v1595 = vadd.f32 %v1589, %v323
    %v1596 = vxor.u32 %v1592, 2147483648
    %v1597 = vxor.u32 %v1593, 2147483648
    %v1598 = vxor.u32 %v1594, 2147483648
    %v1599 = vmul.f32 %v1596, 1.442695
    %v1600 = vpow.pop %v1599
    %v1601 = vmul.f32 %v1597, 1.442695
    %v1602 = vpow.pop %v1601
    %v1603 = vmul.f32 %v1598, 1.442695
    %v1604 = vpow.pop %v1603
    %v1605 = vadd.f32 %v1600, 1.0
    %v1606 = vadd.f32 %v1602, 1.0
    %v1607 = vadd.f32 %v1604, 1.0
    %v1608 = vrcp.pop %v1605
    %v1609 = vmul.f32 %v1605, %v1608
    %v1610 = vsub.f32 1.0, %v1609
    %v1611 = vmul.f32 %v1608, %v1610
    %v1612 = vadd.f32 %v1608, %v1611
    %vm1613 = vweird.f32 %v1605
    %vm1614 = vweird.f32 %v1608
    %vm1615 = vmor %vm1613, %vm1614
    %v1616 = vsel %vm1615, %v1608, %v1612
    %v1617 = vand.u32 2147483647, %v1605
    %vm1618 = vcmp.eq.f32.partialorder %v1617, 8.507059e+37
    %v1619 = vand.u32 %v1605, 2147483648
    %v1620 = vor.u32 1.1754944e-38, %v1619
    %v1621 = vsel %vm1618, %v1620, %v1616
    %v1622 = vmul.f32 1.0, %v1621
    %v1623 = vrcp.pop %v1606
    %v1624 = vmul.f32 %v1606, %v1623
    %v1625 = vsub.f32 1.0, %v1624
    %v1626 = vmul.f32 %v1623, %v1625
    %v1627 = vadd.f32 %v1623, %v1626
    %vm1628 = vweird.f32 %v1606
    %vm1629 = vweird.f32 %v1623
    %vm1630 = vmor %vm1628, %vm1629
    %v1631 = vsel %vm1630, %v1623, %v1627
    %v1632 = vand.u32 2147483647, %v1606
    %vm1633 = vcmp.eq.f32.partialorder %v1632, 8.507059e+37
    %v1634 = vand.u32 %v1606, 2147483648
    %v1635 = vor.u32 1.1754944e-38, %v1634
    %v1636 = vsel %vm1633, %v1635, %v1631
    %v1637 = vmul.f32 1.0, %v1636
    %v1638 = vrcp.pop %v1607
    %v1639 = vmul.f32 %v1607, %v1638
    %v1640 = vsub.f32 1.0, %v1639
    %v1641 = vmul.f32 %v1638, %v1640
    %v1642 = vadd.f32 %v1638, %v1641
    %vm1643 = vweird.f32 %v1607
    %vm1644 = vweird.f32 %v1638
    %vm1645 = vmor %vm1643, %vm1644
    %v1646 = vsel %vm1645, %v1638, %v1642
    %v1647 = vand.u32 2147483647, %v1607
    %vm1648 = vcmp.eq.f32.partialorder %v1647, 8.507059e+37
    %v1649 = vand.u32 %v1607, 2147483648
    %v1650 = vor.u32 1.1754944e-38, %v1649
    %v1651 = vsel %vm1648, %v1650, %v1646
    %v1652 = vmul.f32 1.0, %v1651
    %v1653 = vtanh.pop %v1595
    %v1654 = vmul.f32 %v1637, %v1245
    %v1655 = vmul.f32 %v1622, %v1653
    %v1656 = vadd.f32 %v1654, %v1655
    %v1657 = vtanh.pop %v1656
    %v1658 = vmul.f32 %v1652, %v1657
    %v1659 = vpack.c.bf16 %v1658, %v1658
    %1660 = vmatpush.bf16.msra.mxu0 %v1288
    %1661 = vmatpush.bf16.msra.mxu0 %v1287
    %1662 = vmatpush.bf16.msra.mxu0 %v1286
    %1663 = vmatpush.bf16.msra.mxu0 %v1285
    %1664 = vmatpush.bf16.msra.mxu0 %v1284
    %1665 = vmatpush.bf16.msra.mxu0 %v1283
    %1666 = vmatpush.bf16.msra.mxu0 %v1282
    %1667 = vmatpush.bf16.msra.mxu0 %v1281
    %1668 = vmatmul.bf16.gmra.mxu0 %v1659
    %v1669 = vpop.f32.mrf.mxu0
    %v1670 = vadd.f32 %v330, %v1669
    %v1671 = vpop.f32.mrf.mxu0
    %1672 = vdwg.mxu0
    %s1673 = scalar_lea.vmem [#allocation17], 2
    %1674 = vst [vmem:[%s1673] sm:$0x3] %v1670
    %s1675 = scalar_lea.vmem [#allocation2], 2
    %v1676 = vld [vmem:[%s1675] sm:$0x1]
    %1677 = vmatpush.bf16.msra.mxu0 %v464
    %1678 = vmatpush.bf16.msra.mxu0 %v460
    %1679 = vmatpush.bf16.msra.mxu0 %v456
    %1680 = vmatpush.bf16.msra.mxu0 %v452
    %1681 = vmatpush.bf16.msra.mxu0 %v448
    %1682 = vmatpush.bf16.msra.mxu0 %v444
    %1683 = vmatpush.bf16.msra.mxu0 %v440
    %1684 = vmatpush.bf16.msra.mxu0 %v436
    %1685 = vmatmul.bf16.gmra.mxu0 %v1487
    %v1686 = vpop.f32.mrf.mxu0
    %v1687 = vadd.f32 0.0, %v1686
    %v1688 = vpop.f32.mrf.mxu0
    %1689 = vdwg.mxu0
    %1690 = vmatpush.bf16.msra.mxu0 %v465
    %1691 = vmatpush.bf16.msra.mxu0 %v461
    %1692 = vmatpush.bf16.msra.mxu0 %v457
    %1693 = vmatpush.bf16.msra.mxu0 %v453
    %1694 = vmatpush.bf16.msra.mxu0 %v449
    %1695 = vmatpush.bf16.msra.mxu0 %v445
    %1696 = vmatpush.bf16.msra.mxu0 %v441
    %1697 = vmatpush.bf16.msra.mxu0 %v437
    %1698 = vmatmul.bf16.gmra.mxu0 %v1487
    %v1699 = vpop.f32.mrf.mxu0
    %v1700 = vadd.f32 0.0, %v1699
    %v1701 = vpop.f32.mrf.mxu0
    %1702 = vdwg.mxu0
    %1703 = vmatpush.bf16.msra.mxu0 %v466
    %1704 = vmatpush.bf16.msra.mxu0 %v462
    %1705 = vmatpush.bf16.msra.mxu0 %v458
    %1706 = vmatpush.bf16.msra.mxu0 %v454
    %1707 = vmatpush.bf16.msra.mxu0 %v450
    %1708 = vmatpush.bf16.msra.mxu0 %v446
    %1709 = vmatpush.bf16.msra.mxu0 %v442
    %1710 = vmatpush.bf16.msra.mxu0 %v438
    %1711 = vmatmul.bf16.gmra.mxu0 %v1487
    %v1712 = vpop.f32.mrf.mxu0
    %v1713 = vadd.f32 0.0, %v1712
    %v1714 = vpop.f32.mrf.mxu0
    %1715 = vdwg.mxu0
    %1716 = vmatpush.bf16.msra.mxu0 %v467
    %1717 = vmatpush.bf16.msra.mxu0 %v463
    %1718 = vmatpush.bf16.msra.mxu0 %v459
    %1719 = vmatpush.bf16.msra.mxu0 %v455
    %1720 = vmatpush.bf16.msra.mxu0 %v451
    %1721 = vmatpush.bf16.msra.mxu0 %v447
    %1722 = vmatpush.bf16.msra.mxu0 %v443
    %1723 = vmatpush.bf16.msra.mxu0 %v439
    %1724 = vmatmul.bf16.gmra.mxu0 %v1487
    %v1725 = vpop.f32.mrf.mxu0
    %v1726 = vadd.f32 0.0, %v1725
    %v1727 = vpop.f32.mrf.mxu0
    %1728 = vdwg.mxu0
    %v1730 = vsel %vm632, %v1676, 0
    %1732 = vmatpush.bf16.msra.mxu0 0
    %1733 = vmatpush.bf16.msra.mxu0 0
    %1734 = vmatpush.bf16.msra.mxu0 0
    %1735 = vmatpush.bf16.msra.mxu0 0
    %1736 = vmatpush.bf16.msra.mxu0 %v612
    %1737 = vmatpush.bf16.msra.mxu0 %v608
    %1738 = vmatpush.bf16.msra.mxu0 %v604
    %1739 = vmatpush.bf16.msra.mxu0 %v600
    %1740 = vmatmul.bf16.gmra.mxu0 %v1730
    %v1741 = vpop.f32.mrf.mxu0
    %v1742 = vadd.f32 %v1687, %v1741
    %v1743 = vpop.f32.mrf.mxu0
    %1744 = vdwg.mxu0
    %1745 = vmatpush.bf16.msra.mxu0 0
    %1746 = vmatpush.bf16.msra.mxu0 0
    %1747 = vmatpush.bf16.msra.mxu0 0
    %1748 = vmatpush.bf16.msra.mxu0 0
    %1749 = vmatpush.bf16.msra.mxu0 %v613
    %1750 = vmatpush.bf16.msra.mxu0 %v609
    %1751 = vmatpush.bf16.msra.mxu0 %v605
    %1752 = vmatpush.bf16.msra.mxu0 %v601
    %1753 = vmatmul.bf16.gmra.mxu0 %v1730
    %v1754 = vpop.f32.mrf.mxu0
    %v1755 = vadd.f32 %v1700, %v1754
    %v1756 = vpop.f32.mrf.mxu0
    %1757 = vdwg.mxu0
    %1758 = vmatpush.bf16.msra.mxu0 0
    %1759 = vmatpush.bf16.msra.mxu0 0
    %1760 = vmatpush.bf16.msra.mxu0 0
    %1761 = vmatpush.bf16.msra.mxu0 0
    %1762 = vmatpush.bf16.msra.mxu0 %v614
    %1763 = vmatpush.bf16.msra.mxu0 %v610
    %1764 = vmatpush.bf16.msra.mxu0 %v606
    %1765 = vmatpush.bf16.msra.mxu0 %v602
    %1766 = vmatmul.bf16.gmra.mxu0 %v1730
    %v1767 = vpop.f32.mrf.mxu0
    %v1768 = vadd.f32 %v1713, %v1767
    %v1769 = vpop.f32.mrf.mxu0
    %1770 = vdwg.mxu0
    %1771 = vmatpush.bf16.msra.mxu0 0
    %1772 = vmatpush.bf16.msra.mxu0 0
    %1773 = vmatpush.bf16.msra.mxu0 0
    %1774 = vmatpush.bf16.msra.mxu0 0
    %1775 = vmatpush.bf16.msra.mxu0 %v615
    %1776 = vmatpush.bf16.msra.mxu0 %v611
    %1777 = vmatpush.bf16.msra.mxu0 %v607
    %1778 = vmatpush.bf16.msra.mxu0 %v603
    %1779 = vmatmul.bf16.gmra.mxu0 %v1730
    %v1780 = vpop.f32.mrf.mxu0
    %v1781 = vadd.f32 %v1726, %v1780
    %v1782 = vpop.f32.mrf.mxu0
    %1783 = vdwg.mxu0
    %v1784 = vadd.f32 %v1742, %v310
    %v1785 = vadd.f32 %v1755, %v311
    %v1786 = vadd.f32 %v1768, %v312
    %v1787 = vadd.f32 %v1781, %v313
    %v1788 = vxor.u32 %v1784, 2147483648
    %v1789 = vxor.u32 %v1785, 2147483648
    %v1790 = vxor.u32 %v1786, 2147483648
    %v1791 = vmul.f32 %v1788, 1.442695
    %v1792 = vpow.pop %v1791
    %v1793 = vmul.f32 %v1789, 1.442695
    %v1794 = vpow.pop %v1793
    %v1795 = vmul.f32 %v1790, 1.442695
    %v1796 = vpow.pop %v1795
    %v1797 = vadd.f32 %v1792, 1.0
    %v1798 = vadd.f32 %v1794, 1.0
    %v1799 = vadd.f32 %v1796, 1.0
    %v1800 = vrcp.pop %v1797
    %v1801 = vmul.f32 %v1797, %v1800
    %v1802 = vsub.f32 1.0, %v1801
    %v1803 = vmul.f32 %v1800, %v1802
    %v1804 = vadd.f32 %v1800, %v1803
    %vm1805 = vweird.f32 %v1797
    %vm1806 = vweird.f32 %v1800
    %vm1807 = vmor %vm1805, %vm1806
    %v1808 = vsel %vm1807, %v1800, %v1804
    %v1809 = vand.u32 2147483647, %v1797
    %vm1810 = vcmp.eq.f32.partialorder %v1809, 8.507059e+37
    %v1811 = vand.u32 %v1797, 2147483648
    %v1812 = vor.u32 1.1754944e-38, %v1811
    %v1813 = vsel %vm1810, %v1812, %v1808
    %v1814 = vmul.f32 1.0, %v1813
    %v1815 = vrcp.pop %v1798
    %v1816 = vmul.f32 %v1798, %v1815
    %v1817 = vsub.f32 1.0, %v1816
    %v1818 = vmul.f32 %v1815, %v1817
    %v1819 = vadd.f32 %v1815, %v1818
    %vm1820 = vweird.f32 %v1798
    %vm1821 = vweird.f32 %v1815
    %vm1822 = vmor %vm1820, %vm1821
    %v1823 = vsel %vm1822, %v1815, %v1819
    %v1824 = vand.u32 2147483647, %v1798
    %vm1825 = vcmp.eq.f32.partialorder %v1824, 8.507059e+37
    %v1826 = vand.u32 %v1798, 2147483648
    %v1827 = vor.u32 1.1754944e-38, %v1826
    %v1828 = vsel %vm1825, %v1827, %v1823
    %v1829 = vmul.f32 1.0, %v1828
    %v1830 = vrcp.pop %v1799
    %v1831 = vmul.f32 %v1799, %v1830
    %v1832 = vsub.f32 1.0, %v1831
    %v1833 = vmul.f32 %v1830, %v1832
    %v1834 = vadd.f32 %v1830, %v1833
    %vm1835 = vweird.f32 %v1799
    %vm1836 = vweird.f32 %v1830
    %vm1837 = vmor %vm1835, %vm1836
    %v1838 = vsel %vm1837, %v1830, %v1834
    %v1839 = vand.u32 2147483647, %v1799
    %vm1840 = vcmp.eq.f32.partialorder %v1839, 8.507059e+37
    %v1841 = vand.u32 %v1799, 2147483648
    %v1842 = vor.u32 1.1754944e-38, %v1841
    %v1843 = vsel %vm1840, %v1842, %v1838
    %v1844 = vmul.f32 1.0, %v1843
    %v1845 = vtanh.pop %v1787
    %v1846 = vmul.f32 %v1829, %v1484
    %v1847 = vmul.f32 %v1814, %v1845
    %v1848 = vadd.f32 %v1846, %v1847
    %v1849 = vtanh.pop %v1848
    %v1850 = vmul.f32 %v1844, %v1849
    %v1851 = vpack.c.bf16 %v1850, %v1850
    %1852 = vmatpush.bf16.msra.mxu0 %v881
    %1853 = vmatpush.bf16.msra.mxu0 %v877
    %1854 = vmatpush.bf16.msra.mxu0 %v873
    %1855 = vmatpush.bf16.msra.mxu0 %v869
    %1856 = vmatpush.bf16.msra.mxu0 %v865
    %1857 = vmatpush.bf16.msra.mxu0 %v861
    %1858 = vmatpush.bf16.msra.mxu0 %v857
    %1859 = vmatpush.bf16.msra.mxu0 %v853
    %1860 = vmatmul.bf16.gmra.mxu0 %v1659
    %v1861 = vpop.f32.mrf.mxu0
    %v1862 = vadd.f32 0.0, %v1861
    %v1863 = vpop.f32.mrf.mxu0
    %1864 = vdwg.mxu0
    %1865 = vmatpush.bf16.msra.mxu0 %v882
    %1866 = vmatpush.bf16.msra.mxu0 %v878
    %1867 = vmatpush.bf16.msra.mxu0 %v874
    %1868 = vmatpush.bf16.msra.mxu0 %v870
    %1869 = vmatpush.bf16.msra.mxu0 %v866
    %1870 = vmatpush.bf16.msra.mxu0 %v862
    %1871 = vmatpush.bf16.msra.mxu0 %v858
    %1872 = vmatpush.bf16.msra.mxu0 %v854
    %1873 = vmatmul.bf16.gmra.mxu0 %v1659
    %v1874 = vpop.f32.mrf.mxu0
    %v1875 = vadd.f32 0.0, %v1874
    %v1876 = vpop.f32.mrf.mxu0
    %1877 = vdwg.mxu0
    %1878 = vmatpush.bf16.msra.mxu0 %v883
    %1879 = vmatpush.bf16.msra.mxu0 %v879
    %1880 = vmatpush.bf16.msra.mxu0 %v875
    %1881 = vmatpush.bf16.msra.mxu0 %v871
    %1882 = vmatpush.bf16.msra.mxu0 %v867
    %1883 = vmatpush.bf16.msra.mxu0 %v863
    %1884 = vmatpush.bf16.msra.mxu0 %v859
    %1885 = vmatpush.bf16.msra.mxu0 %v855
    %1886 = vmatmul.bf16.gmra.mxu0 %v1659
    %v1887 = vpop.f32.mrf.mxu0
    %v1888 = vadd.f32 0.0, %v1887
    %v1889 = vpop.f32.mrf.mxu0
    %1890 = vdwg.mxu0
    %1891 = vmatpush.bf16.msra.mxu0 %v884
    %1892 = vmatpush.bf16.msra.mxu0 %v880
    %1893 = vmatpush.bf16.msra.mxu0 %v876
    %1894 = vmatpush.bf16.msra.mxu0 %v872
    %1895 = vmatpush.bf16.msra.mxu0 %v868
    %1896 = vmatpush.bf16.msra.mxu0 %v864
    %1897 = vmatpush.bf16.msra.mxu0 %v860
    %1898 = vmatpush.bf16.msra.mxu0 %v856
    %1899 = vmatmul.bf16.gmra.mxu0 %v1659
    %v1900 = vpop.f32.mrf.mxu0
    %v1901 = vadd.f32 0.0, %v1900
    %v1902 = vpop.f32.mrf.mxu0
    %1903 = vdwg.mxu0
    %1904 = vmatpush.bf16.msra.mxu0 %v1093
    %1905 = vmatpush.bf16.msra.mxu0 %v1089
    %1906 = vmatpush.bf16.msra.mxu0 %v1085
    %1907 = vmatpush.bf16.msra.mxu0 %v1081
    %1908 = vmatpush.bf16.msra.mxu0 %v1077
    %1909 = vmatpush.bf16.msra.mxu0 %v1073
    %1910 = vmatpush.bf16.msra.mxu0 %v1069
    %1911 = vmatpush.bf16.msra.mxu0 %v1065
    %1912 = vmatmul.bf16.gmra.mxu0 %v1851
    %v1913 = vpop.f32.mrf.mxu0
    %v1914 = vadd.f32 %v1862, %v1913
    %v1915 = vpop.f32.mrf.mxu0
    %1916 = vdwg.mxu0
    %1917 = vmatpush.bf16.msra.mxu0 %v1094
    %1918 = vmatpush.bf16.msra.mxu0 %v1090
    %1919 = vmatpush.bf16.msra.mxu0 %v1086
    %1920 = vmatpush.bf16.msra.mxu0 %v1082
    %1921 = vmatpush.bf16.msra.mxu0 %v1078
    %1922 = vmatpush.bf16.msra.mxu0 %v1074
    %1923 = vmatpush.bf16.msra.mxu0 %v1070
    %1924 = vmatpush.bf16.msra.mxu0 %v1066
    %1925 = vmatmul.bf16.gmra.mxu0 %v1851
    %v1926 = vpop.f32.mrf.mxu0
    %v1927 = vadd.f32 %v1875, %v1926
    %v1928 = vpop.f32.mrf.mxu0
    %1929 = vdwg.mxu0
    %1930 = vmatpush.bf16.msra.mxu0 %v1095
    %1931 = vmatpush.bf16.msra.mxu0 %v1091
    %1932 = vmatpush.bf16.msra.mxu0 %v1087
    %1933 = vmatpush.bf16.msra.mxu0 %v1083
    %1934 = vmatpush.bf16.msra.mxu0 %v1079
    %1935 = vmatpush.bf16.msra.mxu0 %v1075
    %1936 = vmatpush.bf16.msra.mxu0 %v1071
    %1937 = vmatpush.bf16.msra.mxu0 %v1067
    %1938 = vmatmul.bf16.gmra.mxu0 %v1851
    %v1939 = vpop.f32.mrf.mxu0
    %v1940 = vadd.f32 %v1888, %v1939
    %v1941 = vpop.f32.mrf.mxu0
    %1942 = vdwg.mxu0
    %1943 = vmatpush.bf16.msra.mxu0 %v1096
    %1944 = vmatpush.bf16.msra.mxu0 %v1092
    %1945 = vmatpush.bf16.msra.mxu0 %v1088
    %1946 = vmatpush.bf16.msra.mxu0 %v1084
    %1947 = vmatpush.bf16.msra.mxu0 %v1080
    %1948 = vmatpush.bf16.msra.mxu0 %v1076
    %1949 = vmatpush.bf16.msra.mxu0 %v1072
    %1950 = vmatpush.bf16.msra.mxu0 %v1068
    %1951 = vmatmul.bf16.gmra.mxu0 %v1851
    %v1952 = vpop.f32.mrf.mxu0
    %v1953 = vadd.f32 %v1901, %v1952
    %v1954 = vpop.f32.mrf.mxu0
    %1955 = vdwg.mxu0
    %v1956 = vadd.f32 %v1914, %v320
    %v1957 = vadd.f32 %v1927, %v321
    %v1958 = vadd.f32 %v1940, %v322
    %v1959 = vadd.f32 %v1953, %v323
    %v1960 = vxor.u32 %v1956, 2147483648
    %v1961 = vxor.u32 %v1957, 2147483648
    %v1962 = vxor.u32 %v1958, 2147483648
    %v1963 = vmul.f32 %v1960, 1.442695
    %v1964 = vpow.pop %v1963
    %v1965 = vmul.f32 %v1961, 1.442695
    %v1966 = vpow.pop %v1965
    %v1967 = vmul.f32 %v1962, 1.442695
    %v1968 = vpow.pop %v1967
    %v1969 = vadd.f32 %v1964, 1.0
    %v1970 = vadd.f32 %v1966, 1.0
    %v1971 = vadd.f32 %v1968, 1.0
    %v1972 = vrcp.pop %v1969
    %v1973 = vmul.f32 %v1969, %v1972
    %v1974 = vsub.f32 1.0, %v1973
    %v1975 = vmul.f32 %v1972, %v1974
    %v1976 = vadd.f32 %v1972, %v1975
    %vm1977 = vweird.f32 %v1969
    %vm1978 = vweird.f32 %v1972
    %vm1979 = vmor %vm1977, %vm1978
    %v1980 = vsel %vm1979, %v1972, %v1976
    %v1981 = vand.u32 2147483647, %v1969
    %vm1982 = vcmp.eq.f32.partialorder %v1981, 8.507059e+37
    %v1983 = vand.u32 %v1969, 2147483648
    %v1984 = vor.u32 1.1754944e-38, %v1983
    %v1985 = vsel %vm1982, %v1984, %v1980
    %v1986 = vmul.f32 1.0, %v1985
    %v1987 = vrcp.pop %v1970
    %v1988 = vmul.f32 %v1970, %v1987
    %v1989 = vsub.f32 1.0, %v1988
    %v1990 = vmul.f32 %v1987, %v1989
    %v1991 = vadd.f32 %v1987, %v1990
    %vm1992 = vweird.f32 %v1970
    %vm1993 = vweird.f32 %v1987
    %vm1994 = vmor %vm1992, %vm1993
    %v1995 = vsel %vm1994, %v1987, %v1991
    %v1996 = vand.u32 2147483647, %v1970
    %vm1997 = vcmp.eq.f32.partialorder %v1996, 8.507059e+37
    %v1998 = vand.u32 %v1970, 2147483648
    %v1999 = vor.u32 1.1754944e-38, %v1998
    %v2000 = vsel %vm1997, %v1999, %v1995
    %v2001 = vmul.f32 1.0, %v2000
    %v2002 = vrcp.pop %v1971
    %v2003 = vmul.f32 %v1971, %v2002
    %v2004 = vsub.f32 1.0, %v2003
    %v2005 = vmul.f32 %v2002, %v2004
    %v2006 = vadd.f32 %v2002, %v2005
    %vm2007 = vweird.f32 %v1971
    %vm2008 = vweird.f32 %v2002
    %vm2009 = vmor %vm2007, %vm2008
    %v2010 = vsel %vm2009, %v2002, %v2006
    %v2011 = vand.u32 2147483647, %v1971
    %vm2012 = vcmp.eq.f32.partialorder %v2011, 8.507059e+37
    %v2013 = vand.u32 %v1971, 2147483648
    %v2014 = vor.u32 1.1754944e-38, %v2013
    %v2015 = vsel %vm2012, %v2014, %v2010
    %v2016 = vmul.f32 1.0, %v2015
    %v2017 = vtanh.pop %v1959
    %v2018 = vmul.f32 %v2001, %v1656
    %v2019 = vmul.f32 %v1986, %v2017
    %v2020 = vadd.f32 %v2018, %v2019
    %v2021 = vtanh.pop %v2020
    %v2022 = vmul.f32 %v2016, %v2021
    %v2023 = vpack.c.bf16 %v2022, %v2022
    %2024 = vmatpush.bf16.msra.mxu0 %v1288
    %2025 = vmatpush.bf16.msra.mxu0 %v1287
    %2026 = vmatpush.bf16.msra.mxu0 %v1286
    %2027 = vmatpush.bf16.msra.mxu0 %v1285
    %2028 = vmatpush.bf16.msra.mxu0 %v1284
    %2029 = vmatpush.bf16.msra.mxu0 %v1283
    %2030 = vmatpush.bf16.msra.mxu0 %v1282
    %2031 = vmatpush.bf16.msra.mxu0 %v1281
    %2032 = vmatmul.bf16.gmra.mxu0 %v2023
    %v2033 = vpop.f32.mrf.mxu0
    %v2034 = vadd.f32 %v330, %v2033
    %v2035 = vpop.f32.mrf.mxu0
    %2036 = vdwg.mxu0
    %s2037 = scalar_lea.vmem [#allocation17], 4
    %2038 = vst [vmem:[%s2037] sm:$0x3] %v2034
    %s2039 = scalar_lea.vmem [#allocation2], 3
    %v2040 = vld [vmem:[%s2039] sm:$0x1]
    %2041 = vmatpush.bf16.msra.mxu0 %v464
    %2042 = vmatpush.bf16.msra.mxu0 %v460
    %2043 = vmatpush.bf16.msra.mxu0 %v456
    %2044 = vmatpush.bf16.msra.mxu0 %v452
    %2045 = vmatpush.bf16.msra.mxu0 %v448
    %2046 = vmatpush.bf16.msra.mxu0 %v444
    %2047 = vmatpush.bf16.msra.mxu0 %v440
    %2048 = vmatpush.bf16.msra.mxu0 %v436
    %2049 = vmatmul.bf16.gmra.mxu0 %v1851
    %v2050 = vpop.f32.mrf.mxu0
    %v2051 = vadd.f32 0.0, %v2050
    %v2052 = vpop.f32.mrf.mxu0
    %2053 = vdwg.mxu0
    %2054 = vmatpush.bf16.msra.mxu0 %v465
    %2055 = vmatpush.bf16.msra.mxu0 %v461
    %2056 = vmatpush.bf16.msra.mxu0 %v457
    %2057 = vmatpush.bf16.msra.mxu0 %v453
    %2058 = vmatpush.bf16.msra.mxu0 %v449
    %2059 = vmatpush.bf16.msra.mxu0 %v445
    %2060 = vmatpush.bf16.msra.mxu0 %v441
    %2061 = vmatpush.bf16.msra.mxu0 %v437
    %2062 = vmatmul.bf16.gmra.mxu0 %v1851
    %v2063 = vpop.f32.mrf.mxu0
    %v2064 = vadd.f32 0.0, %v2063
    %v2065 = vpop.f32.mrf.mxu0
    %2066 = vdwg.mxu0
    %2067 = vmatpush.bf16.msra.mxu0 %v466
    %2068 = vmatpush.bf16.msra.mxu0 %v462
    %2069 = vmatpush.bf16.msra.mxu0 %v458
    %2070 = vmatpush.bf16.msra.mxu0 %v454
    %2071 = vmatpush.bf16.msra.mxu0 %v450
    %2072 = vmatpush.bf16.msra.mxu0 %v446
    %2073 = vmatpush.bf16.msra.mxu0 %v442
    %2074 = vmatpush.bf16.msra.mxu0 %v438
    %2075 = vmatmul.bf16.gmra.mxu0 %v1851
    %v2076 = vpop.f32.mrf.mxu0
    %v2077 = vadd.f32 0.0, %v2076
    %v2078 = vpop.f32.mrf.mxu0
    %2079 = vdwg.mxu0
    %2080 = vmatpush.bf16.msra.mxu0 %v467
    %2081 = vmatpush.bf16.msra.mxu0 %v463
    %2082 = vmatpush.bf16.msra.mxu0 %v459
    %2083 = vmatpush.bf16.msra.mxu0 %v455
    %2084 = vmatpush.bf16.msra.mxu0 %v451
    %2085 = vmatpush.bf16.msra.mxu0 %v447
    %2086 = vmatpush.bf16.msra.mxu0 %v443
    %2087 = vmatpush.bf16.msra.mxu0 %v439
    %2088 = vmatmul.bf16.gmra.mxu0 %v1851
    %v2089 = vpop.f32.mrf.mxu0
    %v2090 = vadd.f32 0.0, %v2089
    %v2091 = vpop.f32.mrf.mxu0
    %2092 = vdwg.mxu0
    %v2094 = vsel %vm632, %v2040, 0
    %2096 = vmatpush.bf16.msra.mxu0 0
    %2097 = vmatpush.bf16.msra.mxu0 0
    %2098 = vmatpush.bf16.msra.mxu0 0
    %2099 = vmatpush.bf16.msra.mxu0 0
    %2100 = vmatpush.bf16.msra.mxu0 %v612
    %2101 = vmatpush.bf16.msra.mxu0 %v608
    %2102 = vmatpush.bf16.msra.mxu0 %v604
    %2103 = vmatpush.bf16.msra.mxu0 %v600
    %2104 = vmatmul.bf16.gmra.mxu0 %v2094
    %v2105 = vpop.f32.mrf.mxu0
    %v2106 = vadd.f32 %v2051, %v2105
    %v2107 = vpop.f32.mrf.mxu0
    %2108 = vdwg.mxu0
    %2109 = vmatpush.bf16.msra.mxu0 0
    %2110 = vmatpush.bf16.msra.mxu0 0
    %2111 = vmatpush.bf16.msra.mxu0 0
    %2112 = vmatpush.bf16.msra.mxu0 0
    %2113 = vmatpush.bf16.msra.mxu0 %v613
    %2114 = vmatpush.bf16.msra.mxu0 %v609
    %2115 = vmatpush.bf16.msra.mxu0 %v605
    %2116 = vmatpush.bf16.msra.mxu0 %v601
    %2117 = vmatmul.bf16.gmra.mxu0 %v2094
    %v2118 = vpop.f32.mrf.mxu0
    %v2119 = vadd.f32 %v2064, %v2118
    %v2120 = vpop.f32.mrf.mxu0
    %2121 = vdwg.mxu0
    %2122 = vmatpush.bf16.msra.mxu0 0
    %2123 = vmatpush.bf16.msra.mxu0 0
    %2124 = vmatpush.bf16.msra.mxu0 0
    %2125 = vmatpush.bf16.msra.mxu0 0
    %2126 = vmatpush.bf16.msra.mxu0 %v614
    %2127 = vmatpush.bf16.msra.mxu0 %v610
    %2128 = vmatpush.bf16.msra.mxu0 %v606
    %2129 = vmatpush.bf16.msra.mxu0 %v602
    %2130 = vmatmul.bf16.gmra.mxu0 %v2094
    %v2131 = vpop.f32.mrf.mxu0
    %v2132 = vadd.f32 %v2077, %v2131
    %v2133 = vpop.f32.mrf.mxu0
    %2134 = vdwg.mxu0
    %2135 = vmatpush.bf16.msra.mxu0 0
    %2136 = vmatpush.bf16.msra.mxu0 0
    %2137 = vmatpush.bf16.msra.mxu0 0
    %2138 = vmatpush.bf16.msra.mxu0 0
    %2139 = vmatpush.bf16.msra.mxu0 %v615
    %2140 = vmatpush.bf16.msra.mxu0 %v611
    %2141 = vmatpush.bf16.msra.mxu0 %v607
    %2142 = vmatpush.bf16.msra.mxu0 %v603
    %2143 = vmatmul.bf16.gmra.mxu0 %v2094
    %v2144 = vpop.f32.mrf.mxu0
    %v2145 = vadd.f32 %v2090, %v2144
    %v2146 = vpop.f32.mrf.mxu0
    %2147 = vdwg.mxu0
    %v2148 = vadd.f32 %v2106, %v310
    %v2149 = vadd.f32 %v2119, %v311
    %v2150 = vadd.f32 %v2132, %v312
    %v2151 = vadd.f32 %v2145, %v313
    %v2152 = vxor.u32 %v2148, 2147483648
    %v2153 = vxor.u32 %v2149, 2147483648
    %v2154 = vxor.u32 %v2150, 2147483648
    %v2155 = vmul.f32 %v2152, 1.442695
    %v2156 = vpow.pop %v2155
    %v2157 = vmul.f32 %v2153, 1.442695
    %v2158 = vpow.pop %v2157
    %v2159 = vmul.f32 %v2154, 1.442695
    %v2160 = vpow.pop %v2159
    %v2161 = vadd.f32 %v2156, 1.0
    %v2162 = vadd.f32 %v2158, 1.0
    %v2163 = vadd.f32 %v2160, 1.0
    %v2164 = vrcp.pop %v2161
    %v2165 = vmul.f32 %v2161, %v2164
    %v2166 = vsub.f32 1.0, %v2165
    %v2167 = vmul.f32 %v2164, %v2166
    %v2168 = vadd.f32 %v2164, %v2167
    %vm2169 = vweird.f32 %v2161
    %vm2170 = vweird.f32 %v2164
    %vm2171 = vmor %vm2169, %vm2170
    %v2172 = vsel %vm2171, %v2164, %v2168
    %v2173 = vand.u32 2147483647, %v2161
    %vm2174 = vcmp.eq.f32.partialorder %v2173, 8.507059e+37
    %v2175 = vand.u32 %v2161, 2147483648
    %v2176 = vor.u32 1.1754944e-38, %v2175
    %v2177 = vsel %vm2174, %v2176, %v2172
    %v2178 = vmul.f32 1.0, %v2177
    %v2179 = vrcp.pop %v2162
    %v2180 = vmul.f32 %v2162, %v2179
    %v2181 = vsub.f32 1.0, %v2180
    %v2182 = vmul.f32 %v2179, %v2181
    %v2183 = vadd.f32 %v2179, %v2182
    %vm2184 = vweird.f32 %v2162
    %vm2185 = vweird.f32 %v2179
    %vm2186 = vmor %vm2184, %vm2185
    %v2187 = vsel %vm2186, %v2179, %v2183
    %v2188 = vand.u32 2147483647, %v2162
    %vm2189 = vcmp.eq.f32.partialorder %v2188, 8.507059e+37
    %v2190 = vand.u32 %v2162, 2147483648
    %v2191 = vor.u32 1.1754944e-38, %v2190
    %v2192 = vsel %vm2189, %v2191, %v2187
    %v2193 = vmul.f32 1.0, %v2192
    %v2194 = vrcp.pop %v2163
    %v2195 = vmul.f32 %v2163, %v2194
    %v2196 = vsub.f32 1.0, %v2195
    %v2197 = vmul.f32 %v2194, %v2196
    %v2198 = vadd.f32 %v2194, %v2197
    %vm2199 = vweird.f32 %v2163
    %vm2200 = vweird.f32 %v2194
    %vm2201 = vmor %vm2199, %vm2200
    %v2202 = vsel %vm2201, %v2194, %v2198
    %v2203 = vand.u32 2147483647, %v2163
    %vm2204 = vcmp.eq.f32.partialorder %v2203, 8.507059e+37
    %v2205 = vand.u32 %v2163, 2147483648
    %v2206 = vor.u32 1.1754944e-38, %v2205
    %v2207 = vsel %vm2204, %v2206, %v2202
    %v2208 = vmul.f32 1.0, %v2207
    %v2209 = vtanh.pop %v2151
    %v2210 = vmul.f32 %v2193, %v1848
    %v2211 = vmul.f32 %v2178, %v2209
    %v2212 = vadd.f32 %v2210, %v2211
    %v2213 = vtanh.pop %v2212
    %v2214 = vmul.f32 %v2208, %v2213
    %v2215 = vpack.c.bf16 %v2214, %v2214
    %2216 = vmatpush.bf16.msra.mxu0 %v881
    %2217 = vmatpush.bf16.msra.mxu0 %v877
    %2218 = vmatpush.bf16.msra.mxu0 %v873
    %2219 = vmatpush.bf16.msra.mxu0 %v869
    %2220 = vmatpush.bf16.msra.mxu0 %v865
    %2221 = vmatpush.bf16.msra.mxu0 %v861
    %2222 = vmatpush.bf16.msra.mxu0 %v857
    %2223 = vmatpush.bf16.msra.mxu0 %v853
    %2224 = vmatmul.bf16.gmra.mxu0 %v2023
    %v2225 = vpop.f32.mrf.mxu0
    %v2226 = vadd.f32 0.0, %v2225
    %v2227 = vpop.f32.mrf.mxu0
    %2228 = vdwg.mxu0
    %2229 = vmatpush.bf16.msra.mxu0 %v882
    %2230 = vmatpush.bf16.msra.mxu0 %v878
    %2231 = vmatpush.bf16.msra.mxu0 %v874
    %2232 = vmatpush.bf16.msra.mxu0 %v870
    %2233 = vmatpush.bf16.msra.mxu0 %v866
    %2234 = vmatpush.bf16.msra.mxu0 %v862
    %2235 = vmatpush.bf16.msra.mxu0 %v858
    %2236 = vmatpush.bf16.msra.mxu0 %v854
    %2237 = vmatmul.bf16.gmra.mxu0 %v2023
    %v2238 = vpop.f32.mrf.mxu0
    %v2239 = vadd.f32 0.0, %v2238
    %v2240 = vpop.f32.mrf.mxu0
    %2241 = vdwg.mxu0
    %2242 = vmatpush.bf16.msra.mxu0 %v883
    %2243 = vmatpush.bf16.msra.mxu0 %v879
    %2244 = vmatpush.bf16.msra.mxu0 %v875
    %2245 = vmatpush.bf16.msra.mxu0 %v871
    %2246 = vmatpush.bf16.msra.mxu0 %v867
    %2247 = vmatpush.bf16.msra.mxu0 %v863
    %2248 = vmatpush.bf16.msra.mxu0 %v859
    %2249 = vmatpush.bf16.msra.mxu0 %v855
    %2250 = vmatmul.bf16.gmra.mxu0 %v2023
    %v2251 = vpop.f32.mrf.mxu0
    %v2252 = vadd.f32 0.0, %v2251
    %v2253 = vpop.f32.mrf.mxu0
    %2254 = vdwg.mxu0
    %2255 = vmatpush.bf16.msra.mxu0 %v884
    %2256 = vmatpush.bf16.msra.mxu0 %v880
    %2257 = vmatpush.bf16.msra.mxu0 %v876
    %2258 = vmatpush.bf16.msra.mxu0 %v872
    %2259 = vmatpush.bf16.msra.mxu0 %v868
    %2260 = vmatpush.bf16.msra.mxu0 %v864
    %2261 = vmatpush.bf16.msra.mxu0 %v860
    %2262 = vmatpush.bf16.msra.mxu0 %v856
    %2263 = vmatmul.bf16.gmra.mxu0 %v2023
    %v2264 = vpop.f32.mrf.mxu0
    %v2265 = vadd.f32 0.0, %v2264
    %v2266 = vpop.f32.mrf.mxu0
    %2267 = vdwg.mxu0
    %2268 = vmatpush.bf16.msra.mxu0 %v1093
    %2269 = vmatpush.bf16.msra.mxu0 %v1089
    %2270 = vmatpush.bf16.msra.mxu0 %v1085
    %2271 = vmatpush.bf16.msra.mxu0 %v1081
    %2272 = vmatpush.bf16.msra.mxu0 %v1077
    %2273 = vmatpush.bf16.msra.mxu0 %v1073
    %2274 = vmatpush.bf16.msra.mxu0 %v1069
    %2275 = vmatpush.bf16.msra.mxu0 %v1065
    %2276 = vmatmul.bf16.gmra.mxu0 %v2215
    %v2277 = vpop.f32.mrf.mxu0
    %v2278 = vadd.f32 %v2226, %v2277
    %v2279 = vpop.f32.mrf.mxu0
    %2280 = vdwg.mxu0
    %2281 = vmatpush.bf16.msra.mxu0 %v1094
    %2282 = vmatpush.bf16.msra.mxu0 %v1090
    %2283 = vmatpush.bf16.msra.mxu0 %v1086
    %2284 = vmatpush.bf16.msra.mxu0 %v1082
    %2285 = vmatpush.bf16.msra.mxu0 %v1078
    %2286 = vmatpush.bf16.msra.mxu0 %v1074
    %2287 = vmatpush.bf16.msra.mxu0 %v1070
    %2288 = vmatpush.bf16.msra.mxu0 %v1066
    %2289 = vmatmul.bf16.gmra.mxu0 %v2215
    %v2290 = vpop.f32.mrf.mxu0
    %v2291 = vadd.f32 %v2239, %v2290
    %v2292 = vpop.f32.mrf.mxu0
    %2293 = vdwg.mxu0
    %2294 = vmatpush.bf16.msra.mxu0 %v1095
    %2295 = vmatpush.bf16.msra.mxu0 %v1091
    %2296 = vmatpush.bf16.msra.mxu0 %v1087
    %2297 = vmatpush.bf16.msra.mxu0 %v1083
    %2298 = vmatpush.bf16.msra.mxu0 %v1079
    %2299 = vmatpush.bf16.msra.mxu0 %v1075
    %2300 = vmatpush.bf16.msra.mxu0 %v1071
    %2301 = vmatpush.bf16.msra.mxu0 %v1067
    %2302 = vmatmul.bf16.gmra.mxu0 %v2215
    %v2303 = vpop.f32.mrf.mxu0
    %v2304 = vadd.f32 %v2252, %v2303
    %v2305 = vpop.f32.mrf.mxu0
    %2306 = vdwg.mxu0
    %2307 = vmatpush.bf16.msra.mxu0 %v1096
    %2308 = vmatpush.bf16.msra.mxu0 %v1092
    %2309 = vmatpush.bf16.msra.mxu0 %v1088
    %2310 = vmatpush.bf16.msra.mxu0 %v1084
    %2311 = vmatpush.bf16.msra.mxu0 %v1080
    %2312 = vmatpush.bf16.msra.mxu0 %v1076
    %2313 = vmatpush.bf16.msra.mxu0 %v1072
    %2314 = vmatpush.bf16.msra.mxu0 %v1068
    %2315 = vmatmul.bf16.gmra.mxu0 %v2215
    %v2316 = vpop.f32.mrf.mxu0
    %v2317 = vadd.f32 %v2265, %v2316
    %v2318 = vpop.f32.mrf.mxu0
    %2319 = vdwg.mxu0
    %v2320 = vadd.f32 %v2278, %v320
    %v2321 = vadd.f32 %v2291, %v321
    %v2322 = vadd.f32 %v2304, %v322
    %v2323 = vadd.f32 %v2317, %v323
    %v2324 = vxor.u32 %v2320, 2147483648
    %v2325 = vxor.u32 %v2321, 2147483648
    %v2326 = vxor.u32 %v2322, 2147483648
    %v2327 = vmul.f32 %v2324, 1.442695
    %v2328 = vpow.pop %v2327
    %v2329 = vmul.f32 %v2325, 1.442695
    %v2330 = vpow.pop %v2329
    %v2331 = vmul.f32 %v2326, 1.442695
    %v2332 = vpow.pop %v2331
    %v2333 = vadd.f32 %v2328, 1.0
    %v2334 = vadd.f32 %v2330, 1.0
    %v2335 = vadd.f32 %v2332, 1.0
    %v2336 = vrcp.pop %v2333
    %v2337 = vmul.f32 %v2333, %v2336
    %v2338 = vsub.f32 1.0, %v2337
    %v2339 = vmul.f32 %v2336, %v2338
    %v2340 = vadd.f32 %v2336, %v2339
    %vm2341 = vweird.f32 %v2333
    %vm2342 = vweird.f32 %v2336
    %vm2343 = vmor %vm2341, %vm2342
    %v2344 = vsel %vm2343, %v2336, %v2340
    %v2345 = vand.u32 2147483647, %v2333
    %vm2346 = vcmp.eq.f32.partialorder %v2345, 8.507059e+37
    %v2347 = vand.u32 %v2333, 2147483648
    %v2348 = vor.u32 1.1754944e-38, %v2347
    %v2349 = vsel %vm2346, %v2348, %v2344
    %v2350 = vmul.f32 1.0, %v2349
    %v2351 = vrcp.pop %v2334
    %v2352 = vmul.f32 %v2334, %v2351
    %v2353 = vsub.f32 1.0, %v2352
    %v2354 = vmul.f32 %v2351, %v2353
    %v2355 = vadd.f32 %v2351, %v2354
    %vm2356 = vweird.f32 %v2334
    %vm2357 = vweird.f32 %v2351
    %vm2358 = vmor %vm2356, %vm2357
    %v2359 = vsel %vm2358, %v2351, %v2355
    %v2360 = vand.u32 2147483647, %v2334
    %vm2361 = vcmp.eq.f32.partialorder %v2360, 8.507059e+37
    %v2362 = vand.u32 %v2334, 2147483648
    %v2363 = vor.u32 1.1754944e-38, %v2362
    %v2364 = vsel %vm2361, %v2363, %v2359
    %v2365 = vmul.f32 1.0, %v2364
    %v2366 = vrcp.pop %v2335
    %v2367 = vmul.f32 %v2335, %v2366
    %v2368 = vsub.f32 1.0, %v2367
    %v2369 = vmul.f32 %v2366, %v2368
    %v2370 = vadd.f32 %v2366, %v2369
    %vm2371 = vweird.f32 %v2335
    %vm2372 = vweird.f32 %v2366
    %vm2373 = vmor %vm2371, %vm2372
    %v2374 = vsel %vm2373, %v2366, %v2370
    %v2375 = vand.u32 2147483647, %v2335
    %vm2376 = vcmp.eq.f32.partialorder %v2375, 8.507059e+37
    %v2377 = vand.u32 %v2335, 2147483648
    %v2378 = vor.u32 1.1754944e-38, %v2377
    %v2379 = vsel %vm2376, %v2378, %v2374
    %v2380 = vmul.f32 1.0, %v2379
    %v2381 = vtanh.pop %v2323
    %v2382 = vmul.f32 %v2365, %v2020
    %v2383 = vmul.f32 %v2350, %v2381
    %v2384 = vadd.f32 %v2382, %v2383
    %v2385 = vtanh.pop %v2384
    %v2386 = vmul.f32 %v2380, %v2385
    %v2387 = vpack.c.bf16 %v2386, %v2386
    %2388 = vmatpush.bf16.msra.mxu0 %v1288
    %2389 = vmatpush.bf16.msra.mxu0 %v1287
    %2390 = vmatpush.bf16.msra.mxu0 %v1286
    %2391 = vmatpush.bf16.msra.mxu0 %v1285
    %2392 = vmatpush.bf16.msra.mxu0 %v1284
    %2393 = vmatpush.bf16.msra.mxu0 %v1283
    %2394 = vmatpush.bf16.msra.mxu0 %v1282
    %2395 = vmatpush.bf16.msra.mxu0 %v1281
    %2396 = vmatmul.bf16.gmra.mxu0 %v2387
    %v2397 = vpop.f32.mrf.mxu0
    %v2398 = vadd.f32 %v330, %v2397
    %v2399 = vpop.f32.mrf.mxu0
    %2400 = vdwg.mxu0
    %s2401 = scalar_lea.vmem [#allocation17], 6
    %2402 = vst [vmem:[%s2401] sm:$0x3] %v2398
    %s2403 = scalar_lea.vmem [#allocation2], 4
    %v2404 = vld [vmem:[%s2403] sm:$0x1]
    %2405 = vmatpush.bf16.msra.mxu0 %v464
    %2406 = vmatpush.bf16.msra.mxu0 %v460
    %2407 = vmatpush.bf16.msra.mxu0 %v456
    %2408 = vmatpush.bf16.msra.mxu0 %v452
    %2409 = vmatpush.bf16.msra.mxu0 %v448
    %2410 = vmatpush.bf16.msra.mxu0 %v444
    %2411 = vmatpush.bf16.msra.mxu0 %v440
    %2412 = vmatpush.bf16.msra.mxu0 %v436
    %2413 = vmatmul.bf16.gmra.mxu0 %v2215
    %v2414 = vpop.f32.mrf.mxu0
    %v2415 = vadd.f32 0.0, %v2414
    %v2416 = vpop.f32.mrf.mxu0
    %2417 = vdwg.mxu0
    %2418 = vmatpush.bf16.msra.mxu0 %v465
    %2419 = vmatpush.bf16.msra.mxu0 %v461
    %2420 = vmatpush.bf16.msra.mxu0 %v457
    %2421 = vmatpush.bf16.msra.mxu0 %v453
    %2422 = vmatpush.bf16.msra.mxu0 %v449
    %2423 = vmatpush.bf16.msra.mxu0 %v445
    %2424 = vmatpush.bf16.msra.mxu0 %v441
    %2425 = vmatpush.bf16.msra.mxu0 %v437
    %2426 = vmatmul.bf16.gmra.mxu0 %v2215
    %v2427 = vpop.f32.mrf.mxu0
    %v2428 = vadd.f32 0.0, %v2427
    %v2429 = vpop.f32.mrf.mxu0
    %2430 = vdwg.mxu0
    %2431 = vmatpush.bf16.msra.mxu0 %v466
    %2432 = vmatpush.bf16.msra.mxu0 %v462
    %2433 = vmatpush.bf16.msra.mxu0 %v458
    %2434 = vmatpush.bf16.msra.mxu0 %v454
    %2435 = vmatpush.bf16.msra.mxu0 %v450
    %2436 = vmatpush.bf16.msra.mxu0 %v446
    %2437 = vmatpush.bf16.msra.mxu0 %v442
    %2438 = vmatpush.bf16.msra.mxu0 %v438
    %2439 = vmatmul.bf16.gmra.mxu0 %v2215
    %v2440 = vpop.f32.mrf.mxu0
    %v2441 = vadd.f32 0.0, %v2440
    %v2442 = vpop.f32.mrf.mxu0
    %2443 = vdwg.mxu0
    %2444 = vmatpush.bf16.msra.mxu0 %v467
    %2445 = vmatpush.bf16.msra.mxu0 %v463
    %2446 = vmatpush.bf16.msra.mxu0 %v459
    %2447 = vmatpush.bf16.msra.mxu0 %v455
    %2448 = vmatpush.bf16.msra.mxu0 %v451
    %2449 = vmatpush.bf16.msra.mxu0 %v447
    %2450 = vmatpush.bf16.msra.mxu0 %v443
    %2451 = vmatpush.bf16.msra.mxu0 %v439
    %2452 = vmatmul.bf16.gmra.mxu0 %v2215
    %v2453 = vpop.f32.mrf.mxu0
    %v2454 = vadd.f32 0.0, %v2453
    %v2455 = vpop.f32.mrf.mxu0
    %2456 = vdwg.mxu0
    %v2458 = vsel %vm632, %v2404, 0
    %2460 = vmatpush.bf16.msra.mxu0 0
    %2461 = vmatpush.bf16.msra.mxu0 0
    %2462 = vmatpush.bf16.msra.mxu0 0
    %2463 = vmatpush.bf16.msra.mxu0 0
    %2464 = vmatpush.bf16.msra.mxu0 %v612
    %2465 = vmatpush.bf16.msra.mxu0 %v608
    %2466 = vmatpush.bf16.msra.mxu0 %v604
    %2467 = vmatpush.bf16.msra.mxu0 %v600
    %2468 = vmatmul.bf16.gmra.mxu0 %v2458
    %v2469 = vpop.f32.mrf.mxu0
    %v2470 = vadd.f32 %v2415, %v2469
    %v2471 = vpop.f32.mrf.mxu0
    %2472 = vdwg.mxu0
    %2473 = vmatpush.bf16.msra.mxu0 0
    %2474 = vmatpush.bf16.msra.mxu0 0
    %2475 = vmatpush.bf16.msra.mxu0 0
    %2476 = vmatpush.bf16.msra.mxu0 0
    %2477 = vmatpush.bf16.msra.mxu0 %v613
    %2478 = vmatpush.bf16.msra.mxu0 %v609
    %2479 = vmatpush.bf16.msra.mxu0 %v605
    %2480 = vmatpush.bf16.msra.mxu0 %v601
    %2481 = vmatmul.bf16.gmra.mxu0 %v2458
    %v2482 = vpop.f32.mrf.mxu0
    %v2483 = vadd.f32 %v2428, %v2482
    %v2484 = vpop.f32.mrf.mxu0
    %2485 = vdwg.mxu0
    %2486 = vmatpush.bf16.msra.mxu0 0
    %2487 = vmatpush.bf16.msra.mxu0 0
    %2488 = vmatpush.bf16.msra.mxu0 0
    %2489 = vmatpush.bf16.msra.mxu0 0
    %2490 = vmatpush.bf16.msra.mxu0 %v614
    %2491 = vmatpush.bf16.msra.mxu0 %v610
    %2492 = vmatpush.bf16.msra.mxu0 %v606
    %2493 = vmatpush.bf16.msra.mxu0 %v602
    %2494 = vmatmul.bf16.gmra.mxu0 %v2458
    %v2495 = vpop.f32.mrf.mxu0
    %v2496 = vadd.f32 %v2441, %v2495
    %v2497 = vpop.f32.mrf.mxu0
    %2498 = vdwg.mxu0
    %2499 = vmatpush.bf16.msra.mxu0 0
    %2500 = vmatpush.bf16.msra.mxu0 0
    %2501 = vmatpush.bf16.msra.mxu0 0
    %2502 = vmatpush.bf16.msra.mxu0 0
    %2503 = vmatpush.bf16.msra.mxu0 %v615
    %2504 = vmatpush.bf16.msra.mxu0 %v611
    %2505 = vmatpush.bf16.msra.mxu0 %v607
    %2506 = vmatpush.bf16.msra.mxu0 %v603
    %2507 = vmatmul.bf16.gmra.mxu0 %v2458
    %v2508 = vpop.f32.mrf.mxu0
    %v2509 = vadd.f32 %v2454, %v2508
    %v2510 = vpop.f32.mrf.mxu0
    %2511 = vdwg.mxu0
    %v2512 = vadd.f32 %v2470, %v310
    %v2513 = vadd.f32 %v2483, %v311
    %v2514 = vadd.f32 %v2496, %v312
    %v2515 = vadd.f32 %v2509, %v313
    %v2516 = vxor.u32 %v2512, 2147483648
    %v2517 = vxor.u32 %v2513, 2147483648
    %v2518 = vxor.u32 %v2514, 2147483648
    %v2519 = vmul.f32 %v2516, 1.442695
    %v2520 = vpow.pop %v2519
    %v2521 = vmul.f32 %v2517, 1.442695
    %v2522 = vpow.pop %v2521
    %v2523 = vmul.f32 %v2518, 1.442695
    %v2524 = vpow.pop %v2523
    %v2525 = vadd.f32 %v2520, 1.0
    %v2526 = vadd.f32 %v2522, 1.0
    %v2527 = vadd.f32 %v2524, 1.0
    %v2528 = vrcp.pop %v2525
    %v2529 = vmul.f32 %v2525, %v2528
    %v2530 = vsub.f32 1.0, %v2529
    %v2531 = vmul.f32 %v2528, %v2530
    %v2532 = vadd.f32 %v2528, %v2531
    %vm2533 = vweird.f32 %v2525
    %vm2534 = vweird.f32 %v2528
    %vm2535 = vmor %vm2533, %vm2534
    %v2536 = vsel %vm2535, %v2528, %v2532
    %v2537 = vand.u32 2147483647, %v2525
    %vm2538 = vcmp.eq.f32.partialorder %v2537, 8.507059e+37
    %v2539 = vand.u32 %v2525, 2147483648
    %v2540 = vor.u32 1.1754944e-38, %v2539
    %v2541 = vsel %vm2538, %v2540, %v2536
    %v2542 = vmul.f32 1.0, %v2541
    %v2543 = vrcp.pop %v2526
    %v2544 = vmul.f32 %v2526, %v2543
    %v2545 = vsub.f32 1.0, %v2544
    %v2546 = vmul.f32 %v2543, %v2545
    %v2547 = vadd.f32 %v2543, %v2546
    %vm2548 = vweird.f32 %v2526
    %vm2549 = vweird.f32 %v2543
    %vm2550 = vmor %vm2548, %vm2549
    %v2551 = vsel %vm2550, %v2543, %v2547
    %v2552 = vand.u32 2147483647, %v2526
    %vm2553 = vcmp.eq.f32.partialorder %v2552, 8.507059e+37
    %v2554 = vand.u32 %v2526, 2147483648
    %v2555 = vor.u32 1.1754944e-38, %v2554
    %v2556 = vsel %vm2553, %v2555, %v2551
    %v2557 = vmul.f32 1.0, %v2556
    %v2558 = vrcp.pop %v2527
    %v2559 = vmul.f32 %v2527, %v2558
    %v2560 = vsub.f32 1.0, %v2559
    %v2561 = vmul.f32 %v2558, %v2560
    %v2562 = vadd.f32 %v2558, %v2561
    %vm2563 = vweird.f32 %v2527
    %vm2564 = vweird.f32 %v2558
    %vm2565 = vmor %vm2563, %vm2564
    %v2566 = vsel %vm2565, %v2558, %v2562
    %v2567 = vand.u32 2147483647, %v2527
    %vm2568 = vcmp.eq.f32.partialorder %v2567, 8.507059e+37
    %v2569 = vand.u32 %v2527, 2147483648
    %v2570 = vor.u32 1.1754944e-38, %v2569
    %v2571 = vsel %vm2568, %v2570, %v2566
    %v2572 = vmul.f32 1.0, %v2571
    %v2573 = vtanh.pop %v2515
    %v2574 = vmul.f32 %v2557, %v2212
    %v2575 = vmul.f32 %v2542, %v2573
    %v2576 = vadd.f32 %v2574, %v2575
    %v2577 = vtanh.pop %v2576
    %v2578 = vmul.f32 %v2572, %v2577
    %v2579 = vpack.c.bf16 %v2578, %v2578
    %2580 = vmatpush.bf16.msra.mxu0 %v881
    %2581 = vmatpush.bf16.msra.mxu0 %v877
    %2582 = vmatpush.bf16.msra.mxu0 %v873
    %2583 = vmatpush.bf16.msra.mxu0 %v869
    %2584 = vmatpush.bf16.msra.mxu0 %v865
    %2585 = vmatpush.bf16.msra.mxu0 %v861
    %2586 = vmatpush.bf16.msra.mxu0 %v857
    %2587 = vmatpush.bf16.msra.mxu0 %v853
    %2588 = vmatmul.bf16.gmra.mxu0 %v2387
    %v2589 = vpop.f32.mrf.mxu0
    %v2590 = vadd.f32 0.0, %v2589
    %v2591 = vpop.f32.mrf.mxu0
    %2592 = vdwg.mxu0
    %2593 = vmatpush.bf16.msra.mxu0 %v882
    %2594 = vmatpush.bf16.msra.mxu0 %v878
    %2595 = vmatpush.bf16.msra.mxu0 %v874
    %2596 = vmatpush.bf16.msra.mxu0 %v870
    %2597 = vmatpush.bf16.msra.mxu0 %v866
    %2598 = vmatpush.bf16.msra.mxu0 %v862
    %2599 = vmatpush.bf16.msra.mxu0 %v858
    %2600 = vmatpush.bf16.msra.mxu0 %v854
    %2601 = vmatmul.bf16.gmra.mxu0 %v2387
    %v2602 = vpop.f32.mrf.mxu0
    %v2603 = vadd.f32 0.0, %v2602
    %v2604 = vpop.f32.mrf.mxu0
    %2605 = vdwg.mxu0
    %2606 = vmatpush.bf16.msra.mxu0 %v883
    %2607 = vmatpush.bf16.msra.mxu0 %v879
    %2608 = vmatpush.bf16.msra.mxu0 %v875
    %2609 = vmatpush.bf16.msra.mxu0 %v871
    %2610 = vmatpush.bf16.msra.mxu0 %v867
    %2611 = vmatpush.bf16.msra.mxu0 %v863
    %2612 = vmatpush.bf16.msra.mxu0 %v859
    %2613 = vmatpush.bf16.msra.mxu0 %v855
    %2614 = vmatmul.bf16.gmra.mxu0 %v2387
    %v2615 = vpop.f32.mrf.mxu0
    %v2616 = vadd.f32 0.0, %v2615
    %v2617 = vpop.f32.mrf.mxu0
    %2618 = vdwg.mxu0
    %2619 = vmatpush.bf16.msra.mxu0 %v884
    %2620 = vmatpush.bf16.msra.mxu0 %v880
    %2621 = vmatpush.bf16.msra.mxu0 %v876
    %2622 = vmatpush.bf16.msra.mxu0 %v872
    %2623 = vmatpush.bf16.msra.mxu0 %v868
    %2624 = vmatpush.bf16.msra.mxu0 %v864
    %2625 = vmatpush.bf16.msra.mxu0 %v860
    %2626 = vmatpush.bf16.msra.mxu0 %v856
    %2627 = vmatmul.bf16.gmra.mxu0 %v2387
    %v2628 = vpop.f32.mrf.mxu0
    %v2629 = vadd.f32 0.0, %v2628
    %v2630 = vpop.f32.mrf.mxu0
    %2631 = vdwg.mxu0
    %2632 = vmatpush.bf16.msra.mxu0 %v1093
    %2633 = vmatpush.bf16.msra.mxu0 %v1089
    %2634 = vmatpush.bf16.msra.mxu0 %v1085
    %2635 = vmatpush.bf16.msra.mxu0 %v1081
    %2636 = vmatpush.bf16.msra.mxu0 %v1077
    %2637 = vmatpush.bf16.msra.mxu0 %v1073
    %2638 = vmatpush.bf16.msra.mxu0 %v1069
    %2639 = vmatpush.bf16.msra.mxu0 %v1065
    %2640 = vmatmul.bf16.gmra.mxu0 %v2579
    %v2641 = vpop.f32.mrf.mxu0
    %v2642 = vadd.f32 %v2590, %v2641
    %v2643 = vpop.f32.mrf.mxu0
    %2644 = vdwg.mxu0
    %2645 = vmatpush.bf16.msra.mxu0 %v1094
    %2646 = vmatpush.bf16.msra.mxu0 %v1090
    %2647 = vmatpush.bf16.msra.mxu0 %v1086
    %2648 = vmatpush.bf16.msra.mxu0 %v1082
    %2649 = vmatpush.bf16.msra.mxu0 %v1078
    %2650 = vmatpush.bf16.msra.mxu0 %v1074
    %2651 = vmatpush.bf16.msra.mxu0 %v1070
    %2652 = vmatpush.bf16.msra.mxu0 %v1066
    %2653 = vmatmul.bf16.gmra.mxu0 %v2579
    %v2654 = vpop.f32.mrf.mxu0
    %v2655 = vadd.f32 %v2603, %v2654
    %v2656 = vpop.f32.mrf.mxu0
    %2657 = vdwg.mxu0
    %2658 = vmatpush.bf16.msra.mxu0 %v1095
    %2659 = vmatpush.bf16.msra.mxu0 %v1091
    %2660 = vmatpush.bf16.msra.mxu0 %v1087
    %2661 = vmatpush.bf16.msra.mxu0 %v1083
    %2662 = vmatpush.bf16.msra.mxu0 %v1079
    %2663 = vmatpush.bf16.msra.mxu0 %v1075
    %2664 = vmatpush.bf16.msra.mxu0 %v1071
    %2665 = vmatpush.bf16.msra.mxu0 %v1067
    %2666 = vmatmul.bf16.gmra.mxu0 %v2579
    %v2667 = vpop.f32.mrf.mxu0
    %v2668 = vadd.f32 %v2616, %v2667
    %v2669 = vpop.f32.mrf.mxu0
    %2670 = vdwg.mxu0
    %2671 = vmatpush.bf16.msra.mxu0 %v1096
    %2672 = vmatpush.bf16.msra.mxu0 %v1092
    %2673 = vmatpush.bf16.msra.mxu0 %v1088
    %2674 = vmatpush.bf16.msra.mxu0 %v1084
    %2675 = vmatpush.bf16.msra.mxu0 %v1080
    %2676 = vmatpush.bf16.msra.mxu0 %v1076
    %2677 = vmatpush.bf16.msra.mxu0 %v1072
    %2678 = vmatpush.bf16.msra.mxu0 %v1068
    %2679 = vmatmul.bf16.gmra.mxu0 %v2579
    %v2680 = vpop.f32.mrf.mxu0
    %v2681 = vadd.f32 %v2629, %v2680
    %v2682 = vpop.f32.mrf.mxu0
    %2683 = vdwg.mxu0
    %v2684 = vadd.f32 %v2642, %v320
    %v2685 = vadd.f32 %v2655, %v321
    %v2686 = vadd.f32 %v2668, %v322
    %v2687 = vadd.f32 %v2681, %v323
    %v2688 = vxor.u32 %v2684, 2147483648
    %v2689 = vxor.u32 %v2685, 2147483648
    %v2690 = vxor.u32 %v2686, 2147483648
    %v2691 = vmul.f32 %v2688, 1.442695
    %v2692 = vpow.pop %v2691
    %v2693 = vmul.f32 %v2689, 1.442695
    %v2694 = vpow.pop %v2693
    %v2695 = vmul.f32 %v2690, 1.442695
    %v2696 = vpow.pop %v2695
    %v2697 = vadd.f32 %v2692, 1.0
    %v2698 = vadd.f32 %v2694, 1.0
    %v2699 = vadd.f32 %v2696, 1.0
    %v2700 = vrcp.pop %v2697
    %v2701 = vmul.f32 %v2697, %v2700
    %v2702 = vsub.f32 1.0, %v2701
    %v2703 = vmul.f32 %v2700, %v2702
    %v2704 = vadd.f32 %v2700, %v2703
    %vm2705 = vweird.f32 %v2697
    %vm2706 = vweird.f32 %v2700
    %vm2707 = vmor %vm2705, %vm2706
    %v2708 = vsel %vm2707, %v2700, %v2704
    %v2709 = vand.u32 2147483647, %v2697
    %vm2710 = vcmp.eq.f32.partialorder %v2709, 8.507059e+37
    %v2711 = vand.u32 %v2697, 2147483648
    %v2712 = vor.u32 1.1754944e-38, %v2711
    %v2713 = vsel %vm2710, %v2712, %v2708
    %v2714 = vmul.f32 1.0, %v2713
    %v2715 = vrcp.pop %v2698
    %v2716 = vmul.f32 %v2698, %v2715
    %v2717 = vsub.f32 1.0, %v2716
    %v2718 = vmul.f32 %v2715, %v2717
    %v2719 = vadd.f32 %v2715, %v2718
    %vm2720 = vweird.f32 %v2698
    %vm2721 = vweird.f32 %v2715
    %vm2722 = vmor %vm2720, %vm2721
    %v2723 = vsel %vm2722, %v2715, %v2719
    %v2724 = vand.u32 2147483647, %v2698
    %vm2725 = vcmp.eq.f32.partialorder %v2724, 8.507059e+37
    %v2726 = vand.u32 %v2698, 2147483648
    %v2727 = vor.u32 1.1754944e-38, %v2726
    %v2728 = vsel %vm2725, %v2727, %v2723
    %v2729 = vmul.f32 1.0, %v2728
    %v2730 = vrcp.pop %v2699
    %v2731 = vmul.f32 %v2699, %v2730
    %v2732 = vsub.f32 1.0, %v2731
    %v2733 = vmul.f32 %v2730, %v2732
    %v2734 = vadd.f32 %v2730, %v2733
    %vm2735 = vweird.f32 %v2699
    %vm2736 = vweird.f32 %v2730
    %vm2737 = vmor %vm2735, %vm2736
    %v2738 = vsel %vm2737, %v2730, %v2734
    %v2739 = vand.u32 2147483647, %v2699
    %vm2740 = vcmp.eq.f32.partialorder %v2739, 8.507059e+37
    %v2741 = vand.u32 %v2699, 2147483648
    %v2742 = vor.u32 1.1754944e-38, %v2741
    %v2743 = vsel %vm2740, %v2742, %v2738
    %v2744 = vmul.f32 1.0, %v2743
    %v2745 = vtanh.pop %v2687
    %v2746 = vmul.f32 %v2729, %v2384
    %v2747 = vmul.f32 %v2714, %v2745
    %v2748 = vadd.f32 %v2746, %v2747
    %v2749 = vtanh.pop %v2748
    %v2750 = vmul.f32 %v2744, %v2749
    %v2751 = vpack.c.bf16 %v2750, %v2750
    %2752 = vmatpush.bf16.msra.mxu0 %v1288
    %2753 = vmatpush.bf16.msra.mxu0 %v1287
    %2754 = vmatpush.bf16.msra.mxu0 %v1286
    %2755 = vmatpush.bf16.msra.mxu0 %v1285
    %2756 = vmatpush.bf16.msra.mxu0 %v1284
    %2757 = vmatpush.bf16.msra.mxu0 %v1283
    %2758 = vmatpush.bf16.msra.mxu0 %v1282
    %2759 = vmatpush.bf16.msra.mxu0 %v1281
    %2760 = vmatmul.bf16.gmra.mxu0 %v2751
    %v2761 = vpop.f32.mrf.mxu0
    %v2762 = vadd.f32 %v330, %v2761
    %v2763 = vpop.f32.mrf.mxu0
    %2764 = vdwg.mxu0
    %s2765 = scalar_lea.vmem [#allocation17], 8
    %2766 = vst [vmem:[%s2765] sm:$0x3] %v2762
    %s2767 = scalar_lea.vmem [#allocation2], 5
    %v2768 = vld [vmem:[%s2767] sm:$0x1]
    %2769 = vmatpush.bf16.msra.mxu0 %v464
    %2770 = vmatpush.bf16.msra.mxu0 %v460
    %2771 = vmatpush.bf16.msra.mxu0 %v456
    %2772 = vmatpush.bf16.msra.mxu0 %v452
    %2773 = vmatpush.bf16.msra.mxu0 %v448
    %2774 = vmatpush.bf16.msra.mxu0 %v444
    %2775 = vmatpush.bf16.msra.mxu0 %v440
    %2776 = vmatpush.bf16.msra.mxu0 %v436
    %2777 = vmatmul.bf16.gmra.mxu0 %v2579
    %v2778 = vpop.f32.mrf.mxu0
    %v2779 = vadd.f32 0.0, %v2778
    %v2780 = vpop.f32.mrf.mxu0
    %2781 = vdwg.mxu0
    %2782 = vmatpush.bf16.msra.mxu0 %v465
    %2783 = vmatpush.bf16.msra.mxu0 %v461
    %2784 = vmatpush.bf16.msra.mxu0 %v457
    %2785 = vmatpush.bf16.msra.mxu0 %v453
    %2786 = vmatpush.bf16.msra.mxu0 %v449
    %2787 = vmatpush.bf16.msra.mxu0 %v445
    %2788 = vmatpush.bf16.msra.mxu0 %v441
    %2789 = vmatpush.bf16.msra.mxu0 %v437
    %2790 = vmatmul.bf16.gmra.mxu0 %v2579
    %v2791 = vpop.f32.mrf.mxu0
    %v2792 = vadd.f32 0.0, %v2791
    %v2793 = vpop.f32.mrf.mxu0
    %2794 = vdwg.mxu0
    %2795 = vmatpush.bf16.msra.mxu0 %v466
    %2796 = vmatpush.bf16.msra.mxu0 %v462
    %2797 = vmatpush.bf16.msra.mxu0 %v458
    %2798 = vmatpush.bf16.msra.mxu0 %v454
    %2799 = vmatpush.bf16.msra.mxu0 %v450
    %2800 = vmatpush.bf16.msra.mxu0 %v446
    %2801 = vmatpush.bf16.msra.mxu0 %v442
    %2802 = vmatpush.bf16.msra.mxu0 %v438
    %2803 = vmatmul.bf16.gmra.mxu0 %v2579
    %v2804 = vpop.f32.mrf.mxu0
    %v2805 = vadd.f32 0.0, %v2804
    %v2806 = vpop.f32.mrf.mxu0
    %2807 = vdwg.mxu0
    %2808 = vmatpush.bf16.msra.mxu0 %v467
    %2809 = vmatpush.bf16.msra.mxu0 %v463
    %2810 = vmatpush.bf16.msra.mxu0 %v459
    %2811 = vmatpush.bf16.msra.mxu0 %v455
    %2812 = vmatpush.bf16.msra.mxu0 %v451
    %2813 = vmatpush.bf16.msra.mxu0 %v447
    %2814 = vmatpush.bf16.msra.mxu0 %v443
    %2815 = vmatpush.bf16.msra.mxu0 %v439
    %2816 = vmatmul.bf16.gmra.mxu0 %v2579
    %v2817 = vpop.f32.mrf.mxu0
    %v2818 = vadd.f32 0.0, %v2817
    %v2819 = vpop.f32.mrf.mxu0
    %2820 = vdwg.mxu0
    %v2822 = vsel %vm632, %v2768, 0
    %2824 = vmatpush.bf16.msra.mxu0 0
    %2825 = vmatpush.bf16.msra.mxu0 0
    %2826 = vmatpush.bf16.msra.mxu0 0
    %2827 = vmatpush.bf16.msra.mxu0 0
    %2828 = vmatpush.bf16.msra.mxu0 %v612
    %2829 = vmatpush.bf16.msra.mxu0 %v608
    %2830 = vmatpush.bf16.msra.mxu0 %v604
    %2831 = vmatpush.bf16.msra.mxu0 %v600
    %2832 = vmatmul.bf16.gmra.mxu0 %v2822
    %v2833 = vpop.f32.mrf.mxu0
    %v2834 = vadd.f32 %v2779, %v2833
    %v2835 = vpop.f32.mrf.mxu0
    %2836 = vdwg.mxu0
    %2837 = vmatpush.bf16.msra.mxu0 0
    %2838 = vmatpush.bf16.msra.mxu0 0
    %2839 = vmatpush.bf16.msra.mxu0 0
    %2840 = vmatpush.bf16.msra.mxu0 0
    %2841 = vmatpush.bf16.msra.mxu0 %v613
    %2842 = vmatpush.bf16.msra.mxu0 %v609
    %2843 = vmatpush.bf16.msra.mxu0 %v605
    %2844 = vmatpush.bf16.msra.mxu0 %v601
    %2845 = vmatmul.bf16.gmra.mxu0 %v2822
    %v2846 = vpop.f32.mrf.mxu0
    %v2847 = vadd.f32 %v2792, %v2846
    %v2848 = vpop.f32.mrf.mxu0
    %2849 = vdwg.mxu0
    %2850 = vmatpush.bf16.msra.mxu0 0
    %2851 = vmatpush.bf16.msra.mxu0 0
    %2852 = vmatpush.bf16.msra.mxu0 0
    %2853 = vmatpush.bf16.msra.mxu0 0
    %2854 = vmatpush.bf16.msra.mxu0 %v614
    %2855 = vmatpush.bf16.msra.mxu0 %v610
    %2856 = vmatpush.bf16.msra.mxu0 %v606
    %2857 = vmatpush.bf16.msra.mxu0 %v602
    %2858 = vmatmul.bf16.gmra.mxu0 %v2822
    %v2859 = vpop.f32.mrf.mxu0
    %v2860 = vadd.f32 %v2805, %v2859
    %v2861 = vpop.f32.mrf.mxu0
    %2862 = vdwg.mxu0
    %2863 = vmatpush.bf16.msra.mxu0 0
    %2864 = vmatpush.bf16.msra.mxu0 0
    %2865 = vmatpush.bf16.msra.mxu0 0
    %2866 = vmatpush.bf16.msra.mxu0 0
    %2867 = vmatpush.bf16.msra.mxu0 %v615
    %2868 = vmatpush.bf16.msra.mxu0 %v611
    %2869 = vmatpush.bf16.msra.mxu0 %v607
    %2870 = vmatpush.bf16.msra.mxu0 %v603
    %2871 = vmatmul.bf16.gmra.mxu0 %v2822
    %v2872 = vpop.f32.mrf.mxu0
    %v2873 = vadd.f32 %v2818, %v2872
    %v2874 = vpop.f32.mrf.mxu0
    %2875 = vdwg.mxu0
    %v2876 = vadd.f32 %v2834, %v310
    %v2877 = vadd.f32 %v2847, %v311
    %v2878 = vadd.f32 %v2860, %v312
    %v2879 = vadd.f32 %v2873, %v313
    %v2880 = vxor.u32 %v2876, 2147483648
    %v2881 = vxor.u32 %v2877, 2147483648
    %v2882 = vxor.u32 %v2878, 2147483648
    %v2883 = vmul.f32 %v2880, 1.442695
    %v2884 = vpow.pop %v2883
    %v2885 = vmul.f32 %v2881, 1.442695
    %v2886 = vpow.pop %v2885
    %v2887 = vmul.f32 %v2882, 1.442695
    %v2888 = vpow.pop %v2887
    %v2889 = vadd.f32 %v2884, 1.0
    %v2890 = vadd.f32 %v2886, 1.0
    %v2891 = vadd.f32 %v2888, 1.0
    %v2892 = vrcp.pop %v2889
    %v2893 = vmul.f32 %v2889, %v2892
    %v2894 = vsub.f32 1.0, %v2893
    %v2895 = vmul.f32 %v2892, %v2894
    %v2896 = vadd.f32 %v2892, %v2895
    %vm2897 = vweird.f32 %v2889
    %vm2898 = vweird.f32 %v2892
    %vm2899 = vmor %vm2897, %vm2898
    %v2900 = vsel %vm2899, %v2892, %v2896
    %v2901 = vand.u32 2147483647, %v2889
    %vm2902 = vcmp.eq.f32.partialorder %v2901, 8.507059e+37
    %v2903 = vand.u32 %v2889, 2147483648
    %v2904 = vor.u32 1.1754944e-38, %v2903
    %v2905 = vsel %vm2902, %v2904, %v2900
    %v2906 = vmul.f32 1.0, %v2905
    %v2907 = vrcp.pop %v2890
    %v2908 = vmul.f32 %v2890, %v2907
    %v2909 = vsub.f32 1.0, %v2908
    %v2910 = vmul.f32 %v2907, %v2909
    %v2911 = vadd.f32 %v2907, %v2910
    %vm2912 = vweird.f32 %v2890
    %vm2913 = vweird.f32 %v2907
    %vm2914 = vmor %vm2912, %vm2913
    %v2915 = vsel %vm2914, %v2907, %v2911
    %v2916 = vand.u32 2147483647, %v2890
    %vm2917 = vcmp.eq.f32.partialorder %v2916, 8.507059e+37
    %v2918 = vand.u32 %v2890, 2147483648
    %v2919 = vor.u32 1.1754944e-38, %v2918
    %v2920 = vsel %vm2917, %v2919, %v2915
    %v2921 = vmul.f32 1.0, %v2920
    %v2922 = vrcp.pop %v2891
    %v2923 = vmul.f32 %v2891, %v2922
    %v2924 = vsub.f32 1.0, %v2923
    %v2925 = vmul.f32 %v2922, %v2924
    %v2926 = vadd.f32 %v2922, %v2925
    %vm2927 = vweird.f32 %v2891
    %vm2928 = vweird.f32 %v2922
    %vm2929 = vmor %vm2927, %vm2928
    %v2930 = vsel %vm2929, %v2922, %v2926
    %v2931 = vand.u32 2147483647, %v2891
    %vm2932 = vcmp.eq.f32.partialorder %v2931, 8.507059e+37
    %v2933 = vand.u32 %v2891, 2147483648
    %v2934 = vor.u32 1.1754944e-38, %v2933
    %v2935 = vsel %vm2932, %v2934, %v2930
    %v2936 = vmul.f32 1.0, %v2935
    %v2937 = vtanh.pop %v2879
    %v2938 = vmul.f32 %v2921, %v2576
    %v2939 = vmul.f32 %v2906, %v2937
    %v2940 = vadd.f32 %v2938, %v2939
    %v2941 = vtanh.pop %v2940
    %v2942 = vmul.f32 %v2936, %v2941
    %v2943 = vpack.c.bf16 %v2942, %v2942
    %2944 = vmatpush.bf16.msra.mxu0 %v881
    %2945 = vmatpush.bf16.msra.mxu0 %v877
    %2946 = vmatpush.bf16.msra.mxu0 %v873
    %2947 = vmatpush.bf16.msra.mxu0 %v869
    %2948 = vmatpush.bf16.msra.mxu0 %v865
    %2949 = vmatpush.bf16.msra.mxu0 %v861
    %2950 = vmatpush.bf16.msra.mxu0 %v857
    %2951 = vmatpush.bf16.msra.mxu0 %v853
    %2952 = vmatmul.bf16.gmra.mxu0 %v2751
    %v2953 = vpop.f32.mrf.mxu0
    %v2954 = vadd.f32 0.0, %v2953
    %v2955 = vpop.f32.mrf.mxu0
    %2956 = vdwg.mxu0
    %2957 = vmatpush.bf16.msra.mxu0 %v882
    %2958 = vmatpush.bf16.msra.mxu0 %v878
    %2959 = vmatpush.bf16.msra.mxu0 %v874
    %2960 = vmatpush.bf16.msra.mxu0 %v870
    %2961 = vmatpush.bf16.msra.mxu0 %v866
    %2962 = vmatpush.bf16.msra.mxu0 %v862
    %2963 = vmatpush.bf16.msra.mxu0 %v858
    %2964 = vmatpush.bf16.msra.mxu0 %v854
    %2965 = vmatmul.bf16.gmra.mxu0 %v2751
    %v2966 = vpop.f32.mrf.mxu0
    %v2967 = vadd.f32 0.0, %v2966
    %v2968 = vpop.f32.mrf.mxu0
    %2969 = vdwg.mxu0
    %2970 = vmatpush.bf16.msra.mxu0 %v883
    %2971 = vmatpush.bf16.msra.mxu0 %v879
    %2972 = vmatpush.bf16.msra.mxu0 %v875
    %2973 = vmatpush.bf16.msra.mxu0 %v871
    %2974 = vmatpush.bf16.msra.mxu0 %v867
    %2975 = vmatpush.bf16.msra.mxu0 %v863
    %2976 = vmatpush.bf16.msra.mxu0 %v859
    %2977 = vmatpush.bf16.msra.mxu0 %v855
    %2978 = vmatmul.bf16.gmra.mxu0 %v2751
    %v2979 = vpop.f32.mrf.mxu0
    %v2980 = vadd.f32 0.0, %v2979
    %v2981 = vpop.f32.mrf.mxu0
    %2982 = vdwg.mxu0
    %2983 = vmatpush.bf16.msra.mxu0 %v884
    %2984 = vmatpush.bf16.msra.mxu0 %v880
    %2985 = vmatpush.bf16.msra.mxu0 %v876
    %2986 = vmatpush.bf16.msra.mxu0 %v872
    %2987 = vmatpush.bf16.msra.mxu0 %v868
    %2988 = vmatpush.bf16.msra.mxu0 %v864
    %2989 = vmatpush.bf16.msra.mxu0 %v860
    %2990 = vmatpush.bf16.msra.mxu0 %v856
    %2991 = vmatmul.bf16.gmra.mxu0 %v2751
    %v2992 = vpop.f32.mrf.mxu0
    %v2993 = vadd.f32 0.0, %v2992
    %v2994 = vpop.f32.mrf.mxu0
    %2995 = vdwg.mxu0
    %2996 = vmatpush.bf16.msra.mxu0 %v1093
    %2997 = vmatpush.bf16.msra.mxu0 %v1089
    %2998 = vmatpush.bf16.msra.mxu0 %v1085
    %2999 = vmatpush.bf16.msra.mxu0 %v1081
    %3000 = vmatpush.bf16.msra.mxu0 %v1077
    %3001 = vmatpush.bf16.msra.mxu0 %v1073
    %3002 = vmatpush.bf16.msra.mxu0 %v1069
    %3003 = vmatpush.bf16.msra.mxu0 %v1065
    %3004 = vmatmul.bf16.gmra.mxu0 %v2943
    %v3005 = vpop.f32.mrf.mxu0
    %v3006 = vadd.f32 %v2954, %v3005
    %v3007 = vpop.f32.mrf.mxu0
    %3008 = vdwg.mxu0
    %3009 = vmatpush.bf16.msra.mxu0 %v1094
    %3010 = vmatpush.bf16.msra.mxu0 %v1090
    %3011 = vmatpush.bf16.msra.mxu0 %v1086
    %3012 = vmatpush.bf16.msra.mxu0 %v1082
    %3013 = vmatpush.bf16.msra.mxu0 %v1078
    %3014 = vmatpush.bf16.msra.mxu0 %v1074
    %3015 = vmatpush.bf16.msra.mxu0 %v1070
    %3016 = vmatpush.bf16.msra.mxu0 %v1066
    %3017 = vmatmul.bf16.gmra.mxu0 %v2943
    %v3018 = vpop.f32.mrf.mxu0
    %v3019 = vadd.f32 %v2967, %v3018
    %v3020 = vpop.f32.mrf.mxu0
    %3021 = vdwg.mxu0
    %3022 = vmatpush.bf16.msra.mxu0 %v1095
    %3023 = vmatpush.bf16.msra.mxu0 %v1091
    %3024 = vmatpush.bf16.msra.mxu0 %v1087
    %3025 = vmatpush.bf16.msra.mxu0 %v1083
    %3026 = vmatpush.bf16.msra.mxu0 %v1079
    %3027 = vmatpush.bf16.msra.mxu0 %v1075
    %3028 = vmatpush.bf16.msra.mxu0 %v1071
    %3029 = vmatpush.bf16.msra.mxu0 %v1067
    %3030 = vmatmul.bf16.gmra.mxu0 %v2943
    %v3031 = vpop.f32.mrf.mxu0
    %v3032 = vadd.f32 %v2980, %v3031
    %v3033 = vpop.f32.mrf.mxu0
    %3034 = vdwg.mxu0
    %3035 = vmatpush.bf16.msra.mxu0 %v1096
    %3036 = vmatpush.bf16.msra.mxu0 %v1092
    %3037 = vmatpush.bf16.msra.mxu0 %v1088
    %3038 = vmatpush.bf16.msra.mxu0 %v1084
    %3039 = vmatpush.bf16.msra.mxu0 %v1080
    %3040 = vmatpush.bf16.msra.mxu0 %v1076
    %3041 = vmatpush.bf16.msra.mxu0 %v1072
    %3042 = vmatpush.bf16.msra.mxu0 %v1068
    %3043 = vmatmul.bf16.gmra.mxu0 %v2943
    %v3044 = vpop.f32.mrf.mxu0
    %v3045 = vadd.f32 %v2993, %v3044
    %v3046 = vpop.f32.mrf.mxu0
    %3047 = vdwg.mxu0
    %v3048 = vadd.f32 %v3006, %v320
    %v3049 = vadd.f32 %v3019, %v321
    %v3050 = vadd.f32 %v3032, %v322
    %v3051 = vadd.f32 %v3045, %v323
    %v3052 = vxor.u32 %v3048, 2147483648
    %v3053 = vxor.u32 %v3049, 2147483648
    %v3054 = vxor.u32 %v3050, 2147483648
    %v3055 = vmul.f32 %v3052, 1.442695
    %v3056 = vpow.pop %v3055
    %v3057 = vmul.f32 %v3053, 1.442695
    %v3058 = vpow.pop %v3057
    %v3059 = vmul.f32 %v3054, 1.442695
    %v3060 = vpow.pop %v3059
    %v3061 = vadd.f32 %v3056, 1.0
    %v3062 = vadd.f32 %v3058, 1.0
    %v3063 = vadd.f32 %v3060, 1.0
    %v3064 = vrcp.pop %v3061
    %v3065 = vmul.f32 %v3061, %v3064
    %v3066 = vsub.f32 1.0, %v3065
    %v3067 = vmul.f32 %v3064, %v3066
    %v3068 = vadd.f32 %v3064, %v3067
    %vm3069 = vweird.f32 %v3061
    %vm3070 = vweird.f32 %v3064
    %vm3071 = vmor %vm3069, %vm3070
    %v3072 = vsel %vm3071, %v3064, %v3068
    %v3073 = vand.u32 2147483647, %v3061
    %vm3074 = vcmp.eq.f32.partialorder %v3073, 8.507059e+37
    %v3075 = vand.u32 %v3061, 2147483648
    %v3076 = vor.u32 1.1754944e-38, %v3075
    %v3077 = vsel %vm3074, %v3076, %v3072
    %v3078 = vmul.f32 1.0, %v3077
    %v3079 = vrcp.pop %v3062
    %v3080 = vmul.f32 %v3062, %v3079
    %v3081 = vsub.f32 1.0, %v3080
    %v3082 = vmul.f32 %v3079, %v3081
    %v3083 = vadd.f32 %v3079, %v3082
    %vm3084 = vweird.f32 %v3062
    %vm3085 = vweird.f32 %v3079
    %vm3086 = vmor %vm3084, %vm3085
    %v3087 = vsel %vm3086, %v3079, %v3083
    %v3088 = vand.u32 2147483647, %v3062
    %vm3089 = vcmp.eq.f32.partialorder %v3088, 8.507059e+37
    %v3090 = vand.u32 %v3062, 2147483648
    %v3091 = vor.u32 1.1754944e-38, %v3090
    %v3092 = vsel %vm3089, %v3091, %v3087
    %v3093 = vmul.f32 1.0, %v3092
    %v3094 = vrcp.pop %v3063
    %v3095 = vmul.f32 %v3063, %v3094
    %v3096 = vsub.f32 1.0, %v3095
    %v3097 = vmul.f32 %v3094, %v3096
    %v3098 = vadd.f32 %v3094, %v3097
    %vm3099 = vweird.f32 %v3063
    %vm3100 = vweird.f32 %v3094
    %vm3101 = vmor %vm3099, %vm3100
    %v3102 = vsel %vm3101, %v3094, %v3098
    %v3103 = vand.u32 2147483647, %v3063
    %vm3104 = vcmp.eq.f32.partialorder %v3103, 8.507059e+37
    %v3105 = vand.u32 %v3063, 2147483648
    %v3106 = vor.u32 1.1754944e-38, %v3105
    %v3107 = vsel %vm3104, %v3106, %v3102
    %v3108 = vmul.f32 1.0, %v3107
    %v3109 = vtanh.pop %v3051
    %v3110 = vmul.f32 %v3093, %v2748
    %v3111 = vmul.f32 %v3078, %v3109
    %v3112 = vadd.f32 %v3110, %v3111
    %v3113 = vtanh.pop %v3112
    %v3114 = vmul.f32 %v3108, %v3113
    %v3115 = vpack.c.bf16 %v3114, %v3114
    %3116 = vmatpush.bf16.msra.mxu0 %v1288
    %3117 = vmatpush.bf16.msra.mxu0 %v1287
    %3118 = vmatpush.bf16.msra.mxu0 %v1286
    %3119 = vmatpush.bf16.msra.mxu0 %v1285
    %3120 = vmatpush.bf16.msra.mxu0 %v1284
    %3121 = vmatpush.bf16.msra.mxu0 %v1283
    %3122 = vmatpush.bf16.msra.mxu0 %v1282
    %3123 = vmatpush.bf16.msra.mxu0 %v1281
    %3124 = vmatmul.bf16.gmra.mxu0 %v3115
    %v3125 = vpop.f32.mrf.mxu0
    %v3126 = vadd.f32 %v330, %v3125
    %v3127 = vpop.f32.mrf.mxu0
    %3128 = vdwg.mxu0
    %s3129 = scalar_lea.vmem [#allocation17], 10
    %3130 = vst [vmem:[%s3129] sm:$0x3] %v3126
    %s3131 = scalar_lea.vmem [#allocation2], 6
    %v3132 = vld [vmem:[%s3131] sm:$0x1]
    %3133 = vmatpush.bf16.msra.mxu0 %v464
    %3134 = vmatpush.bf16.msra.mxu0 %v460
    %3135 = vmatpush.bf16.msra.mxu0 %v456
    %3136 = vmatpush.bf16.msra.mxu0 %v452
    %3137 = vmatpush.bf16.msra.mxu0 %v448
    %3138 = vmatpush.bf16.msra.mxu0 %v444
    %3139 = vmatpush.bf16.msra.mxu0 %v440
    %3140 = vmatpush.bf16.msra.mxu0 %v436
    %3141 = vmatmul.bf16.gmra.mxu0 %v2943
    %v3142 = vpop.f32.mrf.mxu0
    %v3143 = vadd.f32 0.0, %v3142
    %v3144 = vpop.f32.mrf.mxu0
    %3145 = vdwg.mxu0
    %3146 = vmatpush.bf16.msra.mxu0 %v465
    %3147 = vmatpush.bf16.msra.mxu0 %v461
    %3148 = vmatpush.bf16.msra.mxu0 %v457
    %3149 = vmatpush.bf16.msra.mxu0 %v453
    %3150 = vmatpush.bf16.msra.mxu0 %v449
    %3151 = vmatpush.bf16.msra.mxu0 %v445
    %3152 = vmatpush.bf16.msra.mxu0 %v441
    %3153 = vmatpush.bf16.msra.mxu0 %v437
    %3154 = vmatmul.bf16.gmra.mxu0 %v2943
    %v3155 = vpop.f32.mrf.mxu0
    %v3156 = vadd.f32 0.0, %v3155
    %v3157 = vpop.f32.mrf.mxu0
    %3158 = vdwg.mxu0
    %3159 = vmatpush.bf16.msra.mxu0 %v466
    %3160 = vmatpush.bf16.msra.mxu0 %v462
    %3161 = vmatpush.bf16.msra.mxu0 %v458
    %3162 = vmatpush.bf16.msra.mxu0 %v454
    %3163 = vmatpush.bf16.msra.mxu0 %v450
    %3164 = vmatpush.bf16.msra.mxu0 %v446
    %3165 = vmatpush.bf16.msra.mxu0 %v442
    %3166 = vmatpush.bf16.msra.mxu0 %v438
    %3167 = vmatmul.bf16.gmra.mxu0 %v2943
    %v3168 = vpop.f32.mrf.mxu0
    %v3169 = vadd.f32 0.0, %v3168
    %v3170 = vpop.f32.mrf.mxu0
    %3171 = vdwg.mxu0
    %3172 = vmatpush.bf16.msra.mxu0 %v467
    %3173 = vmatpush.bf16.msra.mxu0 %v463
    %3174 = vmatpush.bf16.msra.mxu0 %v459
    %3175 = vmatpush.bf16.msra.mxu0 %v455
    %3176 = vmatpush.bf16.msra.mxu0 %v451
    %3177 = vmatpush.bf16.msra.mxu0 %v447
    %3178 = vmatpush.bf16.msra.mxu0 %v443
    %3179 = vmatpush.bf16.msra.mxu0 %v439
    %3180 = vmatmul.bf16.gmra.mxu0 %v2943
    %v3181 = vpop.f32.mrf.mxu0
    %v3182 = vadd.f32 0.0, %v3181
    %v3183 = vpop.f32.mrf.mxu0
    %3184 = vdwg.mxu0
    %v3186 = vsel %vm632, %v3132, 0
    %3188 = vmatpush.bf16.msra.mxu0 0
    %3189 = vmatpush.bf16.msra.mxu0 0
    %3190 = vmatpush.bf16.msra.mxu0 0
    %3191 = vmatpush.bf16.msra.mxu0 0
    %3192 = vmatpush.bf16.msra.mxu0 %v612
    %3193 = vmatpush.bf16.msra.mxu0 %v608
    %3194 = vmatpush.bf16.msra.mxu0 %v604
    %3195 = vmatpush.bf16.msra.mxu0 %v600
    %3196 = vmatmul.bf16.gmra.mxu0 %v3186
    %v3197 = vpop.f32.mrf.mxu0
    %v3198 = vadd.f32 %v3143, %v3197
    %v3199 = vpop.f32.mrf.mxu0
    %3200 = vdwg.mxu0
    %3201 = vmatpush.bf16.msra.mxu0 0
    %3202 = vmatpush.bf16.msra.mxu0 0
    %3203 = vmatpush.bf16.msra.mxu0 0
    %3204 = vmatpush.bf16.msra.mxu0 0
    %3205 = vmatpush.bf16.msra.mxu0 %v613
    %3206 = vmatpush.bf16.msra.mxu0 %v609
    %3207 = vmatpush.bf16.msra.mxu0 %v605
    %3208 = vmatpush.bf16.msra.mxu0 %v601
    %3209 = vmatmul.bf16.gmra.mxu0 %v3186
    %v3210 = vpop.f32.mrf.mxu0
    %v3211 = vadd.f32 %v3156, %v3210
    %v3212 = vpop.f32.mrf.mxu0
    %3213 = vdwg.mxu0
    %3214 = vmatpush.bf16.msra.mxu0 0
    %3215 = vmatpush.bf16.msra.mxu0 0
    %3216 = vmatpush.bf16.msra.mxu0 0
    %3217 = vmatpush.bf16.msra.mxu0 0
    %3218 = vmatpush.bf16.msra.mxu0 %v614
    %3219 = vmatpush.bf16.msra.mxu0 %v610
    %3220 = vmatpush.bf16.msra.mxu0 %v606
    %3221 = vmatpush.bf16.msra.mxu0 %v602
    %3222 = vmatmul.bf16.gmra.mxu0 %v3186
    %v3223 = vpop.f32.mrf.mxu0
    %v3224 = vadd.f32 %v3169, %v3223
    %v3225 = vpop.f32.mrf.mxu0
    %3226 = vdwg.mxu0
    %3227 = vmatpush.bf16.msra.mxu0 0
    %3228 = vmatpush.bf16.msra.mxu0 0
    %3229 = vmatpush.bf16.msra.mxu0 0
    %3230 = vmatpush.bf16.msra.mxu0 0
    %3231 = vmatpush.bf16.msra.mxu0 %v615
    %3232 = vmatpush.bf16.msra.mxu0 %v611
    %3233 = vmatpush.bf16.msra.mxu0 %v607
    %3234 = vmatpush.bf16.msra.mxu0 %v603
    %3235 = vmatmul.bf16.gmra.mxu0 %v3186
    %v3236 = vpop.f32.mrf.mxu0
    %v3237 = vadd.f32 %v3182, %v3236
    %v3238 = vpop.f32.mrf.mxu0
    %3239 = vdwg.mxu0
    %v3240 = vadd.f32 %v3198, %v310
    %v3241 = vadd.f32 %v3211, %v311
    %v3242 = vadd.f32 %v3224, %v312
    %v3243 = vadd.f32 %v3237, %v313
    %v3244 = vxor.u32 %v3240, 2147483648
    %v3245 = vxor.u32 %v3241, 2147483648
    %v3246 = vxor.u32 %v3242, 2147483648
    %v3247 = vmul.f32 %v3244, 1.442695
    %v3248 = vpow.pop %v3247
    %v3249 = vmul.f32 %v3245, 1.442695
    %v3250 = vpow.pop %v3249
    %v3251 = vmul.f32 %v3246, 1.442695
    %v3252 = vpow.pop %v3251
    %v3253 = vadd.f32 %v3248, 1.0
    %v3254 = vadd.f32 %v3250, 1.0
    %v3255 = vadd.f32 %v3252, 1.0
    %v3256 = vrcp.pop %v3253
    %v3257 = vmul.f32 %v3253, %v3256
    %v3258 = vsub.f32 1.0, %v3257
    %v3259 = vmul.f32 %v3256, %v3258
    %v3260 = vadd.f32 %v3256, %v3259
    %vm3261 = vweird.f32 %v3253
    %vm3262 = vweird.f32 %v3256
    %vm3263 = vmor %vm3261, %vm3262
    %v3264 = vsel %vm3263, %v3256, %v3260
    %v3265 = vand.u32 2147483647, %v3253
    %vm3266 = vcmp.eq.f32.partialorder %v3265, 8.507059e+37
    %v3267 = vand.u32 %v3253, 2147483648
    %v3268 = vor.u32 1.1754944e-38, %v3267
    %v3269 = vsel %vm3266, %v3268, %v3264
    %v3270 = vmul.f32 1.0, %v3269
    %v3271 = vrcp.pop %v3254
    %v3272 = vmul.f32 %v3254, %v3271
    %v3273 = vsub.f32 1.0, %v3272
    %v3274 = vmul.f32 %v3271, %v3273
    %v3275 = vadd.f32 %v3271, %v3274
    %vm3276 = vweird.f32 %v3254
    %vm3277 = vweird.f32 %v3271
    %vm3278 = vmor %vm3276, %vm3277
    %v3279 = vsel %vm3278, %v3271, %v3275
    %v3280 = vand.u32 2147483647, %v3254
    %vm3281 = vcmp.eq.f32.partialorder %v3280, 8.507059e+37
    %v3282 = vand.u32 %v3254, 2147483648
    %v3283 = vor.u32 1.1754944e-38, %v3282
    %v3284 = vsel %vm3281, %v3283, %v3279
    %v3285 = vmul.f32 1.0, %v3284
    %v3286 = vrcp.pop %v3255
    %v3287 = vmul.f32 %v3255, %v3286
    %v3288 = vsub.f32 1.0, %v3287
    %v3289 = vmul.f32 %v3286, %v3288
    %v3290 = vadd.f32 %v3286, %v3289
    %vm3291 = vweird.f32 %v3255
    %vm3292 = vweird.f32 %v3286
    %vm3293 = vmor %vm3291, %vm3292
    %v3294 = vsel %vm3293, %v3286, %v3290
    %v3295 = vand.u32 2147483647, %v3255
    %vm3296 = vcmp.eq.f32.partialorder %v3295, 8.507059e+37
    %v3297 = vand.u32 %v3255, 2147483648
    %v3298 = vor.u32 1.1754944e-38, %v3297
    %v3299 = vsel %vm3296, %v3298, %v3294
    %v3300 = vmul.f32 1.0, %v3299
    %v3301 = vtanh.pop %v3243
    %v3302 = vmul.f32 %v3285, %v2940
    %v3303 = vmul.f32 %v3270, %v3301
    %v3304 = vadd.f32 %v3302, %v3303
    %v3305 = vtanh.pop %v3304
    %v3306 = vmul.f32 %v3300, %v3305
    %v3307 = vpack.c.bf16 %v3306, %v3306
    %3308 = vmatpush.bf16.msra.mxu0 %v881
    %3309 = vmatpush.bf16.msra.mxu0 %v877
    %3310 = vmatpush.bf16.msra.mxu0 %v873
    %3311 = vmatpush.bf16.msra.mxu0 %v869
    %3312 = vmatpush.bf16.msra.mxu0 %v865
    %3313 = vmatpush.bf16.msra.mxu0 %v861
    %3314 = vmatpush.bf16.msra.mxu0 %v857
    %3315 = vmatpush.bf16.msra.mxu0 %v853
    %3316 = vmatmul.bf16.gmra.mxu0 %v3115
    %v3317 = vpop.f32.mrf.mxu0
    %v3318 = vadd.f32 0.0, %v3317
    %v3319 = vpop.f32.mrf.mxu0
    %3320 = vdwg.mxu0
    %3321 = vmatpush.bf16.msra.mxu0 %v882
    %3322 = vmatpush.bf16.msra.mxu0 %v878
    %3323 = vmatpush.bf16.msra.mxu0 %v874
    %3324 = vmatpush.bf16.msra.mxu0 %v870
    %3325 = vmatpush.bf16.msra.mxu0 %v866
    %3326 = vmatpush.bf16.msra.mxu0 %v862
    %3327 = vmatpush.bf16.msra.mxu0 %v858
    %3328 = vmatpush.bf16.msra.mxu0 %v854
    %3329 = vmatmul.bf16.gmra.mxu0 %v3115
    %v3330 = vpop.f32.mrf.mxu0
    %v3331 = vadd.f32 0.0, %v3330
    %v3332 = vpop.f32.mrf.mxu0
    %3333 = vdwg.mxu0
    %3334 = vmatpush.bf16.msra.mxu0 %v883
    %3335 = vmatpush.bf16.msra.mxu0 %v879
    %3336 = vmatpush.bf16.msra.mxu0 %v875
    %3337 = vmatpush.bf16.msra.mxu0 %v871
    %3338 = vmatpush.bf16.msra.mxu0 %v867
    %3339 = vmatpush.bf16.msra.mxu0 %v863
    %3340 = vmatpush.bf16.msra.mxu0 %v859
    %3341 = vmatpush.bf16.msra.mxu0 %v855
    %3342 = vmatmul.bf16.gmra.mxu0 %v3115
    %v3343 = vpop.f32.mrf.mxu0
    %v3344 = vadd.f32 0.0, %v3343
    %v3345 = vpop.f32.mrf.mxu0
    %3346 = vdwg.mxu0
    %3347 = vmatpush.bf16.msra.mxu0 %v884
    %3348 = vmatpush.bf16.msra.mxu0 %v880
    %3349 = vmatpush.bf16.msra.mxu0 %v876
    %3350 = vmatpush.bf16.msra.mxu0 %v872
    %3351 = vmatpush.bf16.msra.mxu0 %v868
    %3352 = vmatpush.bf16.msra.mxu0 %v864
    %3353 = vmatpush.bf16.msra.mxu0 %v860
    %3354 = vmatpush.bf16.msra.mxu0 %v856
    %3355 = vmatmul.bf16.gmra.mxu0 %v3115
    %v3356 = vpop.f32.mrf.mxu0
    %v3357 = vadd.f32 0.0, %v3356
    %v3358 = vpop.f32.mrf.mxu0
    %3359 = vdwg.mxu0
    %3360 = vmatpush.bf16.msra.mxu0 %v1093
    %3361 = vmatpush.bf16.msra.mxu0 %v1089
    %3362 = vmatpush.bf16.msra.mxu0 %v1085
    %3363 = vmatpush.bf16.msra.mxu0 %v1081
    %3364 = vmatpush.bf16.msra.mxu0 %v1077
    %3365 = vmatpush.bf16.msra.mxu0 %v1073
    %3366 = vmatpush.bf16.msra.mxu0 %v1069
    %3367 = vmatpush.bf16.msra.mxu0 %v1065
    %3368 = vmatmul.bf16.gmra.mxu0 %v3307
    %v3369 = vpop.f32.mrf.mxu0
    %v3370 = vadd.f32 %v3318, %v3369
    %v3371 = vpop.f32.mrf.mxu0
    %3372 = vdwg.mxu0
    %3373 = vmatpush.bf16.msra.mxu0 %v1094
    %3374 = vmatpush.bf16.msra.mxu0 %v1090
    %3375 = vmatpush.bf16.msra.mxu0 %v1086
    %3376 = vmatpush.bf16.msra.mxu0 %v1082
    %3377 = vmatpush.bf16.msra.mxu0 %v1078
    %3378 = vmatpush.bf16.msra.mxu0 %v1074
    %3379 = vmatpush.bf16.msra.mxu0 %v1070
    %3380 = vmatpush.bf16.msra.mxu0 %v1066
    %3381 = vmatmul.bf16.gmra.mxu0 %v3307
    %v3382 = vpop.f32.mrf.mxu0
    %v3383 = vadd.f32 %v3331, %v3382
    %v3384 = vpop.f32.mrf.mxu0
    %3385 = vdwg.mxu0
    %3386 = vmatpush.bf16.msra.mxu0 %v1095
    %3387 = vmatpush.bf16.msra.mxu0 %v1091
    %3388 = vmatpush.bf16.msra.mxu0 %v1087
    %3389 = vmatpush.bf16.msra.mxu0 %v1083
    %3390 = vmatpush.bf16.msra.mxu0 %v1079
    %3391 = vmatpush.bf16.msra.mxu0 %v1075
    %3392 = vmatpush.bf16.msra.mxu0 %v1071
    %3393 = vmatpush.bf16.msra.mxu0 %v1067
    %3394 = vmatmul.bf16.gmra.mxu0 %v3307
    %v3395 = vpop.f32.mrf.mxu0
    %v3396 = vadd.f32 %v3344, %v3395
    %v3397 = vpop.f32.mrf.mxu0
    %3398 = vdwg.mxu0
    %3399 = vmatpush.bf16.msra.mxu0 %v1096
    %3400 = vmatpush.bf16.msra.mxu0 %v1092
    %3401 = vmatpush.bf16.msra.mxu0 %v1088
    %3402 = vmatpush.bf16.msra.mxu0 %v1084
    %3403 = vmatpush.bf16.msra.mxu0 %v1080
    %3404 = vmatpush.bf16.msra.mxu0 %v1076
    %3405 = vmatpush.bf16.msra.mxu0 %v1072
    %3406 = vmatpush.bf16.msra.mxu0 %v1068
    %3407 = vmatmul.bf16.gmra.mxu0 %v3307
    %v3408 = vpop.f32.mrf.mxu0
    %v3409 = vadd.f32 %v3357, %v3408
    %v3410 = vpop.f32.mrf.mxu0
    %3411 = vdwg.mxu0
    %v3412 = vadd.f32 %v3370, %v320
    %v3413 = vadd.f32 %v3383, %v321
    %v3414 = vadd.f32 %v3396, %v322
    %v3415 = vadd.f32 %v3409, %v323
    %v3416 = vxor.u32 %v3412, 2147483648
    %v3417 = vxor.u32 %v3413, 2147483648
    %v3418 = vxor.u32 %v3414, 2147483648
    %v3419 = vmul.f32 %v3416, 1.442695
    %v3420 = vpow.pop %v3419
    %v3421 = vmul.f32 %v3417, 1.442695
    %v3422 = vpow.pop %v3421
    %v3423 = vmul.f32 %v3418, 1.442695
    %v3424 = vpow.pop %v3423
    %v3425 = vadd.f32 %v3420, 1.0
    %v3426 = vadd.f32 %v3422, 1.0
    %v3427 = vadd.f32 %v3424, 1.0
    %v3428 = vrcp.pop %v3425
    %v3429 = vmul.f32 %v3425, %v3428
    %v3430 = vsub.f32 1.0, %v3429
    %v3431 = vmul.f32 %v3428, %v3430
    %v3432 = vadd.f32 %v3428, %v3431
    %vm3433 = vweird.f32 %v3425
    %vm3434 = vweird.f32 %v3428
    %vm3435 = vmor %vm3433, %vm3434
    %v3436 = vsel %vm3435, %v3428, %v3432
    %v3437 = vand.u32 2147483647, %v3425
    %vm3438 = vcmp.eq.f32.partialorder %v3437, 8.507059e+37
    %v3439 = vand.u32 %v3425, 2147483648
    %v3440 = vor.u32 1.1754944e-38, %v3439
    %v3441 = vsel %vm3438, %v3440, %v3436
    %v3442 = vmul.f32 1.0, %v3441
    %v3443 = vrcp.pop %v3426
    %v3444 = vmul.f32 %v3426, %v3443
    %v3445 = vsub.f32 1.0, %v3444
    %v3446 = vmul.f32 %v3443, %v3445
    %v3447 = vadd.f32 %v3443, %v3446
    %vm3448 = vweird.f32 %v3426
    %vm3449 = vweird.f32 %v3443
    %vm3450 = vmor %vm3448, %vm3449
    %v3451 = vsel %vm3450, %v3443, %v3447
    %v3452 = vand.u32 2147483647, %v3426
    %vm3453 = vcmp.eq.f32.partialorder %v3452, 8.507059e+37
    %v3454 = vand.u32 %v3426, 2147483648
    %v3455 = vor.u32 1.1754944e-38, %v3454
    %v3456 = vsel %vm3453, %v3455, %v3451
    %v3457 = vmul.f32 1.0, %v3456
    %v3458 = vrcp.pop %v3427
    %v3459 = vmul.f32 %v3427, %v3458
    %v3460 = vsub.f32 1.0, %v3459
    %v3461 = vmul.f32 %v3458, %v3460
    %v3462 = vadd.f32 %v3458, %v3461
    %vm3463 = vweird.f32 %v3427
    %vm3464 = vweird.f32 %v3458
    %vm3465 = vmor %vm3463, %vm3464
    %v3466 = vsel %vm3465, %v3458, %v3462
    %v3467 = vand.u32 2147483647, %v3427
    %vm3468 = vcmp.eq.f32.partialorder %v3467, 8.507059e+37
    %v3469 = vand.u32 %v3427, 2147483648
    %v3470 = vor.u32 1.1754944e-38, %v3469
    %v3471 = vsel %vm3468, %v3470, %v3466
    %v3472 = vmul.f32 1.0, %v3471
    %v3473 = vtanh.pop %v3415
    %v3474 = vmul.f32 %v3457, %v3112
    %v3475 = vmul.f32 %v3442, %v3473
    %v3476 = vadd.f32 %v3474, %v3475
    %v3477 = vtanh.pop %v3476
    %v3478 = vmul.f32 %v3472, %v3477
    %v3479 = vpack.c.bf16 %v3478, %v3478
    %3480 = vmatpush.bf16.msra.mxu0 %v1288
    %3481 = vmatpush.bf16.msra.mxu0 %v1287
    %3482 = vmatpush.bf16.msra.mxu0 %v1286
    %3483 = vmatpush.bf16.msra.mxu0 %v1285
    %3484 = vmatpush.bf16.msra.mxu0 %v1284
    %3485 = vmatpush.bf16.msra.mxu0 %v1283
    %3486 = vmatpush.bf16.msra.mxu0 %v1282
    %3487 = vmatpush.bf16.msra.mxu0 %v1281
    %3488 = vmatmul.bf16.gmra.mxu0 %v3479
    %v3489 = vpop.f32.mrf.mxu0
    %v3490 = vadd.f32 %v330, %v3489
    %v3491 = vpop.f32.mrf.mxu0
    %3492 = vdwg.mxu0
    %s3493 = scalar_lea.vmem [#allocation17], 12
    %3494 = vst [vmem:[%s3493] sm:$0x3] %v3490
    %s3495 = scalar_lea.vmem [#allocation2], 7
    %v3496 = vld [vmem:[%s3495] sm:$0x1]
    %3497 = vmatpush.bf16.msra.mxu0 %v464
    %3498 = vmatpush.bf16.msra.mxu0 %v460
    %3499 = vmatpush.bf16.msra.mxu0 %v456
    %3500 = vmatpush.bf16.msra.mxu0 %v452
    %3501 = vmatpush.bf16.msra.mxu0 %v448
    %3502 = vmatpush.bf16.msra.mxu0 %v444
    %3503 = vmatpush.bf16.msra.mxu0 %v440
    %3504 = vmatpush.bf16.msra.mxu0 %v436
    %3505 = vmatmul.bf16.gmra.mxu0 %v3307
    %v3506 = vpop.f32.mrf.mxu0
    %v3507 = vadd.f32 0.0, %v3506
    %v3508 = vpop.f32.mrf.mxu0
    %3509 = vdwg.mxu0
    %3510 = vmatpush.bf16.msra.mxu0 %v465
    %3511 = vmatpush.bf16.msra.mxu0 %v461
    %3512 = vmatpush.bf16.msra.mxu0 %v457
    %3513 = vmatpush.bf16.msra.mxu0 %v453
    %3514 = vmatpush.bf16.msra.mxu0 %v449
    %3515 = vmatpush.bf16.msra.mxu0 %v445
    %3516 = vmatpush.bf16.msra.mxu0 %v441
    %3517 = vmatpush.bf16.msra.mxu0 %v437
    %3518 = vmatmul.bf16.gmra.mxu0 %v3307
    %v3519 = vpop.f32.mrf.mxu0
    %v3520 = vadd.f32 0.0, %v3519
    %v3521 = vpop.f32.mrf.mxu0
    %3522 = vdwg.mxu0
    %3523 = vmatpush.bf16.msra.mxu0 %v466
    %3524 = vmatpush.bf16.msra.mxu0 %v462
    %3525 = vmatpush.bf16.msra.mxu0 %v458
    %3526 = vmatpush.bf16.msra.mxu0 %v454
    %3527 = vmatpush.bf16.msra.mxu0 %v450
    %3528 = vmatpush.bf16.msra.mxu0 %v446
    %3529 = vmatpush.bf16.msra.mxu0 %v442
    %3530 = vmatpush.bf16.msra.mxu0 %v438
    %3531 = vmatmul.bf16.gmra.mxu0 %v3307
    %v3532 = vpop.f32.mrf.mxu0
    %v3533 = vadd.f32 0.0, %v3532
    %v3534 = vpop.f32.mrf.mxu0
    %3535 = vdwg.mxu0
    %3536 = vmatpush.bf16.msra.mxu0 %v467
    %3537 = vmatpush.bf16.msra.mxu0 %v463
    %3538 = vmatpush.bf16.msra.mxu0 %v459
    %3539 = vmatpush.bf16.msra.mxu0 %v455
    %3540 = vmatpush.bf16.msra.mxu0 %v451
    %3541 = vmatpush.bf16.msra.mxu0 %v447
    %3542 = vmatpush.bf16.msra.mxu0 %v443
    %3543 = vmatpush.bf16.msra.mxu0 %v439
    %3544 = vmatmul.bf16.gmra.mxu0 %v3307
    %v3545 = vpop.f32.mrf.mxu0
    %v3546 = vadd.f32 0.0, %v3545
    %v3547 = vpop.f32.mrf.mxu0
    %3548 = vdwg.mxu0
    %v3550 = vsel %vm632, %v3496, 0
    %3552 = vmatpush.bf16.msra.mxu0 0
    %3553 = vmatpush.bf16.msra.mxu0 0
    %3554 = vmatpush.bf16.msra.mxu0 0
    %3555 = vmatpush.bf16.msra.mxu0 0
    %3556 = vmatpush.bf16.msra.mxu0 %v612
    %3557 = vmatpush.bf16.msra.mxu0 %v608
    %3558 = vmatpush.bf16.msra.mxu0 %v604
    %3559 = vmatpush.bf16.msra.mxu0 %v600
    %3560 = vmatmul.bf16.gmra.mxu0 %v3550
    %v3561 = vpop.f32.mrf.mxu0
    %v3562 = vadd.f32 %v3507, %v3561
    %v3563 = vpop.f32.mrf.mxu0
    %3564 = vdwg.mxu0
    %3565 = vmatpush.bf16.msra.mxu0 0
    %3566 = vmatpush.bf16.msra.mxu0 0
    %3567 = vmatpush.bf16.msra.mxu0 0
    %3568 = vmatpush.bf16.msra.mxu0 0
    %3569 = vmatpush.bf16.msra.mxu0 %v613
    %3570 = vmatpush.bf16.msra.mxu0 %v609
    %3571 = vmatpush.bf16.msra.mxu0 %v605
    %3572 = vmatpush.bf16.msra.mxu0 %v601
    %3573 = vmatmul.bf16.gmra.mxu0 %v3550
    %v3574 = vpop.f32.mrf.mxu0
    %v3575 = vadd.f32 %v3520, %v3574
    %v3576 = vpop.f32.mrf.mxu0
    %3577 = vdwg.mxu0
    %3578 = vmatpush.bf16.msra.mxu0 0
    %3579 = vmatpush.bf16.msra.mxu0 0
    %3580 = vmatpush.bf16.msra.mxu0 0
    %3581 = vmatpush.bf16.msra.mxu0 0
    %3582 = vmatpush.bf16.msra.mxu0 %v614
    %3583 = vmatpush.bf16.msra.mxu0 %v610
    %3584 = vmatpush.bf16.msra.mxu0 %v606
    %3585 = vmatpush.bf16.msra.mxu0 %v602
    %3586 = vmatmul.bf16.gmra.mxu0 %v3550
    %v3587 = vpop.f32.mrf.mxu0
    %v3588 = vadd.f32 %v3533, %v3587
    %v3589 = vpop.f32.mrf.mxu0
    %3590 = vdwg.mxu0
    %3591 = vmatpush.bf16.msra.mxu0 0
    %3592 = vmatpush.bf16.msra.mxu0 0
    %3593 = vmatpush.bf16.msra.mxu0 0
    %3594 = vmatpush.bf16.msra.mxu0 0
    %3595 = vmatpush.bf16.msra.mxu0 %v615
    %3596 = vmatpush.bf16.msra.mxu0 %v611
    %3597 = vmatpush.bf16.msra.mxu0 %v607
    %3598 = vmatpush.bf16.msra.mxu0 %v603
    %3599 = vmatmul.bf16.gmra.mxu0 %v3550
    %v3600 = vpop.f32.mrf.mxu0
    %v3601 = vadd.f32 %v3546, %v3600
    %v3602 = vpop.f32.mrf.mxu0
    %3603 = vdwg.mxu0
    %v3604 = vadd.f32 %v3562, %v310
    %v3605 = vadd.f32 %v3575, %v311
    %v3606 = vadd.f32 %v3588, %v312
    %v3607 = vadd.f32 %v3601, %v313
    %v3608 = vxor.u32 %v3604, 2147483648
    %v3609 = vxor.u32 %v3605, 2147483648
    %v3610 = vxor.u32 %v3606, 2147483648
    %v3611 = vmul.f32 %v3608, 1.442695
    %v3612 = vpow.pop %v3611
    %v3613 = vmul.f32 %v3609, 1.442695
    %v3614 = vpow.pop %v3613
    %v3615 = vmul.f32 %v3610, 1.442695
    %v3616 = vpow.pop %v3615
    %v3617 = vadd.f32 %v3612, 1.0
    %v3618 = vadd.f32 %v3614, 1.0
    %v3619 = vadd.f32 %v3616, 1.0
    %v3620 = vrcp.pop %v3617
    %v3621 = vmul.f32 %v3617, %v3620
    %v3622 = vsub.f32 1.0, %v3621
    %v3623 = vmul.f32 %v3620, %v3622
    %v3624 = vadd.f32 %v3620, %v3623
    %vm3625 = vweird.f32 %v3617
    %vm3626 = vweird.f32 %v3620
    %vm3627 = vmor %vm3625, %vm3626
    %v3628 = vsel %vm3627, %v3620, %v3624
    %v3629 = vand.u32 2147483647, %v3617
    %vm3630 = vcmp.eq.f32.partialorder %v3629, 8.507059e+37
    %v3631 = vand.u32 %v3617, 2147483648
    %v3632 = vor.u32 1.1754944e-38, %v3631
    %v3633 = vsel %vm3630, %v3632, %v3628
    %v3634 = vmul.f32 1.0, %v3633
    %v3635 = vrcp.pop %v3618
    %v3636 = vmul.f32 %v3618, %v3635
    %v3637 = vsub.f32 1.0, %v3636
    %v3638 = vmul.f32 %v3635, %v3637
    %v3639 = vadd.f32 %v3635, %v3638
    %vm3640 = vweird.f32 %v3618
    %vm3641 = vweird.f32 %v3635
    %vm3642 = vmor %vm3640, %vm3641
    %v3643 = vsel %vm3642, %v3635, %v3639
    %v3644 = vand.u32 2147483647, %v3618
    %vm3645 = vcmp.eq.f32.partialorder %v3644, 8.507059e+37
    %v3646 = vand.u32 %v3618, 2147483648
    %v3647 = vor.u32 1.1754944e-38, %v3646
    %v3648 = vsel %vm3645, %v3647, %v3643
    %v3649 = vmul.f32 1.0, %v3648
    %v3650 = vrcp.pop %v3619
    %v3651 = vmul.f32 %v3619, %v3650
    %v3652 = vsub.f32 1.0, %v3651
    %v3653 = vmul.f32 %v3650, %v3652
    %v3654 = vadd.f32 %v3650, %v3653
    %vm3655 = vweird.f32 %v3619
    %vm3656 = vweird.f32 %v3650
    %vm3657 = vmor %vm3655, %vm3656
    %v3658 = vsel %vm3657, %v3650, %v3654
    %v3659 = vand.u32 2147483647, %v3619
    %vm3660 = vcmp.eq.f32.partialorder %v3659, 8.507059e+37
    %v3661 = vand.u32 %v3619, 2147483648
    %v3662 = vor.u32 1.1754944e-38, %v3661
    %v3663 = vsel %vm3660, %v3662, %v3658
    %v3664 = vmul.f32 1.0, %v3663
    %v3665 = vtanh.pop %v3607
    %v3666 = vmul.f32 %v3649, %v3304
    %v3667 = vmul.f32 %v3634, %v3665
    %v3668 = vadd.f32 %v3666, %v3667
    %v3669 = vtanh.pop %v3668
    %v3670 = vmul.f32 %v3664, %v3669
    %v3671 = vpack.c.bf16 %v3670, %v3670
    %3672 = vmatpush.bf16.msra.mxu0 %v881
    %3673 = vmatpush.bf16.msra.mxu0 %v877
    %3674 = vmatpush.bf16.msra.mxu0 %v873
    %3675 = vmatpush.bf16.msra.mxu0 %v869
    %3676 = vmatpush.bf16.msra.mxu0 %v865
    %3677 = vmatpush.bf16.msra.mxu0 %v861
    %3678 = vmatpush.bf16.msra.mxu0 %v857
    %3679 = vmatpush.bf16.msra.mxu0 %v853
    %3680 = vmatmul.bf16.gmra.mxu0 %v3479
    %v3681 = vpop.f32.mrf.mxu0
    %v3682 = vadd.f32 0.0, %v3681
    %v3683 = vpop.f32.mrf.mxu0
    %3684 = vdwg.mxu0
    %3685 = vmatpush.bf16.msra.mxu0 %v882
    %3686 = vmatpush.bf16.msra.mxu0 %v878
    %3687 = vmatpush.bf16.msra.mxu0 %v874
    %3688 = vmatpush.bf16.msra.mxu0 %v870
    %3689 = vmatpush.bf16.msra.mxu0 %v866
    %3690 = vmatpush.bf16.msra.mxu0 %v862
    %3691 = vmatpush.bf16.msra.mxu0 %v858
    %3692 = vmatpush.bf16.msra.mxu0 %v854
    %3693 = vmatmul.bf16.gmra.mxu0 %v3479
    %v3694 = vpop.f32.mrf.mxu0
    %v3695 = vadd.f32 0.0, %v3694
    %v3696 = vpop.f32.mrf.mxu0
    %3697 = vdwg.mxu0
    %3698 = vmatpush.bf16.msra.mxu0 %v883
    %3699 = vmatpush.bf16.msra.mxu0 %v879
    %3700 = vmatpush.bf16.msra.mxu0 %v875
    %3701 = vmatpush.bf16.msra.mxu0 %v871
    %3702 = vmatpush.bf16.msra.mxu0 %v867
    %3703 = vmatpush.bf16.msra.mxu0 %v863
    %3704 = vmatpush.bf16.msra.mxu0 %v859
    %3705 = vmatpush.bf16.msra.mxu0 %v855
    %3706 = vmatmul.bf16.gmra.mxu0 %v3479
    %v3707 = vpop.f32.mrf.mxu0
    %v3708 = vadd.f32 0.0, %v3707
    %v3709 = vpop.f32.mrf.mxu0
    %3710 = vdwg.mxu0
    %3711 = vmatpush.bf16.msra.mxu0 %v884
    %3712 = vmatpush.bf16.msra.mxu0 %v880
    %3713 = vmatpush.bf16.msra.mxu0 %v876
    %3714 = vmatpush.bf16.msra.mxu0 %v872
    %3715 = vmatpush.bf16.msra.mxu0 %v868
    %3716 = vmatpush.bf16.msra.mxu0 %v864
    %3717 = vmatpush.bf16.msra.mxu0 %v860
    %3718 = vmatpush.bf16.msra.mxu0 %v856
    %3719 = vmatmul.bf16.gmra.mxu0 %v3479
    %v3720 = vpop.f32.mrf.mxu0
    %v3721 = vadd.f32 0.0, %v3720
    %v3722 = vpop.f32.mrf.mxu0
    %3723 = vdwg.mxu0
    %3724 = vmatpush.bf16.msra.mxu0 %v1093
    %3725 = vmatpush.bf16.msra.mxu0 %v1089
    %3726 = vmatpush.bf16.msra.mxu0 %v1085
    %3727 = vmatpush.bf16.msra.mxu0 %v1081
    %3728 = vmatpush.bf16.msra.mxu0 %v1077
    %3729 = vmatpush.bf16.msra.mxu0 %v1073
    %3730 = vmatpush.bf16.msra.mxu0 %v1069
    %3731 = vmatpush.bf16.msra.mxu0 %v1065
    %3732 = vmatmul.bf16.gmra.mxu0 %v3671
    %v3733 = vpop.f32.mrf.mxu0
    %v3734 = vadd.f32 %v3682, %v3733
    %v3735 = vpop.f32.mrf.mxu0
    %3736 = vdwg.mxu0
    %3737 = vmatpush.bf16.msra.mxu0 %v1094
    %3738 = vmatpush.bf16.msra.mxu0 %v1090
    %3739 = vmatpush.bf16.msra.mxu0 %v1086
    %3740 = vmatpush.bf16.msra.mxu0 %v1082
    %3741 = vmatpush.bf16.msra.mxu0 %v1078
    %3742 = vmatpush.bf16.msra.mxu0 %v1074
    %3743 = vmatpush.bf16.msra.mxu0 %v1070
    %3744 = vmatpush.bf16.msra.mxu0 %v1066
    %3745 = vmatmul.bf16.gmra.mxu0 %v3671
    %v3746 = vpop.f32.mrf.mxu0
    %v3747 = vadd.f32 %v3695, %v3746
    %v3748 = vpop.f32.mrf.mxu0
    %3749 = vdwg.mxu0
    %3750 = vmatpush.bf16.msra.mxu0 %v1095
    %3751 = vmatpush.bf16.msra.mxu0 %v1091
    %3752 = vmatpush.bf16.msra.mxu0 %v1087
    %3753 = vmatpush.bf16.msra.mxu0 %v1083
    %3754 = vmatpush.bf16.msra.mxu0 %v1079
    %3755 = vmatpush.bf16.msra.mxu0 %v1075
    %3756 = vmatpush.bf16.msra.mxu0 %v1071
    %3757 = vmatpush.bf16.msra.mxu0 %v1067
    %3758 = vmatmul.bf16.gmra.mxu0 %v3671
    %v3759 = vpop.f32.mrf.mxu0
    %v3760 = vadd.f32 %v3708, %v3759
    %v3761 = vpop.f32.mrf.mxu0
    %3762 = vdwg.mxu0
    %3763 = vmatpush.bf16.msra.mxu0 %v1096
    %3764 = vmatpush.bf16.msra.mxu0 %v1092
    %3765 = vmatpush.bf16.msra.mxu0 %v1088
    %3766 = vmatpush.bf16.msra.mxu0 %v1084
    %3767 = vmatpush.bf16.msra.mxu0 %v1080
    %3768 = vmatpush.bf16.msra.mxu0 %v1076
    %3769 = vmatpush.bf16.msra.mxu0 %v1072
    %3770 = vmatpush.bf16.msra.mxu0 %v1068
    %3771 = vmatmul.bf16.gmra.mxu0 %v3671
    %v3772 = vpop.f32.mrf.mxu0
    %v3773 = vadd.f32 %v3721, %v3772
    %v3774 = vpop.f32.mrf.mxu0
    %3775 = vdwg.mxu0
    %v3776 = vadd.f32 %v3734, %v320
    %v3777 = vadd.f32 %v3747, %v321
    %v3778 = vadd.f32 %v3760, %v322
    %v3779 = vadd.f32 %v3773, %v323
    %v3780 = vxor.u32 %v3776, 2147483648
    %v3781 = vxor.u32 %v3777, 2147483648
    %v3782 = vxor.u32 %v3778, 2147483648
    %v3783 = vmul.f32 %v3780, 1.442695
    %v3784 = vpow.pop %v3783
    %v3785 = vmul.f32 %v3781, 1.442695
    %v3786 = vpow.pop %v3785
    %v3787 = vmul.f32 %v3782, 1.442695
    %v3788 = vpow.pop %v3787
    %v3789 = vadd.f32 %v3784, 1.0
    %v3790 = vadd.f32 %v3786, 1.0
    %v3791 = vadd.f32 %v3788, 1.0
    %v3792 = vrcp.pop %v3789
    %v3793 = vmul.f32 %v3789, %v3792
    %v3794 = vsub.f32 1.0, %v3793
    %v3795 = vmul.f32 %v3792, %v3794
    %v3796 = vadd.f32 %v3792, %v3795
    %vm3797 = vweird.f32 %v3789
    %vm3798 = vweird.f32 %v3792
    %vm3799 = vmor %vm3797, %vm3798
    %v3800 = vsel %vm3799, %v3792, %v3796
    %v3801 = vand.u32 2147483647, %v3789
    %vm3802 = vcmp.eq.f32.partialorder %v3801, 8.507059e+37
    %v3803 = vand.u32 %v3789, 2147483648
    %v3804 = vor.u32 1.1754944e-38, %v3803
    %v3805 = vsel %vm3802, %v3804, %v3800
    %v3806 = vmul.f32 1.0, %v3805
    %v3807 = vrcp.pop %v3790
    %v3808 = vmul.f32 %v3790, %v3807
    %v3809 = vsub.f32 1.0, %v3808
    %v3810 = vmul.f32 %v3807, %v3809
    %v3811 = vadd.f32 %v3807, %v3810
    %vm3812 = vweird.f32 %v3790
    %vm3813 = vweird.f32 %v3807
    %vm3814 = vmor %vm3812, %vm3813
    %v3815 = vsel %vm3814, %v3807, %v3811
    %v3816 = vand.u32 2147483647, %v3790
    %vm3817 = vcmp.eq.f32.partialorder %v3816, 8.507059e+37
    %v3818 = vand.u32 %v3790, 2147483648
    %v3819 = vor.u32 1.1754944e-38, %v3818
    %v3820 = vsel %vm3817, %v3819, %v3815
    %v3821 = vmul.f32 1.0, %v3820
    %v3822 = vrcp.pop %v3791
    %v3823 = vmul.f32 %v3791, %v3822
    %v3824 = vsub.f32 1.0, %v3823
    %v3825 = vmul.f32 %v3822, %v3824
    %v3826 = vadd.f32 %v3822, %v3825
    %vm3827 = vweird.f32 %v3791
    %vm3828 = vweird.f32 %v3822
    %vm3829 = vmor %vm3827, %vm3828
    %v3830 = vsel %vm3829, %v3822, %v3826
    %v3831 = vand.u32 2147483647, %v3791
    %vm3832 = vcmp.eq.f32.partialorder %v3831, 8.507059e+37
    %v3833 = vand.u32 %v3791, 2147483648
    %v3834 = vor.u32 1.1754944e-38, %v3833
    %v3835 = vsel %vm3832, %v3834, %v3830
    %v3836 = vmul.f32 1.0, %v3835
    %v3837 = vtanh.pop %v3779
    %v3838 = vmul.f32 %v3821, %v3476
    %v3839 = vmul.f32 %v3806, %v3837
    %v3840 = vadd.f32 %v3838, %v3839
    %v3841 = vtanh.pop %v3840
    %v3842 = vmul.f32 %v3836, %v3841
    %v3843 = vpack.c.bf16 %v3842, %v3842
    %3844 = vmatpush.bf16.msra.mxu0 %v1288
    %3845 = vmatpush.bf16.msra.mxu0 %v1287
    %3846 = vmatpush.bf16.msra.mxu0 %v1286
    %3847 = vmatpush.bf16.msra.mxu0 %v1285
    %3848 = vmatpush.bf16.msra.mxu0 %v1284
    %3849 = vmatpush.bf16.msra.mxu0 %v1283
    %3850 = vmatpush.bf16.msra.mxu0 %v1282
    %3851 = vmatpush.bf16.msra.mxu0 %v1281
    %3852 = vmatmul.bf16.gmra.mxu0 %v3843
    %v3853 = vpop.f32.mrf.mxu0
    %v3854 = vadd.f32 %v330, %v3853
    %v3855 = vpop.f32.mrf.mxu0
    %3856 = vdwg.mxu0
    %s3857 = scalar_lea.vmem [#allocation17], 14
    %3858 = vst [vmem:[%s3857] sm:$0x3] %v3854
    %3859 = vst [vmem:[#allocation18] sm:$0x3] %v3670
    %s3860 = scalar_lea.vmem [#allocation18], 2
    %3861 = vst [vmem:[%s3860] sm:$0x3] %v3842
    %3862 = vst [vmem:[#allocation20] sm:$0x3] %v3668
    %s3863 = scalar_lea.vmem [#allocation20], 2
    %3864 = vst [vmem:[%s3863] sm:$0x3] %v3840
    // Predicated region
    $region82: #{tpu_custom_call.1} parent=1 // pred_check
      _
    $region83: #{tpu_custom_call.1} parent=1 // pred_check_branch
      %3866 = sbr.rel (0) target = $region85
    $region84: #{tpu_custom_call.1} parent=1 // pred_region
      %3868 = vsyncadd [#allocation4], 0
      %s3869 = sshll.u32 [#allocation17], 4
      %s3870 = int_to_ptr.vmem [resolvable:$true] %s3869
      %s3871 = sshll.u32 %s11, 4
      %s3872 = int_to_ptr.hbm [resolvable:$true] %s3871
      %3877 = dma.vmem_to_hbm [thread:$0]  %s3870, 256, %s3872, [#allocation4], 32, 32, 2
    $region85: #{tpu_custom_call.1} parent=1 // pred_fallthru
      _
    // Predicated region
    $region86: #{tpu_custom_call.1} parent=1 // pred_check
      _
    $region87: #{tpu_custom_call.1} parent=1 // pred_check_branch
      %3879 = sbr.rel (0) target = $region89
    $region88: #{tpu_custom_call.1} parent=1 // pred_region
      %3881 = vsyncadd [#allocation19], 0
      %s3882 = sshll.u32 [#allocation18], 4
      %s3883 = int_to_ptr.vmem [resolvable:$true] %s3882
      %s3884 = sshll.u32 %s12, 4
      %s3885 = int_to_ptr.hbm [resolvable:$true] %s3884
      %3890 = dma.vmem_to_hbm [thread:$0]  %s3883, 64, %s3885, [#allocation19], 32, 32, 2
    $region89: #{tpu_custom_call.1} parent=1 // pred_fallthru
      _
    // Predicated region
    $region90: #{tpu_custom_call.1} parent=1 // pred_check
      _
    $region91: #{tpu_custom_call.1} parent=1 // pred_check_branch
      %3892 = sbr.rel (0) target = $region93
    $region92: #{tpu_custom_call.1} parent=1 // pred_region
      %3894 = vsyncadd [#allocation19], 0
      %s3895 = sshll.u32 [#allocation20], 4
      %s3896 = int_to_ptr.vmem [resolvable:$true] %s3895
      %s3897 = sshll.u32 %s13, 4
      %s3898 = int_to_ptr.hbm [resolvable:$true] %s3897
      %3903 = dma.vmem_to_hbm [thread:$0]  %s3896, 64, %s3898, [#allocation19], 32, 32, 2
    $region93: #{tpu_custom_call.1} parent=1 // pred_fallthru
      _
    // Predicated region
    $region94: #{tpu_custom_call.1} parent=1 // pred_check
      _
    $region95: #{tpu_custom_call.1} parent=1 // pred_check_branch
      %3905 = sbr.rel (0) target = $region97
    $region96: #{tpu_custom_call.1} parent=1 // pred_region
      %3907 = dma.done [#allocation4], 256
    $region97: #{tpu_custom_call.1} parent=1 // pred_fallthru
      _
    // Predicated region
    $region98: #{tpu_custom_call.1} parent=1 // pred_check
      _
    $region99: #{tpu_custom_call.1} parent=1 // pred_check_branch
      %3909 = sbr.rel (0) target = $region101
    $region100: #{tpu_custom_call.1} parent=1 // pred_region
      %3911 = dma.done [#allocation19], 64
    $region101: #{tpu_custom_call.1} parent=1 // pred_fallthru
      _
    // Predicated region
    $region102: #{tpu_custom_call.1} parent=1 // pred_check
      _
    $region103: #{tpu_custom_call.1} parent=1 // pred_check_branch
      %3913 = sbr.rel (0) target = $region105
    $region104: #{tpu_custom_call.1} parent=1 // pred_region
      %3915 = dma.done [#allocation19], 64
    $region105: #{tpu_custom_call.1} parent=1 // pred_fallthru
      _
    %3916 = vsyncpa [#allocation3], 1
    %3917 = vsyncpa [#allocation6], 1
    %3918 = vsyncpa [#allocation9], 1
    %3919 = vsyncpa [#allocation12], 1
    %3920 = vsyncpa [#allocation15], 1
    %3921 = vsyncpa [#allocation4], 1
    %3922 = vsyncpa [#allocation19], 1

</llo_original>
